<compile_context>
chip_gen: v7x
topology: tpu7x:2x2x1
jax: 0.10.0
libtpu: 0.0.40
codegen_flags: <defaults>
</compile_context>

<pallas_src>
import jax
import jax.numpy as jnp
from jax import lax
from jax.experimental import pallas as pl
from jax.experimental.pallas import tpu as pltpu


def fad_block_kernel(x_ref, w1_ref, s1_ref, b1_ref, w2_ref, s2_ref, b2_ref,
                     wse1_ref, bse1_ref, wse2_ref, bse2_ref, o_ref,
                     xpad_ref, mid_ref):
    # x_ref   : (Nb, H, W, Cin)  f32   input block (also the residual)
    # w1_ref  : (3, 3*Cin, C)    bf16  conv1 weights, one fused row of taps per ky
    # s1/b1   : (1, C)           f32   folded BN1 scale / bias
    # w2_ref  : (3, 3*C, C)      bf16  conv2 weights
    # s2/b2   : (1, C)           f32   folded BN2 scale / bias
    # wse1    : (C, Cr) f32, bse1: (1, Cr) f32   SE squeeze FC
    # wse2    : (Cr, C) f32, bse2: (1, C)  f32   SE excite FC
    # o_ref   : (Nb, H, W, C)    f32
    # xpad_ref: (Nb, H+2, W+2, Cin) bf16 scratch (zero-halo padded input)
    # mid_ref : (Nb, H+2, W+2, C)   bf16 scratch (zero-halo padded intermediate)
    Nb, H, W, Cin = x_ref.shape
    C = s1_ref.shape[1]
    M = Nb * H * W
    bf16 = jnp.bfloat16

    x = x_ref[...]                                       # f32, used for conv1 + residual

    # ---- stage input into zero-halo padded bf16 buffer (pad folded into kernel) ----
    xpad_ref[:, 0:1, :, :] = jnp.zeros((Nb, 1, W + 2, Cin), bf16)
    xpad_ref[:, H + 1:H + 2, :, :] = jnp.zeros((Nb, 1, W + 2, Cin), bf16)
    xpad_ref[:, :, 0:1, :] = jnp.zeros((Nb, H + 2, 1, Cin), bf16)
    xpad_ref[:, :, W + 1:W + 2, :] = jnp.zeros((Nb, H + 2, 1, Cin), bf16)
    xpad_ref[:, 1:H + 1, 1:W + 1, :] = x.astype(bf16)

    # ---- conv1 (3x3, pad=1): 3 matmuls, one per kernel row, K = 3*Cin ----
    acc1 = jnp.zeros((M, C), jnp.float32)
    for ky in range(3):
        patch = jnp.concatenate(
            [xpad_ref[:, ky:ky + H, kx:kx + W, :] for kx in range(3)], axis=-1)
        acc1 = acc1 + jnp.dot(patch.reshape(M, 3 * Cin), w1_ref[ky],
                              preferred_element_type=jnp.float32)

    # ---- BN1 (folded, eval mode) + ReLU ----
    y1 = jnp.maximum(acc1 * s1_ref[...] + b1_ref[...], 0.0)          # (M, C) f32

    # ---- stage intermediate into zero-halo padded bf16 buffer (halo-only zeroing) ----
    mid_ref[:, 0:1, :, :] = jnp.zeros((Nb, 1, W + 2, C), bf16)
    mid_ref[:, H + 1:H + 2, :, :] = jnp.zeros((Nb, 1, W + 2, C), bf16)
    mid_ref[:, :, 0:1, :] = jnp.zeros((Nb, H + 2, 1, C), bf16)
    mid_ref[:, :, W + 1:W + 2, :] = jnp.zeros((Nb, H + 2, 1, C), bf16)
    mid_ref[:, 1:H + 1, 1:W + 1, :] = y1.reshape(Nb, H, W, C).astype(bf16)

    # ---- conv2 (3x3, pad=1): 3 matmuls, K = 3*C ----
    acc2 = jnp.zeros((M, C), jnp.float32)
    for ky in range(3):
        patch = jnp.concatenate(
            [mid_ref[:, ky:ky + H, kx:kx + W, :] for kx in range(3)], axis=-1)
        acc2 = acc2 + jnp.dot(patch.reshape(M, 3 * C), w2_ref[ky],
                              preferred_element_type=jnp.float32)

    # ---- BN2 (folded) ----
    y2 = acc2 * s2_ref[...] + b2_ref[...]                             # (M, C) f32

    # ---- SE: global avg pool -> FC -> ReLU -> FC -> sigmoid -> channel scale ----
    y2_img = y2.reshape(Nb, H * W, C)
    pooled = jnp.mean(y2_img, axis=1)                                 # (Nb, C)
    hid = jnp.maximum(
        jnp.dot(pooled, wse1_ref[...], preferred_element_type=jnp.float32)
        + bse1_ref[...], 0.0)                                         # (Nb, Cr)
    logits = (jnp.dot(hid, wse2_ref[...], preferred_element_type=jnp.float32)
              + bse2_ref[...])                                        # (Nb, C)
    gate = 1.0 / (1.0 + jnp.exp(-logits))
    y2_se = y2_img * gate[:, None, :]                                 # (Nb, H*W, C)

    # ---- residual add (identity downsample) + ReLU ----
    out = jnp.maximum(y2_se.reshape(Nb, H, W, C) + x, 0.0)
    o_ref[...] = out


def fad_basic_block(x_nchw, w1_hwio, bn1, w2_hwio, bn2,
                    w_se1, b_se1, w_se2, b_se2, eps=1e-5, block_n=None):
    """x_nchw: (N, Cin, H, W) f32. Identity-downsample case (inplanes == planes, stride 1)."""
    N, Cin, H, W = x_nchw.shape
    C = w1_hwio.shape[-1]
    Cr = w_se1.shape[-1]
    assert Cin == C, "identity residual path requires inplanes == planes (stride=1)"
    if block_n is None:
        block_n = N if N <= 8 else 8
    assert N % block_n == 0
    Nb = block_n

    x_nhwc = jnp.transpose(x_nchw, (0, 2, 3, 1)).astype(jnp.float32)   # (N,H,W,Cin)

    # Fold BN (eval mode) into per-channel scale/bias.
    def fold(bn):
        gamma, beta, rmean, rvar = bn
        scale = gamma / jnp.sqrt(rvar + eps)
        bias = beta - rmean * scale
        return (scale.reshape(1, -1).astype(jnp.float32),
                bias.reshape(1, -1).astype(jnp.float32))

    s1, b1 = fold(bn1)
    s2, b2 = fold(bn2)

    # (3,3,I,O) -> (ky, 3*I, O): fuse the 3 kx taps of each kernel row into one K dim.
    w1 = w1_hwio.reshape(3, 3 * Cin, C).astype(jnp.bfloat16)
    w2 = w2_hwio.reshape(3, 3 * C, C).astype(jnp.bfloat16)

    wse1 = w_se1.astype(jnp.float32)                  # (C, Cr)
    bse1 = b_se1.reshape(1, -1).astype(jnp.float32)   # (1, Cr)
    wse2 = w_se2.astype(jnp.float32)                  # (Cr, C)
    bse2 = b_se2.reshape(1, -1).astype(jnp.float32)   # (1, C)

    out_nhwc = pl.pallas_call(
        fad_block_kernel,
        out_shape=jax.ShapeDtypeStruct((N, H, W, C), jnp.float32),
        grid_spec=pltpu.PrefetchScalarGridSpec(
            num_scalar_prefetch=0,
            grid=(N // Nb,),
            in_specs=[
                pl.BlockSpec((Nb, H, W, Cin), lambda n: (n, 0, 0, 0)),
                pl.BlockSpec((3, 3 * Cin, C), lambda n: (0, 0, 0)),
                pl.BlockSpec((1, C), lambda n: (0, 0)),
                pl.BlockSpec((1, C), lambda n: (0, 0)),
                pl.BlockSpec((3, 3 * C, C), lambda n: (0, 0, 0)),
                pl.BlockSpec((1, C), lambda n: (0, 0)),
                pl.BlockSpec((1, C), lambda n: (0, 0)),
                pl.BlockSpec((C, Cr), lambda n: (0, 0)),
                pl.BlockSpec((1, Cr), lambda n: (0, 0)),
                pl.BlockSpec((Cr, C), lambda n: (0, 0)),
                pl.BlockSpec((1, C), lambda n: (0, 0)),
            ],
            out_specs=pl.BlockSpec((Nb, H, W, C), lambda n: (n, 0, 0, 0)),
            scratch_shapes=[
                pltpu.VMEM((Nb, H + 2, W + 2, Cin), jnp.bfloat16),
                pltpu.VMEM((Nb, H + 2, W + 2, C), jnp.bfloat16),
            ],
        ),
        compiler_params=pltpu.CompilerParams(
            dimension_semantics=("parallel",)),
    )(x_nhwc, w1, s1, b1, w2, s2, b2, wse1, bse1, wse2, bse2)

    return jnp.transpose(out_nhwc, (0, 3, 1, 2))  # back to NCHW


def reference(x_nchw, w1_hwio, bn1, w2_hwio, bn2, w_se1, b_se1, w_se2, b_se2, eps=1e-5):
    """Pure-JAX (f32) reference of the same forward (eval-mode BN)."""
    x = jnp.transpose(x_nchw, (0, 2, 3, 1))
    dn = ('NHWC', 'HWIO', 'NHWC')

    def bn_apply(y, bn):
        gamma, beta, rmean, rvar = bn
        return (y - rmean) / jnp.sqrt(rvar + eps) * gamma + beta

    out = lax.conv_general_dilated(x, w1_hwio, (1, 1), 'SAME', dimension_numbers=dn)
    out = jnp.maximum(bn_apply(out, bn1), 0.0)
    out = lax.conv_general_dilated(out, w2_hwio, (1, 1), 'SAME', dimension_numbers=dn)
    out = bn_apply(out, bn2)
    # SE
    pooled = out.mean(axis=(1, 2))                                  # (N, C)
    hid = jnp.maximum(pooled @ w_se1 + b_se1, 0.0)
    gate = jax.nn.sigmoid(hid @ w_se2 + b_se2)                      # (N, C)
    out = out * gate[:, None, None, :]
    out = jnp.maximum(out + x, 0.0)
    return jnp.transpose(out, (0, 3, 1, 2))


if __name__ == "__main__":
    key = jax.random.PRNGKey(0)
    k = jax.random.split(key, 16)

    # inplanes == planes == 16 (layer1 of the net), stride=1, identity downsample.
    N, C, H, W = 4, 16, 8, 8
    reduction = 4
    Cr = C // reduction

    x = jax.random.normal(k[0], (N, C, H, W), jnp.float32)

    # conv weights in HWIO (deterministic synthetic init)
    fan = 9 * C
    w1 = jax.random.normal(k[1], (3, 3, C, C), jnp.float32) * (2.0 / fan) ** 0.5
    w2 = jax.random.normal(k[2], (3, 3, C, C), jnp.float32) * (2.0 / fan) ** 0.5

    # BN params: (gamma, beta, running_mean, running_var)
    bn1 = (1.0 + 0.1 * jax.random.normal(k[3], (C,), jnp.float32),
           0.1 * jax.random.normal(k[4], (C,), jnp.float32),
           0.1 * jax.random.normal(k[5], (C,), jnp.float32),
           jnp.abs(1.0 + 0.1 * jax.random.normal(k[6], (C,), jnp.float32)))
    bn2 = (1.0 + 0.1 * jax.random.normal(k[7], (C,), jnp.float32),
           0.1 * jax.random.normal(k[8], (C,), jnp.float32),
           0.1 * jax.random.normal(k[9], (C,), jnp.float32),
           jnp.abs(1.0 + 0.1 * jax.random.normal(k[10], (C,), jnp.float32)))

    # SE weights in (in, out) layout (i.e. PyTorch Linear weight transposed)
    w_se1 = jax.random.normal(k[11], (C, Cr), jnp.float32) * (1.0 / C) ** 0.5
    b_se1 = 0.1 * jax.random.normal(k[12], (Cr,), jnp.float32)
    w_se2 = jax.random.normal(k[13], (Cr, C), jnp.float32) * (1.0 / Cr) ** 0.5
    b_se2 = 0.1 * jax.random.normal(k[14], (C,), jnp.float32)

    out = fad_basic_block(x, w1, bn1, w2, bn2, w_se1, b_se1, w_se2, b_se2, block_n=2)
    out = jax.block_until_ready(out)

    ref = jax.block_until_ready(
        reference(x, w1, bn1, w2, bn2, w_se1, b_se1, w_se2, b_se2))

    assert out.shape == (N, C, H, W)
    # Tolerance relaxed because the conv matmuls run in bf16 (f32 accumulate).
    max_err = float(jnp.max(jnp.abs(out - ref)))
    assert jnp.allclose(out, ref, atol=5e-2, rtol=5e-2), max_err

    print("KERNEL_OK")
</pallas_src>

<mosaic_0001>
module attributes {stable_mosaic.version = 11 : i64} {
  func.func @fad_block_kernel(%arg0: i32, %arg1: memref<2x8x8x16xf32, #tpu.memory_space<vmem>>, %arg2: memref<3x48x16xbf16, #tpu.memory_space<vmem>>, %arg3: memref<1x16xf32, #tpu.memory_space<vmem>>, %arg4: memref<1x16xf32, #tpu.memory_space<vmem>>, %arg5: memref<3x48x16xbf16, #tpu.memory_space<vmem>>, %arg6: memref<1x16xf32, #tpu.memory_space<vmem>>, %arg7: memref<1x16xf32, #tpu.memory_space<vmem>>, %arg8: memref<16x4xf32, #tpu.memory_space<vmem>>, %arg9: memref<1x4xf32, #tpu.memory_space<vmem>>, %arg10: memref<4x16xf32, #tpu.memory_space<vmem>>, %arg11: memref<1x16xf32, #tpu.memory_space<vmem>>, %arg12: memref<2x8x8x16xf32, #tpu.memory_space<vmem>>, %arg13: memref<2x10x10x16xbf16, #tpu.memory_space<vmem>>, %arg14: memref<2x10x10x16xbf16, #tpu.memory_space<vmem>>) attributes {dimension_semantics = [#tpu.dimension_semantics<parallel>], iteration_bounds = array<i64: 2>, scalar_prefetch = 0 : i64, scratch_operands = 2 : i64, tpu.core_type = #tpu.core_type<tc>, window_params = [{transform_indices = @transform_0, window_bounds = array<i64: 2, 8, 8, 16>}, {pipeline_mode = #tpu.pipeline_mode<synchronous>, transform_indices = @transform_1, window_bounds = array<i64: 3, 48, 16>}, {pipeline_mode = #tpu.pipeline_mode<synchronous>, transform_indices = @transform_2, window_bounds = array<i64: 1, 16>}, {pipeline_mode = #tpu.pipeline_mode<synchronous>, transform_indices = @transform_3, window_bounds = array<i64: 1, 16>}, {pipeline_mode = #tpu.pipeline_mode<synchronous>, transform_indices = @transform_4, window_bounds = array<i64: 3, 48, 16>}, {pipeline_mode = #tpu.pipeline_mode<synchronous>, transform_indices = @transform_5, window_bounds = array<i64: 1, 16>}, {pipeline_mode = #tpu.pipeline_mode<synchronous>, transform_indices = @transform_6, window_bounds = array<i64: 1, 16>}, {pipeline_mode = #tpu.pipeline_mode<synchronous>, transform_indices = @transform_7, window_bounds = array<i64: 16, 4>}, {pipeline_mode = #tpu.pipeline_mode<synchronous>, transform_indices = @transform_8, window_bounds = array<i64: 1, 4>}, {pipeline_mode = #tpu.pipeline_mode<synchronous>, transform_indices = @transform_9, window_bounds = array<i64: 4, 16>}, {pipeline_mode = #tpu.pipeline_mode<synchronous>, transform_indices = @transform_10, window_bounds = array<i64: 1, 16>}, {transform_indices = @transform_11, window_bounds = array<i64: 2, 8, 8, 16>}]} {
    %c0 = arith.constant 0 : index
    %c0_0 = arith.constant 0 : index
    %c0_1 = arith.constant 0 : index
    %c0_2 = arith.constant 0 : index
    %0 = vector.load %arg1[%c0, %c0_0, %c0_1, %c0_2] : memref<2x8x8x16xf32, #tpu.memory_space<vmem>>, vector<2x8x8x16xf32>
    %cst = arith.constant 0.000000e+00 : bf16
    %1 = vector.broadcast %cst : bf16 to vector<2x1x10x16xbf16>
    %c0_3 = arith.constant 0 : index
    %c0_4 = arith.constant 0 : index
    %c0_5 = arith.constant 0 : index
    %c0_6 = arith.constant 0 : index
    %2 = vector.load %arg13[%c0_3, %c0_4, %c0_5, %c0_6] : memref<2x10x10x16xbf16, #tpu.memory_space<vmem>>, vector<2x1x10x16xbf16>
    tpu.vector_store %arg13[%c0_3, %c0_4, %c0_5, %c0_6], %1 {strides = array<i32>} : memref<2x10x10x16xbf16, #tpu.memory_space<vmem>>, vector<2x1x10x16xbf16>,
    %cst_7 = arith.constant 0.000000e+00 : bf16
    %3 = vector.broadcast %cst_7 : bf16 to vector<2x1x10x16xbf16>
    %c0_8 = arith.constant 0 : index
    %c9 = arith.constant 9 : index
    %c0_9 = arith.constant 0 : index
    %c0_10 = arith.constant 0 : index
    %4 = vector.load %arg13[%c0_8, %c9, %c0_9, %c0_10] : memref<2x10x10x16xbf16, #tpu.memory_space<vmem>>, vector<2x1x10x16xbf16>
    tpu.vector_store %arg13[%c0_8, %c9, %c0_9, %c0_10], %3 {strides = array<i32>} : memref<2x10x10x16xbf16, #tpu.memory_space<vmem>>, vector<2x1x10x16xbf16>,
    %cst_11 = arith.constant 0.000000e+00 : bf16
    %5 = vector.broadcast %cst_11 : bf16 to vector<2x10x1x16xbf16>
    %c0_12 = arith.constant 0 : index
    %c0_13 = arith.constant 0 : index
    %c0_14 = arith.constant 0 : index
    %c0_15 = arith.constant 0 : index
    %6 = vector.load %arg13[%c0_12, %c0_13, %c0_14, %c0_15] : memref<2x10x10x16xbf16, #tpu.memory_space<vmem>>, vector<2x10x1x16xbf16>
    tpu.vector_store %arg13[%c0_12, %c0_13, %c0_14, %c0_15], %5 {strides = array<i32>} : memref<2x10x10x16xbf16, #tpu.memory_space<vmem>>, vector<2x10x1x16xbf16>,
    %cst_16 = arith.constant 0.000000e+00 : bf16
    %7 = vector.broadcast %cst_16 : bf16 to vector<2x10x1x16xbf16>
    %c0_17 = arith.constant 0 : index
    %c0_18 = arith.constant 0 : index
    %c9_19 = arith.constant 9 : index
    %c0_20 = arith.constant 0 : index
    %8 = vector.load %arg13[%c0_17, %c0_18, %c9_19, %c0_20] : memref<2x10x10x16xbf16, #tpu.memory_space<vmem>>, vector<2x10x1x16xbf16>
    tpu.vector_store %arg13[%c0_17, %c0_18, %c9_19, %c0_20], %7 {strides = array<i32>} : memref<2x10x10x16xbf16, #tpu.memory_space<vmem>>, vector<2x10x1x16xbf16>,
    %9 = arith.truncf %0 : vector<2x8x8x16xf32> to vector<2x8x8x16xbf16>
    %c0_21 = arith.constant 0 : index
    %c1 = arith.constant 1 : index
    %c1_22 = arith.constant 1 : index
    %c0_23 = arith.constant 0 : index
    %10 = vector.load %arg13[%c0_21, %c1, %c1_22, %c0_23] : memref<2x10x10x16xbf16, #tpu.memory_space<vmem>>, vector<2x8x8x16xbf16>
    tpu.vector_store %arg13[%c0_21, %c1, %c1_22, %c0_23], %9 {strides = array<i32>} : memref<2x10x10x16xbf16, #tpu.memory_space<vmem>>, vector<2x8x8x16xbf16>,
    %cst_24 = arith.constant 0.000000e+00 : f32
    %11 = vector.broadcast %cst_24 : f32 to vector<128x16xf32>
    %c0_25 = arith.constant 0 : index
    %c0_26 = arith.constant 0 : index
    %c0_27 = arith.constant 0 : index
    %c0_28 = arith.constant 0 : index
    %12 = vector.load %arg13[%c0_25, %c0_26, %c0_27, %c0_28] : memref<2x10x10x16xbf16, #tpu.memory_space<vmem>>, vector<2x8x8x16xbf16>
    %c0_29 = arith.constant 0 : index
    %c0_30 = arith.constant 0 : index
    %c1_31 = arith.constant 1 : index
    %c0_32 = arith.constant 0 : index
    %13 = vector.load %arg13[%c0_29, %c0_30, %c1_31, %c0_32] : memref<2x10x10x16xbf16, #tpu.memory_space<vmem>>, vector<2x8x8x16xbf16>
    %c0_33 = arith.constant 0 : index
    %c0_34 = arith.constant 0 : index
    %c2 = arith.constant 2 : index
    %c0_35 = arith.constant 0 : index
    %14 = vector.load %arg13[%c0_33, %c0_34, %c2, %c0_35] : memref<2x10x10x16xbf16, #tpu.memory_space<vmem>>, vector<2x8x8x16xbf16>
    %15 = tpu.concatenate %12, %13, %14 in 3 : vector<2x8x8x16xbf16>, vector<2x8x8x16xbf16>, vector<2x8x8x16xbf16> -> vector<2x8x8x48xbf16>
    %16 = vector.shape_cast %15 : vector<2x8x8x48xbf16> to vector<128x48xbf16>
    %c0_36 = arith.constant 0 : index
    %c0_37 = arith.constant 0 : index
    %c0_38 = arith.constant 0 : index
    %17 = vector.load %arg2[%c0_36, %c0_37, %c0_38] : memref<3x48x16xbf16, #tpu.memory_space<vmem>>, vector<1x48x16xbf16>
    %18 = vector.shape_cast %17 : vector<1x48x16xbf16> to vector<48x16xbf16>
    %cst_39 = arith.constant dense<0.000000e+00> : vector<128x16xf32>
    %19 = tpu.matmul %16, %18, %cst_39 {dimension_numbers = #tpu.dot_dimension_numbers<[1], [0], [0], [1], [0, 0, 1, 1], [], []>} : vector<128x48xbf16>, vector<48x16xbf16>, vector<128x16xf32> -> vector<128x16xf32>
    %20 = arith.addf %11, %19 : vector<128x16xf32>
    %c0_40 = arith.constant 0 : index
    %c1_41 = arith.constant 1 : index
    %c0_42 = arith.constant 0 : index
    %c0_43 = arith.constant 0 : index
    %21 = vector.load %arg13[%c0_40, %c1_41, %c0_42, %c0_43] : memref<2x10x10x16xbf16, #tpu.memory_space<vmem>>, vector<2x8x8x16xbf16>
    %c0_44 = arith.constant 0 : index
    %c1_45 = arith.constant 1 : index
    %c1_46 = arith.constant 1 : index
    %c0_47 = arith.constant 0 : index
    %22 = vector.load %arg13[%c0_44, %c1_45, %c1_46, %c0_47] : memref<2x10x10x16xbf16, #tpu.memory_space<vmem>>, vector<2x8x8x16xbf16>
    %c0_48 = arith.constant 0 : index
    %c1_49 = arith.constant 1 : index
    %c2_50 = arith.constant 2 : index
    %c0_51 = arith.constant 0 : index
    %23 = vector.load %arg13[%c0_48, %c1_49, %c2_50, %c0_51] : memref<2x10x10x16xbf16, #tpu.memory_space<vmem>>, vector<2x8x8x16xbf16>
    %24 = tpu.concatenate %21, %22, %23 in 3 : vector<2x8x8x16xbf16>, vector<2x8x8x16xbf16>, vector<2x8x8x16xbf16> -> vector<2x8x8x48xbf16>
    %25 = vector.shape_cast %24 : vector<2x8x8x48xbf16> to vector<128x48xbf16>
    %c1_52 = arith.constant 1 : index
    %c0_53 = arith.constant 0 : index
    %c0_54 = arith.constant 0 : index
    %26 = vector.load %arg2[%c1_52, %c0_53, %c0_54] : memref<3x48x16xbf16, #tpu.memory_space<vmem>>, vector<1x48x16xbf16>
    %27 = vector.shape_cast %26 : vector<1x48x16xbf16> to vector<48x16xbf16>
    %cst_55 = arith.constant dense<0.000000e+00> : vector<128x16xf32>
    %28 = tpu.matmul %25, %27, %cst_55 {dimension_numbers = #tpu.dot_dimension_numbers<[1], [0], [0], [1], [0, 0, 1, 1], [], []>} : vector<128x48xbf16>, vector<48x16xbf16>, vector<128x16xf32> -> vector<128x16xf32>
    %29 = arith.addf %20, %28 : vector<128x16xf32>
    %c0_56 = arith.constant 0 : index
    %c2_57 = arith.constant 2 : index
    %c0_58 = arith.constant 0 : index
    %c0_59 = arith.constant 0 : index
    %30 = vector.load %arg13[%c0_56, %c2_57, %c0_58, %c0_59] : memref<2x10x10x16xbf16, #tpu.memory_space<vmem>>, vector<2x8x8x16xbf16>
    %c0_60 = arith.constant 0 : index
    %c2_61 = arith.constant 2 : index
    %c1_62 = arith.constant 1 : index
    %c0_63 = arith.constant 0 : index
    %31 = vector.load %arg13[%c0_60, %c2_61, %c1_62, %c0_63] : memref<2x10x10x16xbf16, #tpu.memory_space<vmem>>, vector<2x8x8x16xbf16>
    %c0_64 = arith.constant 0 : index
    %c2_65 = arith.constant 2 : index
    %c2_66 = arith.constant 2 : index
    %c0_67 = arith.constant 0 : index
    %32 = vector.load %arg13[%c0_64, %c2_65, %c2_66, %c0_67] : memref<2x10x10x16xbf16, #tpu.memory_space<vmem>>, vector<2x8x8x16xbf16>
    %33 = tpu.concatenate %30, %31, %32 in 3 : vector<2x8x8x16xbf16>, vector<2x8x8x16xbf16>, vector<2x8x8x16xbf16> -> vector<2x8x8x48xbf16>
    %34 = vector.shape_cast %33 : vector<2x8x8x48xbf16> to vector<128x48xbf16>
    %c2_68 = arith.constant 2 : index
    %c0_69 = arith.constant 0 : index
    %c0_70 = arith.constant 0 : index
    %35 = vector.load %arg2[%c2_68, %c0_69, %c0_70] : memref<3x48x16xbf16, #tpu.memory_space<vmem>>, vector<1x48x16xbf16>
    %36 = vector.shape_cast %35 : vector<1x48x16xbf16> to vector<48x16xbf16>
    %cst_71 = arith.constant dense<0.000000e+00> : vector<128x16xf32>
    %37 = tpu.matmul %34, %36, %cst_71 {dimension_numbers = #tpu.dot_dimension_numbers<[1], [0], [0], [1], [0, 0, 1, 1], [], []>} : vector<128x48xbf16>, vector<48x16xbf16>, vector<128x16xf32> -> vector<128x16xf32>
    %38 = arith.addf %29, %37 : vector<128x16xf32>
    %c0_72 = arith.constant 0 : index
    %c0_73 = arith.constant 0 : index
    %39 = vector.load %arg3[%c0_72, %c0_73] : memref<1x16xf32, #tpu.memory_space<vmem>>, vector<1x16xf32>
    %40 = vector.broadcast %39 : vector<1x16xf32> to vector<128x16xf32>
    %41 = arith.mulf %38, %40 : vector<128x16xf32>
    %c0_74 = arith.constant 0 : index
    %c0_75 = arith.constant 0 : index
    %42 = vector.load %arg4[%c0_74, %c0_75] : memref<1x16xf32, #tpu.memory_space<vmem>>, vector<1x16xf32>
    %43 = vector.broadcast %42 : vector<1x16xf32> to vector<128x16xf32>
    %44 = arith.addf %41, %43 : vector<128x16xf32>
    %cst_76 = arith.constant 0.000000e+00 : f32
    %45 = vector.broadcast %cst_76 : f32 to vector<128x16xf32>
    %46 = arith.maximumf %44, %45 : vector<128x16xf32>
    %cst_77 = arith.constant 0.000000e+00 : bf16
    %47 = vector.broadcast %cst_77 : bf16 to vector<2x1x10x16xbf16>
    %c0_78 = arith.constant 0 : index
    %c0_79 = arith.constant 0 : index
    %c0_80 = arith.constant 0 : index
    %c0_81 = arith.constant 0 : index
    %48 = vector.load %arg14[%c0_78, %c0_79, %c0_80, %c0_81] : memref<2x10x10x16xbf16, #tpu.memory_space<vmem>>, vector<2x1x10x16xbf16>
    tpu.vector_store %arg14[%c0_78, %c0_79, %c0_80, %c0_81], %47 {strides = array<i32>} : memref<2x10x10x16xbf16, #tpu.memory_space<vmem>>, vector<2x1x10x16xbf16>,
    %cst_82 = arith.constant 0.000000e+00 : bf16
    %49 = vector.broadcast %cst_82 : bf16 to vector<2x1x10x16xbf16>
    %c0_83 = arith.constant 0 : index
    %c9_84 = arith.constant 9 : index
    %c0_85 = arith.constant 0 : index
    %c0_86 = arith.constant 0 : index
    %50 = vector.load %arg14[%c0_83, %c9_84, %c0_85, %c0_86] : memref<2x10x10x16xbf16, #tpu.memory_space<vmem>>, vector<2x1x10x16xbf16>
    tpu.vector_store %arg14[%c0_83, %c9_84, %c0_85, %c0_86], %49 {strides = array<i32>} : memref<2x10x10x16xbf16, #tpu.memory_space<vmem>>, vector<2x1x10x16xbf16>,
    %cst_87 = arith.constant 0.000000e+00 : bf16
    %51 = vector.broadcast %cst_87 : bf16 to vector<2x10x1x16xbf16>
    %c0_88 = arith.constant 0 : index
    %c0_89 = arith.constant 0 : index
    %c0_90 = arith.constant 0 : index
    %c0_91 = arith.constant 0 : index
    %52 = vector.load %arg14[%c0_88, %c0_89, %c0_90, %c0_91] : memref<2x10x10x16xbf16, #tpu.memory_space<vmem>>, vector<2x10x1x16xbf16>
    tpu.vector_store %arg14[%c0_88, %c0_89, %c0_90, %c0_91], %51 {strides = array<i32>} : memref<2x10x10x16xbf16, #tpu.memory_space<vmem>>, vector<2x10x1x16xbf16>,
    %cst_92 = arith.constant 0.000000e+00 : bf16
    %53 = vector.broadcast %cst_92 : bf16 to vector<2x10x1x16xbf16>
    %c0_93 = arith.constant 0 : index
    %c0_94 = arith.constant 0 : index
    %c9_95 = arith.constant 9 : index
    %c0_96 = arith.constant 0 : index
    %54 = vector.load %arg14[%c0_93, %c0_94, %c9_95, %c0_96] : memref<2x10x10x16xbf16, #tpu.memory_space<vmem>>, vector<2x10x1x16xbf16>
    tpu.vector_store %arg14[%c0_93, %c0_94, %c9_95, %c0_96], %53 {strides = array<i32>} : memref<2x10x10x16xbf16, #tpu.memory_space<vmem>>, vector<2x10x1x16xbf16>,
    %55 = vector.shape_cast %46 : vector<128x16xf32> to vector<2x8x8x16xf32>
    %56 = arith.truncf %55 : vector<2x8x8x16xf32> to vector<2x8x8x16xbf16>
    %c0_97 = arith.constant 0 : index
    %c1_98 = arith.constant 1 : index
    %c1_99 = arith.constant 1 : index
    %c0_100 = arith.constant 0 : index
    %57 = vector.load %arg14[%c0_97, %c1_98, %c1_99, %c0_100] : memref<2x10x10x16xbf16, #tpu.memory_space<vmem>>, vector<2x8x8x16xbf16>
    tpu.vector_store %arg14[%c0_97, %c1_98, %c1_99, %c0_100], %56 {strides = array<i32>} : memref<2x10x10x16xbf16, #tpu.memory_space<vmem>>, vector<2x8x8x16xbf16>,
    %cst_101 = arith.constant 0.000000e+00 : f32
    %58 = vector.broadcast %cst_101 : f32 to vector<128x16xf32>
    %c0_102 = arith.constant 0 : index
    %c0_103 = arith.constant 0 : index
    %c0_104 = arith.constant 0 : index
    %c0_105 = arith.constant 0 : index
    %59 = vector.load %arg14[%c0_102, %c0_103, %c0_104, %c0_105] : memref<2x10x10x16xbf16, #tpu.memory_space<vmem>>, vector<2x8x8x16xbf16>
    %c0_106 = arith.constant 0 : index
    %c0_107 = arith.constant 0 : index
    %c1_108 = arith.constant 1 : index
    %c0_109 = arith.constant 0 : index
    %60 = vector.load %arg14[%c0_106, %c0_107, %c1_108, %c0_109] : memref<2x10x10x16xbf16, #tpu.memory_space<vmem>>, vector<2x8x8x16xbf16>
    %c0_110 = arith.constant 0 : index
    %c0_111 = arith.constant 0 : index
    %c2_112 = arith.constant 2 : index
    %c0_113 = arith.constant 0 : index
    %61 = vector.load %arg14[%c0_110, %c0_111, %c2_112, %c0_113] : memref<2x10x10x16xbf16, #tpu.memory_space<vmem>>, vector<2x8x8x16xbf16>
    %62 = tpu.concatenate %59, %60, %61 in 3 : vector<2x8x8x16xbf16>, vector<2x8x8x16xbf16>, vector<2x8x8x16xbf16> -> vector<2x8x8x48xbf16>
    %63 = vector.shape_cast %62 : vector<2x8x8x48xbf16> to vector<128x48xbf16>
    %c0_114 = arith.constant 0 : index
    %c0_115 = arith.constant 0 : index
    %c0_116 = arith.constant 0 : index
    %64 = vector.load %arg5[%c0_114, %c0_115, %c0_116] : memref<3x48x16xbf16, #tpu.memory_space<vmem>>, vector<1x48x16xbf16>
    %65 = vector.shape_cast %64 : vector<1x48x16xbf16> to vector<48x16xbf16>
    %cst_117 = arith.constant dense<0.000000e+00> : vector<128x16xf32>
    %66 = tpu.matmul %63, %65, %cst_117 {dimension_numbers = #tpu.dot_dimension_numbers<[1], [0], [0], [1], [0, 0, 1, 1], [], []>} : vector<128x48xbf16>, vector<48x16xbf16>, vector<128x16xf32> -> vector<128x16xf32>
    %67 = arith.addf %58, %66 : vector<128x16xf32>
    %c0_118 = arith.constant 0 : index
    %c1_119 = arith.constant 1 : index
    %c0_120 = arith.constant 0 : index
    %c0_121 = arith.constant 0 : index
    %68 = vector.load %arg14[%c0_118, %c1_119, %c0_120, %c0_121] : memref<2x10x10x16xbf16, #tpu.memory_space<vmem>>, vector<2x8x8x16xbf16>
    %c0_122 = arith.constant 0 : index
    %c1_123 = arith.constant 1 : index
    %c1_124 = arith.constant 1 : index
    %c0_125 = arith.constant 0 : index
    %69 = vector.load %arg14[%c0_122, %c1_123, %c1_124, %c0_125] : memref<2x10x10x16xbf16, #tpu.memory_space<vmem>>, vector<2x8x8x16xbf16>
    %c0_126 = arith.constant 0 : index
    %c1_127 = arith.constant 1 : index
    %c2_128 = arith.constant 2 : index
    %c0_129 = arith.constant 0 : index
    %70 = vector.load %arg14[%c0_126, %c1_127, %c2_128, %c0_129] : memref<2x10x10x16xbf16, #tpu.memory_space<vmem>>, vector<2x8x8x16xbf16>
    %71 = tpu.concatenate %68, %69, %70 in 3 : vector<2x8x8x16xbf16>, vector<2x8x8x16xbf16>, vector<2x8x8x16xbf16> -> vector<2x8x8x48xbf16>
    %72 = vector.shape_cast %71 : vector<2x8x8x48xbf16> to vector<128x48xbf16>
    %c1_130 = arith.constant 1 : index
    %c0_131 = arith.constant 0 : index
    %c0_132 = arith.constant 0 : index
    %73 = vector.load %arg5[%c1_130, %c0_131, %c0_132] : memref<3x48x16xbf16, #tpu.memory_space<vmem>>, vector<1x48x16xbf16>
    %74 = vector.shape_cast %73 : vector<1x48x16xbf16> to vector<48x16xbf16>
    %cst_133 = arith.constant dense<0.000000e+00> : vector<128x16xf32>
    %75 = tpu.matmul %72, %74, %cst_133 {dimension_numbers = #tpu.dot_dimension_numbers<[1], [0], [0], [1], [0, 0, 1, 1], [], []>} : vector<128x48xbf16>, vector<48x16xbf16>, vector<128x16xf32> -> vector<128x16xf32>
    %76 = arith.addf %67, %75 : vector<128x16xf32>
    %c0_134 = arith.constant 0 : index
    %c2_135 = arith.constant 2 : index
    %c0_136 = arith.constant 0 : index
    %c0_137 = arith.constant 0 : index
    %77 = vector.load %arg14[%c0_134, %c2_135, %c0_136, %c0_137] : memref<2x10x10x16xbf16, #tpu.memory_space<vmem>>, vector<2x8x8x16xbf16>
    %c0_138 = arith.constant 0 : index
    %c2_139 = arith.constant 2 : index
    %c1_140 = arith.constant 1 : index
    %c0_141 = arith.constant 0 : index
    %78 = vector.load %arg14[%c0_138, %c2_139, %c1_140, %c0_141] : memref<2x10x10x16xbf16, #tpu.memory_space<vmem>>, vector<2x8x8x16xbf16>
    %c0_142 = arith.constant 0 : index
    %c2_143 = arith.constant 2 : index
    %c2_144 = arith.constant 2 : index
    %c0_145 = arith.constant 0 : index
    %79 = vector.load %arg14[%c0_142, %c2_143, %c2_144, %c0_145] : memref<2x10x10x16xbf16, #tpu.memory_space<vmem>>, vector<2x8x8x16xbf16>
    %80 = tpu.concatenate %77, %78, %79 in 3 : vector<2x8x8x16xbf16>, vector<2x8x8x16xbf16>, vector<2x8x8x16xbf16> -> vector<2x8x8x48xbf16>
    %81 = vector.shape_cast %80 : vector<2x8x8x48xbf16> to vector<128x48xbf16>
    %c2_146 = arith.constant 2 : index
    %c0_147 = arith.constant 0 : index
    %c0_148 = arith.constant 0 : index
    %82 = vector.load %arg5[%c2_146, %c0_147, %c0_148] : memref<3x48x16xbf16, #tpu.memory_space<vmem>>, vector<1x48x16xbf16>
    %83 = vector.shape_cast %82 : vector<1x48x16xbf16> to vector<48x16xbf16>
    %cst_149 = arith.constant dense<0.000000e+00> : vector<128x16xf32>
    %84 = tpu.matmul %81, %83, %cst_149 {dimension_numbers = #tpu.dot_dimension_numbers<[1], [0], [0], [1], [0, 0, 1, 1], [], []>} : vector<128x48xbf16>, vector<48x16xbf16>, vector<128x16xf32> -> vector<128x16xf32>
    %85 = arith.addf %76, %84 : vector<128x16xf32>
    %c0_150 = arith.constant 0 : index
    %c0_151 = arith.constant 0 : index
    %86 = vector.load %arg6[%c0_150, %c0_151] : memref<1x16xf32, #tpu.memory_space<vmem>>, vector<1x16xf32>
    %87 = vector.broadcast %86 : vector<1x16xf32> to vector<128x16xf32>
    %88 = arith.mulf %85, %87 : vector<128x16xf32>
    %c0_152 = arith.constant 0 : index
    %c0_153 = arith.constant 0 : index
    %89 = vector.load %arg7[%c0_152, %c0_153] : memref<1x16xf32, #tpu.memory_space<vmem>>, vector<1x16xf32>
    %90 = vector.broadcast %89 : vector<1x16xf32> to vector<128x16xf32>
    %91 = arith.addf %88, %90 : vector<128x16xf32>
    %92 = vector.shape_cast %91 : vector<128x16xf32> to vector<2x64x16xf32>
    %cst_154 = arith.constant dense<0.000000e+00> : vector<2x16xf32>
    %93 = vector.multi_reduction <add>, %92, %cst_154 [1] : vector<2x64x16xf32> to vector<2x16xf32>
    %cst_155 = arith.constant 6.400000e+01 : f32
    %94 = vector.broadcast %cst_155 : f32 to vector<2x16xf32>
    %95 = arith.divf %93, %94 : vector<2x16xf32>
    %c0_156 = arith.constant 0 : index
    %c0_157 = arith.constant 0 : index
    %96 = vector.load %arg8[%c0_156, %c0_157] : memref<16x4xf32, #tpu.memory_space<vmem>>, vector<16x4xf32>
    %cst_158 = arith.constant dense<0.000000e+00> : vector<2x4xf32>
    %97 = tpu.matmul %95, %96, %cst_158 {dimension_numbers = #tpu.dot_dimension_numbers<[1], [0], [0], [1], [0, 0, 1, 1], [], []>} : vector<2x16xf32>, vector<16x4xf32>, vector<2x4xf32> -> vector<2x4xf32>
    %c0_159 = arith.constant 0 : index
    %c0_160 = arith.constant 0 : index
    %98 = vector.load %arg9[%c0_159, %c0_160] : memref<1x4xf32, #tpu.memory_space<vmem>>, vector<1x4xf32>
    %99 = vector.broadcast %98 : vector<1x4xf32> to vector<2x4xf32>
    %100 = arith.addf %97, %99 : vector<2x4xf32>
    %cst_161 = arith.constant 0.000000e+00 : f32
    %101 = vector.broadcast %cst_161 : f32 to vector<2x4xf32>
    %102 = arith.maximumf %100, %101 : vector<2x4xf32>
    %c0_162 = arith.constant 0 : index
    %c0_163 = arith.constant 0 : index
    %103 = vector.load %arg10[%c0_162, %c0_163] : memref<4x16xf32, #tpu.memory_space<vmem>>, vector<4x16xf32>
    %cst_164 = arith.constant dense<0.000000e+00> : vector<2x16xf32>
    %104 = tpu.matmul %102, %103, %cst_164 {dimension_numbers = #tpu.dot_dimension_numbers<[1], [0], [0], [1], [0, 0, 1, 1], [], []>} : vector<2x4xf32>, vector<4x16xf32>, vector<2x16xf32> -> vector<2x16xf32>
    %c0_165 = arith.constant 0 : index
    %c0_166 = arith.constant 0 : index
    %105 = vector.load %arg11[%c0_165, %c0_166] : memref<1x16xf32, #tpu.memory_space<vmem>>, vector<1x16xf32>
    %106 = vector.broadcast %105 : vector<1x16xf32> to vector<2x16xf32>
    %107 = arith.addf %104, %106 : vector<2x16xf32>
    %cst_167 = arith.constant 0.000000e+00 : f32
    %108 = vector.broadcast %cst_167 : f32 to vector<2x16xf32>
    %109 = arith.subf %108, %107 : vector<2x16xf32>
    %110 = math.exp %109 : vector<2x16xf32>
    %cst_168 = arith.constant 1.000000e+00 : f32
    %111 = vector.broadcast %cst_168 : f32 to vector<2x16xf32>
    %112 = arith.addf %111, %110 : vector<2x16xf32>
    %cst_169 = arith.constant 1.000000e+00 : f32
    %113 = vector.broadcast %cst_169 : f32 to vector<2x16xf32>
    %114 = arith.divf %113, %112 : vector<2x16xf32>
    %115 = vector.shape_cast %114 : vector<2x16xf32> to vector<2x1x16xf32>
    %116 = vector.broadcast %115 : vector<2x1x16xf32> to vector<2x64x16xf32>
    %117 = arith.mulf %92, %116 : vector<2x64x16xf32>
    %118 = vector.shape_cast %117 : vector<2x64x16xf32> to vector<2x8x8x16xf32>
    %119 = arith.addf %118, %0 : vector<2x8x8x16xf32>
    %cst_170 = arith.constant 0.000000e+00 : f32
    %120 = vector.broadcast %cst_170 : f32 to vector<2x8x8x16xf32>
    %121 = arith.maximumf %119, %120 : vector<2x8x8x16xf32>
    %c0_171 = arith.constant 0 : index
    %c0_172 = arith.constant 0 : index
    %c0_173 = arith.constant 0 : index
    %c0_174 = arith.constant 0 : index
    %122 = vector.load %arg12[%c0_171, %c0_172, %c0_173, %c0_174] : memref<2x8x8x16xf32, #tpu.memory_space<vmem>>, vector<2x8x8x16xf32>
    tpu.vector_store %arg12[%c0_171, %c0_172, %c0_173, %c0_174], %121 {strides = array<i32>} : memref<2x8x8x16xf32, #tpu.memory_space<vmem>>, vector<2x8x8x16xf32>,
    return
  }
  func.func @transform_0(%arg0: i32) -> (i32, i32, i32, i32) {
    %c0_i32 = arith.constant 0 : i32
    %c0_i32_0 = arith.constant 0 : i32
    %c0_i32_1 = arith.constant 0 : i32
    %c0_i32_2 = arith.constant 0 : i32
    return %arg0, %c0_i32, %c0_i32_0, %c0_i32_1 : i32, i32, i32, i32
  }
  func.func @transform_1(%arg0: i32) -> (i32, i32, i32) {
    %c0_i32 = arith.constant 0 : i32
    %c0_i32_0 = arith.constant 0 : i32
    %c0_i32_1 = arith.constant 0 : i32
    %c0_i32_2 = arith.constant 0 : i32
    return %c0_i32, %c0_i32_0, %c0_i32_1 : i32, i32, i32
  }
  func.func @transform_2(%arg0: i32) -> (i32, i32) {
    %c0_i32 = arith.constant 0 : i32
    %c0_i32_0 = arith.constant 0 : i32
    %c0_i32_1 = arith.constant 0 : i32
    return %c0_i32, %c0_i32_0 : i32, i32
  }
  func.func @transform_3(%arg0: i32) -> (i32, i32) {
    %c0_i32 = arith.constant 0 : i32
    %c0_i32_0 = arith.constant 0 : i32
    %c0_i32_1 = arith.constant 0 : i32
    return %c0_i32, %c0_i32_0 : i32, i32
  }
  func.func @transform_4(%arg0: i32) -> (i32, i32, i32) {
    %c0_i32 = arith.constant 0 : i32
    %c0_i32_0 = arith.constant 0 : i32
    %c0_i32_1 = arith.constant 0 : i32
    %c0_i32_2 = arith.constant 0 : i32
    return %c0_i32, %c0_i32_0, %c0_i32_1 : i32, i32, i32
  }
  func.func @transform_5(%arg0: i32) -> (i32, i32) {
    %c0_i32 = arith.constant 0 : i32
    %c0_i32_0 = arith.constant 0 : i32
    %c0_i32_1 = arith.constant 0 : i32
    return %c0_i32, %c0_i32_0 : i32, i32
  }
  func.func @transform_6(%arg0: i32) -> (i32, i32) {
    %c0_i32 = arith.constant 0 : i32
    %c0_i32_0 = arith.constant 0 : i32
    %c0_i32_1 = arith.constant 0 : i32
    return %c0_i32, %c0_i32_0 : i32, i32
  }
  func.func @transform_7(%arg0: i32) -> (i32, i32) {
    %c0_i32 = arith.constant 0 : i32
    %c0_i32_0 = arith.constant 0 : i32
    %c0_i32_1 = arith.constant 0 : i32
    return %c0_i32, %c0_i32_0 : i32, i32
  }
  func.func @transform_8(%arg0: i32) -> (i32, i32) {
    %c0_i32 = arith.constant 0 : i32
    %c0_i32_0 = arith.constant 0 : i32
    %c0_i32_1 = arith.constant 0 : i32
    return %c0_i32, %c0_i32_0 : i32, i32
  }
  func.func @transform_9(%arg0: i32) -> (i32, i32) {
    %c0_i32 = arith.constant 0 : i32
    %c0_i32_0 = arith.constant 0 : i32
    %c0_i32_1 = arith.constant 0 : i32
    return %c0_i32, %c0_i32_0 : i32, i32
  }
  func.func @transform_10(%arg0: i32) -> (i32, i32) {
    %c0_i32 = arith.constant 0 : i32
    %c0_i32_0 = arith.constant 0 : i32
    %c0_i32_1 = arith.constant 0 : i32
    return %c0_i32, %c0_i32_0 : i32, i32
  }
  func.func @transform_11(%arg0: i32) -> (i32, i32, i32, i32) {
    %c0_i32 = arith.constant 0 : i32
    %c0_i32_0 = arith.constant 0 : i32
    %c0_i32_1 = arith.constant 0 : i32
    %c0_i32_2 = arith.constant 0 : i32
    return %arg0, %c0_i32, %c0_i32_0, %c0_i32_1 : i32, i32, i32, i32
  }
}

</mosaic_0001>

<llo_original>
// kernel: tpu_custom_call.1
$region0: #{tpu_custom_call.1}
  #allocation0 [shape = 'u32[]', space=smem, size = 0x4, offset = 0x4, fixed_abs, tag = 'smem constant byte address 0x4 - core index']
  #allocation1 [shape = 'u32[144,128]{1,0:T(1,128)}', space=vmem, size = 0x12000, scoped, tag = 'internal scratch']
  #allocation2 [shape = 'bf16[2,10,10,16]{3,2,1,0:T(8,128)(2,1)}', space=vmem, size = 0x14000, scoped, tag = 'scratch operand']
  #allocation3 [shape = 'bf16[2,10,10,16]{3,2,1,0:T(8,128)(2,1)}', space=vmem, size = 0x14000, scoped, tag = 'scratch operand']
  %s0 = inlined_call_operand.hbm [shape: f32[4,8,8,16], index: 0, kind: input, shape index: {}]
  %s1 = inlined_call_operand.vmem [shape: bf16[3,48,16], index: 1, kind: input, shape index: {}]
  %s2 = inlined_call_operand.vmem [shape: f32[1,16], index: 2, kind: input, shape index: {}]
  %s3 = inlined_call_operand.vmem [shape: f32[1,16], index: 3, kind: input, shape index: {}]
  %s4 = inlined_call_operand.vmem [shape: bf16[3,48,16], index: 4, kind: input, shape index: {}]
  %s5 = inlined_call_operand.vmem [shape: f32[1,16], index: 5, kind: input, shape index: {}]
  %s6 = inlined_call_operand.vmem [shape: f32[1,16], index: 6, kind: input, shape index: {}]
  %s7 = inlined_call_operand.vmem [shape: f32[16,4], index: 7, kind: input, shape index: {}]
  %s8 = inlined_call_operand.vmem [shape: f32[1,4], index: 8, kind: input, shape index: {}]
  %s9 = inlined_call_operand.vmem [shape: f32[4,16], index: 9, kind: input, shape index: {}]
  %s10 = inlined_call_operand.vmem [shape: f32[1,16], index: 10, kind: input, shape index: {}]
  %s11 = inlined_call_operand.hbm [shape: f32[4,8,8,16], index: 11, kind: output, shape index: {}]
  %s12 = sld [smem:[#allocation0]]
  $region81: #{tpu_custom_call.1} parent=0
    _
  %s14 = ssub.s32 1, %s12
  %s15 = scalar_select 0, %s14, %s12
  $region1: #{tpu_custom_call.1} parent=0
    #allocation4 [shape = 'u8[131072]{0}', space=vmem, size = 0x20000, scoped, tag = 'input window, operand 0']
    #allocation5 [shape = 's32[2]{0}', space=sflag, size = 0x8, scoped, tag = 'scoped memory for tpu_custom_call.1']
    #allocation6 [shape = 's32[2]{0}', space=sflag, size = 0x8, scoped, tag = 'scoped memory for tpu_custom_call.1']
    #allocation7 [shape = 'u8[131072]{0}', space=vmem, size = 0x20000, scoped, tag = 'output window, operand 0']
    %16 = vsyncpa [#allocation5], 0
    %s17 = scalar_lea.sflag [#allocation5], 1
    %18 = vsyncpa %s17, 0
    %19 = vsyncpa [#allocation6], 0
    %s20 = scalar_lea.sflag [#allocation6], 1
    %21 = vsyncpa %s20, 0
    loop: start=0, step=1, limit=4
    $region2: #{tpu_custom_call.1} parent=1 // loop_pre_header
      _
    $region3: #{tpu_custom_call.1} parent=1 // loop_header
      %s23 = sphi 0, %s27
      %p24 = scmp.ge.s32.totalorder %s23, 4
      %s33 = sphi 0, %s35
      %s36 = sphi 0, %s33
      %s37 = sphi 0, %s36
      %s53 = sphi 0, %s37
      %s57 = sphi 0, %s57
      %s59 = sphi 0, %s57
      %s60 = sphi 0, %s59
      %s74 = sphi 0, %s60
      %s78 = sphi 0, %s78
      %s80 = sphi 0, %s78
      %s81 = sphi 0, %s80
      %s95 = sphi 0, %s81
      %s99 = sphi 0, %s99
      %s101 = sphi 0, %s99
      %s102 = sphi 0, %s101
      %s116 = sphi 0, %s102
      %s120 = sphi 0, %s120
      %s122 = sphi 0, %s120
      %s123 = sphi 0, %s122
      %s137 = sphi 0, %s123
      %s141 = sphi 0, %s141
      %s143 = sphi 0, %s141
      %s144 = sphi 0, %s143
      %s158 = sphi 0, %s144
      %s162 = sphi 0, %s162
      %s164 = sphi 0, %s162
      %s165 = sphi 0, %s164
      %s179 = sphi 0, %s165
      %s183 = sphi 0, %s183
      %s185 = sphi 0, %s183
      %s186 = sphi 0, %s185
      %s200 = sphi 0, %s186
      %s204 = sphi 0, %s204
      %s206 = sphi 0, %s204
      %s207 = sphi 0, %s206
      %s221 = sphi 0, %s207
      %s225 = sphi 0, %s225
      %s227 = sphi 0, %s225
      %s228 = sphi 0, %s227
      %s242 = sphi 0, %s228
      %s246 = sphi 0, %s246
      %s248 = sphi 0, %s246
      %s249 = sphi 0, %s248
      %s263 = sphi 0, %s249
      %s269 = sphi 0, %s271
      %s272 = sphi 0, %s269
      %s273 = sphi 0, %s272
      %s289 = sphi 0, %s273
    $region4: #{tpu_custom_call.1} parent=1 // loop_header_branch
      %26 = sbr.rel (%p24) target = $region8
    $region5: #{tpu_custom_call.1} parent=1 // loop_body
      %s28 = ssub.s32 %s23, 1
      %s29 = ssub.s32 %s23, 2
      %s30 = sadd.s32 %s23, 1
      %s31 = ssub.s32 %s23, %s30
      %p32 = scmp.eq.s32.totalorder %s31, 0
      %s34 = sadd.s32 %s33, 1
      %s35 = scalar_select %p32, %s33, %s34
      %p38 = pneg %p32
      %p39 = scmp.eq.s32.totalorder %s23, 1
      %p40 = por %p38, %p39
      %p41 = scmp.ne.s32.totalorder %s33, %s36
      %p42 = scmp.eq.s32.totalorder %s23, 0
      %p43 = por %p41, %p42
      %p44 = scmp.ne.s32.totalorder %s33, %s36
      %p45 = scmp.eq.s32.totalorder %s28, 1
      %p46 = por %p44, %p45
      %p47 = scmp.ne.s32.totalorder %s36, %s37
      %p48 = scmp.eq.s32.totalorder %s28, 0
      %p49 = por %p47, %p48
      %p50 = scmp.ne.s32.totalorder %s36, %s37
      %p51 = scmp.eq.s32.totalorder %s29, 1
      %p52 = por %p50, %p51
      %p54 = scmp.ne.s32.totalorder %s37, %s53
      %p55 = scmp.eq.s32.totalorder %s29, 0
      %p56 = por %p54, %p55
      %s58 = sadd.s32 %s57, 1
      %p61 = scmp.eq.s32.totalorder %s23, 1
      %p62 = scmp.ne.s32.totalorder %s57, %s59
      %p63 = scmp.eq.s32.totalorder %s23, 0
      %p64 = por %p62, %p63
      %p65 = scmp.ne.s32.totalorder %s57, %s59
      %p66 = scmp.eq.s32.totalorder %s28, 1
      %p67 = por %p65, %p66
      %p68 = scmp.ne.s32.totalorder %s59, %s60
      %p69 = scmp.eq.s32.totalorder %s28, 0
      %p70 = por %p68, %p69
      %p71 = scmp.ne.s32.totalorder %s59, %s60
      %p72 = scmp.eq.s32.totalorder %s29, 1
      %p73 = por %p71, %p72
      %p75 = scmp.ne.s32.totalorder %s60, %s74
      %p76 = scmp.eq.s32.totalorder %s29, 0
      %p77 = por %p75, %p76
      %s79 = sadd.s32 %s78, 1
      %p82 = scmp.eq.s32.totalorder %s23, 1
      %p83 = scmp.ne.s32.totalorder %s78, %s80
      %p84 = scmp.eq.s32.totalorder %s23, 0
      %p85 = por %p83, %p84
      %p86 = scmp.ne.s32.totalorder %s78, %s80
      %p87 = scmp.eq.s32.totalorder %s28, 1
      %p88 = por %p86, %p87
      %p89 = scmp.ne.s32.totalorder %s80, %s81
      %p90 = scmp.eq.s32.totalorder %s28, 0
      %p91 = por %p89, %p90
      %p92 = scmp.ne.s32.totalorder %s80, %s81
      %p93 = scmp.eq.s32.totalorder %s29, 1
      %p94 = por %p92, %p93
      %p96 = scmp.ne.s32.totalorder %s81, %s95
      %p97 = scmp.eq.s32.totalorder %s29, 0
      %p98 = por %p96, %p97
      %s100 = sadd.s32 %s99, 1
      %p103 = scmp.eq.s32.totalorder %s23, 1
      %p104 = scmp.ne.s32.totalorder %s99, %s101
      %p105 = scmp.eq.s32.totalorder %s23, 0
      %p106 = por %p104, %p105
      %p107 = scmp.ne.s32.totalorder %s99, %s101
      %p108 = scmp.eq.s32.totalorder %s28, 1
      %p109 = por %p107, %p108
      %p110 = scmp.ne.s32.totalorder %s101, %s102
      %p111 = scmp.eq.s32.totalorder %s28, 0
      %p112 = por %p110, %p111
      %p113 = scmp.ne.s32.totalorder %s101, %s102
      %p114 = scmp.eq.s32.totalorder %s29, 1
      %p115 = por %p113, %p114
      %p117 = scmp.ne.s32.totalorder %s102, %s116
      %p118 = scmp.eq.s32.totalorder %s29, 0
      %p119 = por %p117, %p118
      %s121 = sadd.s32 %s120, 1
      %p124 = scmp.eq.s32.totalorder %s23, 1
      %p125 = scmp.ne.s32.totalorder %s120, %s122
      %p126 = scmp.eq.s32.totalorder %s23, 0
      %p127 = por %p125, %p126
      %p128 = scmp.ne.s32.totalorder %s120, %s122
      %p129 = scmp.eq.s32.totalorder %s28, 1
      %p130 = por %p128, %p129
      %p131 = scmp.ne.s32.totalorder %s122, %s123
      %p132 = scmp.eq.s32.totalorder %s28, 0
      %p133 = por %p131, %p132
      %p134 = scmp.ne.s32.totalorder %s122, %s123
      %p135 = scmp.eq.s32.totalorder %s29, 1
      %p136 = por %p134, %p135
      %p138 = scmp.ne.s32.totalorder %s123, %s137
      %p139 = scmp.eq.s32.totalorder %s29, 0
      %p140 = por %p138, %p139
      %s142 = sadd.s32 %s141, 1
      %p145 = scmp.eq.s32.totalorder %s23, 1
      %p146 = scmp.ne.s32.totalorder %s141, %s143
      %p147 = scmp.eq.s32.totalorder %s23, 0
      %p148 = por %p146, %p147
      %p149 = scmp.ne.s32.totalorder %s141, %s143
      %p150 = scmp.eq.s32.totalorder %s28, 1
      %p151 = por %p149, %p150
      %p152 = scmp.ne.s32.totalorder %s143, %s144
      %p153 = scmp.eq.s32.totalorder %s28, 0
      %p154 = por %p152, %p153
      %p155 = scmp.ne.s32.totalorder %s143, %s144
      %p156 = scmp.eq.s32.totalorder %s29, 1
      %p157 = por %p155, %p156
      %p159 = scmp.ne.s32.totalorder %s144, %s158
      %p160 = scmp.eq.s32.totalorder %s29, 0
      %p161 = por %p159, %p160
      %s163 = sadd.s32 %s162, 1
      %p166 = scmp.eq.s32.totalorder %s23, 1
      %p167 = scmp.ne.s32.totalorder %s162, %s164
      %p168 = scmp.eq.s32.totalorder %s23, 0
      %p169 = por %p167, %p168
      %p170 = scmp.ne.s32.totalorder %s162, %s164
      %p171 = scmp.eq.s32.totalorder %s28, 1
      %p172 = por %p170, %p171
      %p173 = scmp.ne.s32.totalorder %s164, %s165
      %p174 = scmp.eq.s32.totalorder %s28, 0
      %p175 = por %p173, %p174
      %p176 = scmp.ne.s32.totalorder %s164, %s165
      %p177 = scmp.eq.s32.totalorder %s29, 1
      %p178 = por %p176, %p177
      %p180 = scmp.ne.s32.totalorder %s165, %s179
      %p181 = scmp.eq.s32.totalorder %s29, 0
      %p182 = por %p180, %p181
      %s184 = sadd.s32 %s183, 1
      %p187 = scmp.eq.s32.totalorder %s23, 1
      %p188 = scmp.ne.s32.totalorder %s183, %s185
      %p189 = scmp.eq.s32.totalorder %s23, 0
      %p190 = por %p188, %p189
      %p191 = scmp.ne.s32.totalorder %s183, %s185
      %p192 = scmp.eq.s32.totalorder %s28, 1
      %p193 = por %p191, %p192
      %p194 = scmp.ne.s32.totalorder %s185, %s186
      %p195 = scmp.eq.s32.totalorder %s28, 0
      %p196 = por %p194, %p195
      %p197 = scmp.ne.s32.totalorder %s185, %s186
      %p198 = scmp.eq.s32.totalorder %s29, 1
      %p199 = por %p197, %p198
      %p201 = scmp.ne.s32.totalorder %s186, %s200
      %p202 = scmp.eq.s32.totalorder %s29, 0
      %p203 = por %p201, %p202
      %s205 = sadd.s32 %s204, 1
      %p208 = scmp.eq.s32.totalorder %s23, 1
      %p209 = scmp.ne.s32.totalorder %s204, %s206
      %p210 = scmp.eq.s32.totalorder %s23, 0
      %p211 = por %p209, %p210
      %p212 = scmp.ne.s32.totalorder %s204, %s206
      %p213 = scmp.eq.s32.totalorder %s28, 1
      %p214 = por %p212, %p213
      %p215 = scmp.ne.s32.totalorder %s206, %s207
      %p216 = scmp.eq.s32.totalorder %s28, 0
      %p217 = por %p215, %p216
      %p218 = scmp.ne.s32.totalorder %s206, %s207
      %p219 = scmp.eq.s32.totalorder %s29, 1
      %p220 = por %p218, %p219
      %p222 = scmp.ne.s32.totalorder %s207, %s221
      %p223 = scmp.eq.s32.totalorder %s29, 0
      %p224 = por %p222, %p223
      %s226 = sadd.s32 %s225, 1
      %p229 = scmp.eq.s32.totalorder %s23, 1
      %p230 = scmp.ne.s32.totalorder %s225, %s227
      %p231 = scmp.eq.s32.totalorder %s23, 0
      %p232 = por %p230, %p231
      %p233 = scmp.ne.s32.totalorder %s225, %s227
      %p234 = scmp.eq.s32.totalorder %s28, 1
      %p235 = por %p233, %p234
      %p236 = scmp.ne.s32.totalorder %s227, %s228
      %p237 = scmp.eq.s32.totalorder %s28, 0
      %p238 = por %p236, %p237
      %p239 = scmp.ne.s32.totalorder %s227, %s228
      %p240 = scmp.eq.s32.totalorder %s29, 1
      %p241 = por %p239, %p240
      %p243 = scmp.ne.s32.totalorder %s228, %s242
      %p244 = scmp.eq.s32.totalorder %s29, 0
      %p245 = por %p243, %p244
      %s247 = sadd.s32 %s246, 1
      %p250 = scmp.eq.s32.totalorder %s23, 1
      %p251 = scmp.ne.s32.totalorder %s246, %s248
      %p252 = scmp.eq.s32.totalorder %s23, 0
      %p253 = por %p251, %p252
      %p254 = scmp.ne.s32.totalorder %s246, %s248
      %p255 = scmp.eq.s32.totalorder %s28, 1
      %p256 = por %p254, %p255
      %p257 = scmp.ne.s32.totalorder %s248, %s249
      %p258 = scmp.eq.s32.totalorder %s28, 0
      %p259 = por %p257, %p258
      %p260 = scmp.ne.s32.totalorder %s248, %s249
      %p261 = scmp.eq.s32.totalorder %s29, 1
      %p262 = por %p260, %p261
      %p264 = scmp.ne.s32.totalorder %s249, %s263
      %p265 = scmp.eq.s32.totalorder %s29, 0
      %p266 = por %p264, %p265
      %s267 = ssub.s32 %s23, %s30
      %p268 = scmp.eq.s32.totalorder %s267, 0
      %s270 = sadd.s32 %s269, 1
      %s271 = scalar_select %p268, %s269, %s270
      %p274 = pneg %p268
      %p275 = scmp.eq.s32.totalorder %s23, 1
      %p276 = por %p274, %p275
      %p277 = scmp.ne.s32.totalorder %s269, %s272
      %p278 = scmp.eq.s32.totalorder %s23, 0
      %p279 = por %p277, %p278
      %p280 = scmp.ne.s32.totalorder %s269, %s272
      %p281 = scmp.eq.s32.totalorder %s28, 1
      %p282 = por %p280, %p281
      %p283 = scmp.ne.s32.totalorder %s272, %s273
      %p284 = scmp.eq.s32.totalorder %s28, 0
      %p285 = por %p283, %p284
      %p286 = scmp.ne.s32.totalorder %s272, %s273
      %p287 = scmp.eq.s32.totalorder %s29, 1
      %p288 = por %p286, %p287
      %p290 = scmp.ne.s32.totalorder %s273, %s289
      %p291 = scmp.eq.s32.totalorder %s29, 0
      %p292 = por %p290, %p291
      %p293 = scmp.le.s32.totalorder 1, %s23
      %p294 = scmp.lt.s32.totalorder %s23, 3
      %p295 = pnand %p293, %p294
      %p296 = pneg %p295
      // Predicated region
      $region9: #{tpu_custom_call.1} parent=5 // pred_check
        _
      $region10: #{tpu_custom_call.1} parent=5 // pred_check_branch
        %298 = sbr.rel (%p295) target = $region12
      $region11: #{tpu_custom_call.1} parent=5 // pred_region
        %s299 = ssub.s32 %s23, 1
        // Predicated region
        $region13: #{tpu_custom_call.1} parent=11 // pred_check
          %p300 = pneg %p70
        $region14: #{tpu_custom_call.1} parent=11 // pred_check_branch
          %302 = sbr.rel (%p300) target = $region16
        $region15: #{tpu_custom_call.1} parent=11 // pred_region
          _
        $region16: #{tpu_custom_call.1} parent=11 // pred_fallthru
          _
        // Predicated region
        $region17: #{tpu_custom_call.1} parent=11 // pred_check
          %p303 = pneg %p91
        $region18: #{tpu_custom_call.1} parent=11 // pred_check_branch
          %305 = sbr.rel (%p303) target = $region20
        $region19: #{tpu_custom_call.1} parent=11 // pred_region
          _
        $region20: #{tpu_custom_call.1} parent=11 // pred_fallthru
          _
        // Predicated region
        $region21: #{tpu_custom_call.1} parent=11 // pred_check
          %p306 = pneg %p112
        $region22: #{tpu_custom_call.1} parent=11 // pred_check_branch
          %308 = sbr.rel (%p306) target = $region24
        $region23: #{tpu_custom_call.1} parent=11 // pred_region
          _
        $region24: #{tpu_custom_call.1} parent=11 // pred_fallthru
          _
        // Predicated region
        $region25: #{tpu_custom_call.1} parent=11 // pred_check
          %p309 = pneg %p133
        $region26: #{tpu_custom_call.1} parent=11 // pred_check_branch
          %311 = sbr.rel (%p309) target = $region28
        $region27: #{tpu_custom_call.1} parent=11 // pred_region
          _
        $region28: #{tpu_custom_call.1} parent=11 // pred_fallthru
          _
        // Predicated region
        $region29: #{tpu_custom_call.1} parent=11 // pred_check
          %p312 = pneg %p154
        $region30: #{tpu_custom_call.1} parent=11 // pred_check_branch
          %314 = sbr.rel (%p312) target = $region32
        $region31: #{tpu_custom_call.1} parent=11 // pred_region
          _
        $region32: #{tpu_custom_call.1} parent=11 // pred_fallthru
          _
        // Predicated region
        $region33: #{tpu_custom_call.1} parent=11 // pred_check
          %p315 = pneg %p175
        $region34: #{tpu_custom_call.1} parent=11 // pred_check_branch
          %317 = sbr.rel (%p315) target = $region36
        $region35: #{tpu_custom_call.1} parent=11 // pred_region
          _
        $region36: #{tpu_custom_call.1} parent=11 // pred_fallthru
          _
        // Predicated region
        $region37: #{tpu_custom_call.1} parent=11 // pred_check
          %p318 = pneg %p196
        $region38: #{tpu_custom_call.1} parent=11 // pred_check_branch
          %320 = sbr.rel (%p318) target = $region40
        $region39: #{tpu_custom_call.1} parent=11 // pred_region
          _
        $region40: #{tpu_custom_call.1} parent=11 // pred_fallthru
          _
        // Predicated region
        $region41: #{tpu_custom_call.1} parent=11 // pred_check
          %p321 = pneg %p217
        $region42: #{tpu_custom_call.1} parent=11 // pred_check_branch
          %323 = sbr.rel (%p321) target = $region44
        $region43: #{tpu_custom_call.1} parent=11 // pred_region
          _
        $region44: #{tpu_custom_call.1} parent=11 // pred_fallthru
          _
        // Predicated region
        $region45: #{tpu_custom_call.1} parent=11 // pred_check
          %p324 = pneg %p238
        $region46: #{tpu_custom_call.1} parent=11 // pred_check_branch
          %326 = sbr.rel (%p324) target = $region48
        $region47: #{tpu_custom_call.1} parent=11 // pred_region
          _
        $region48: #{tpu_custom_call.1} parent=11 // pred_fallthru
          _
        // Predicated region
        $region49: #{tpu_custom_call.1} parent=11 // pred_check
          %p327 = pneg %p259
        $region50: #{tpu_custom_call.1} parent=11 // pred_check_branch
          %329 = sbr.rel (%p327) target = $region52
        $region51: #{tpu_custom_call.1} parent=11 // pred_region
          _
        $region52: #{tpu_custom_call.1} parent=11 // pred_fallthru
          _
      $region12: #{tpu_custom_call.1} parent=5 // pred_fallthru
        _
      %p330 = scmp.lt.s32.totalorder %s23, 2
      // Predicated region
      $region53: #{tpu_custom_call.1} parent=5 // pred_check
        %p331 = pneg %p330
      $region54: #{tpu_custom_call.1} parent=5 // pred_check_branch
        %333 = sbr.rel (%p331) target = $region56
      $region55: #{tpu_custom_call.1} parent=5 // pred_region
        // Predicated region
        $region57: #{tpu_custom_call.1} parent=55 // pred_check
          %p334 = pneg %p43
        $region58: #{tpu_custom_call.1} parent=55 // pred_check_branch
          %336 = sbr.rel (%p334) target = $region60
        $region59: #{tpu_custom_call.1} parent=55 // pred_region
          %s337 = sand.u32 %s33, 1
          %s338 = scalar_lea.sflag [#allocation5], %s337
          %s339 = sand.u32 %s33, 1
          %s340 = smul.addr %s339, 128
          %s341 = scalar_lea.vmem [#allocation4], %s340
          %s342 = smul.u32 2, %s23
          %s344 = ssub.s32 2048, 2048
          %345 = vsyncadd %s338, %s344
          %s346 = smul.addr %s342, 8
          %s347 = smul.addr %s346, 128
          %s348 = scalar_lea.hbm %s0, %s347
          %s349 = sshll.u32 %s341, 4
          %s350 = int_to_ptr.vmem [resolvable:$true] %s349
          %355 = dma.hbm_to_vmem [thread:$0]  %s348, 2048, %s350, %s338, 128, 128, 8
        $region60: #{tpu_custom_call.1} parent=55 // pred_fallthru
          _
      $region56: #{tpu_custom_call.1} parent=5 // pred_fallthru
        _
      %p356 = scmp.le.s32.totalorder 1, %s23
      %p357 = scmp.lt.s32.totalorder %s23, 3
      %p358 = pnand %p356, %p357
      %p359 = pneg %p358
      // Predicated region
      $region61: #{tpu_custom_call.1} parent=5 // pred_check
        _
      $region62: #{tpu_custom_call.1} parent=5 // pred_check_branch
        %361 = sbr.rel (%p358) target = $region64
      $region63: #{tpu_custom_call.1} parent=5 // pred_region
        %s362 = ssub.s32 %s23, 1
        %s363 = sand.u32 %s36, 1
        %s364 = scalar_lea.sflag [#allocation5], %s363
        %s365 = sand.u32 %s36, 1
        %s366 = smul.addr %s365, 128
        %s367 = scalar_lea.vmem [#allocation4], %s366
        // Predicated region
        $region65: #{tpu_custom_call.1} parent=63 // pred_check
          %p368 = pneg %p49
        $region66: #{tpu_custom_call.1} parent=63 // pred_check_branch
          %370 = sbr.rel (%p368) target = $region68
        $region67: #{tpu_custom_call.1} parent=63 // pred_region
          %371 = dma.done %s364, 2048
        $region68: #{tpu_custom_call.1} parent=63 // pred_fallthru
          _
        %s372 = sand.u32 %s36, 1
        %s373 = scalar_lea.sflag [#allocation5], %s372
        %s374 = sand.u32 %s36, 1
        %s375 = smul.addr %s374, 128
        %s376 = scalar_lea.vmem [#allocation4], %s375
        %p377 = pneg %p49
        %p378 = pneg %p46
        %p379 = pneg %p70
        %p380 = pneg %p67
        %p381 = pneg %p91
        %p382 = pneg %p88
        %p383 = pneg %p112
        %p384 = pneg %p109
        %p385 = pneg %p133
        %p386 = pneg %p130
        %p387 = pneg %p154
        %p388 = pneg %p151
        %p389 = pneg %p175
        %p390 = pneg %p172
        %p391 = pneg %p196
        %p392 = pneg %p193
        %p393 = pneg %p217
        %p394 = pneg %p214
        %p395 = pneg %p238
        %p396 = pneg %p235
        %p397 = pneg %p259
        %p398 = pneg %p256
        %p399 = pneg %p285
        %p400 = pneg %p282
        %s401 = sand.u32 %s272, 1
        %s402 = scalar_lea.sflag [#allocation6], %s401
        %s403 = sand.u32 %s272, 1
        %s404 = smul.addr %s403, 128
        %s405 = scalar_lea.vmem [#allocation7], %s404
        %s406 = smul.u32 2, %s28
        %s407 = smul.u32 2, %s28
        %v409 = vld [vmem:[%s367] sm:$0xff]
        %v410 = vld [vmem:[%s367 + $0x8] sm:$0xff]
        %v411 = vld [vmem:[%s367 + $0x10] sm:$0xff]
        %v412 = vld [vmem:[%s367 + $0x18] sm:$0xff]
        %v413 = vld [vmem:[%s367 + $0x20] sm:$0xff]
        %v414 = vld [vmem:[%s367 + $0x28] sm:$0xff]
        %v415 = vld [vmem:[%s367 + $0x30] sm:$0xff]
        %v416 = vld [vmem:[%s367 + $0x38] sm:$0xff]
        %v417 = vld [vmem:[%s367 + $0x40] sm:$0xff]
        %v418 = vld [vmem:[%s367 + $0x48] sm:$0xff]
        %v419 = vld [vmem:[%s367 + $0x50] sm:$0xff]
        %v420 = vld [vmem:[%s367 + $0x58] sm:$0xff]
        %v421 = vld [vmem:[%s367 + $0x60] sm:$0xff]
        %v422 = vld [vmem:[%s367 + $0x68] sm:$0xff]
        %v423 = vld [vmem:[%s367 + $0x70] sm:$0xff]
        %v424 = vld [vmem:[%s367 + $0x78] sm:$0xff]
        %vm425 = vcmask 125952
        %426 = vst.msk [vmem:[#allocation2] sm:$0xf] %vm425, 0
        %vm427 = vcmask 122880
        %428 = vst.msk [vmem:[#allocation2 + $0x4] sm:$0x1] %vm427, 0
        %429 = vst.msk [vmem:[#allocation2 + $0x50] sm:$0xf] %vm425, 0
        %430 = vst.msk [vmem:[#allocation2 + $0x54] sm:$0x1] %vm427, 0
        %s431 = scalar_lea.vmem [#allocation2], 72
        %432 = vst.msk [vmem:[%s431] sm:$0xf] %vm425, 0
        %433 = vst.msk [vmem:[%s431 + $0x4] sm:$0x1] %vm427, 0
        %434 = vst.msk [vmem:[%s431 + $0x50] sm:$0xf] %vm425, 0
        %435 = vst.msk [vmem:[%s431 + $0x54] sm:$0x1] %vm427, 0
        %vm436 = vcmask 122880
        %vm437 = vsmask.f32 256
        %vm438 = vmand %vm436, %vm437
        %v439 = vld [vmem:[#allocation2] sm:$0x1]
        %v440 = vsel %vm438, 0, %v439
        %441 = vst [vmem:[#allocation2] sm:$0x1] %v440
        %v442 = vld [vmem:[#allocation2 + $0x8] sm:$0x1]
        %v443 = vsel %vm438, 0, %v442
        %444 = vst [vmem:[#allocation2 + $0x8] sm:$0x1] %v443
        %v445 = vld [vmem:[#allocation2 + $0x10] sm:$0x1]
        %v446 = vsel %vm438, 0, %v445
        %447 = vst [vmem:[#allocation2 + $0x10] sm:$0x1] %v446
        %v448 = vld [vmem:[#allocation2 + $0x18] sm:$0x1]
        %v449 = vsel %vm438, 0, %v448
        %450 = vst [vmem:[#allocation2 + $0x18] sm:$0x1] %v449
        %v451 = vld [vmem:[#allocation2 + $0x20] sm:$0x1]
        %v452 = vsel %vm438, 0, %v451
        %453 = vst [vmem:[#allocation2 + $0x20] sm:$0x1] %v452
        %v454 = vld [vmem:[#allocation2 + $0x28] sm:$0x1]
        %v455 = vsel %vm438, 0, %v454
        %456 = vst [vmem:[#allocation2 + $0x28] sm:$0x1] %v455
        %v457 = vld [vmem:[#allocation2 + $0x30] sm:$0x1]
        %v458 = vsel %vm438, 0, %v457
        %459 = vst [vmem:[#allocation2 + $0x30] sm:$0x1] %v458
        %v460 = vld [vmem:[#allocation2 + $0x38] sm:$0x1]
        %v461 = vsel %vm438, 0, %v460
        %462 = vst [vmem:[#allocation2 + $0x38] sm:$0x1] %v461
        %v463 = vld [vmem:[#allocation2 + $0x40] sm:$0x1]
        %v464 = vsel %vm438, 0, %v463
        %465 = vst [vmem:[#allocation2 + $0x40] sm:$0x1] %v464
        %v466 = vld [vmem:[#allocation2 + $0x48] sm:$0x1]
        %v467 = vsel %vm438, 0, %v466
        %468 = vst [vmem:[#allocation2 + $0x48] sm:$0x1] %v467
        %v469 = vld [vmem:[#allocation2 + $0x50] sm:$0x1]
        %v470 = vsel %vm438, 0, %v469
        %471 = vst [vmem:[#allocation2 + $0x50] sm:$0x1] %v470
        %v472 = vld [vmem:[#allocation2 + $0x58] sm:$0x1]
        %v473 = vsel %vm438, 0, %v472
        %474 = vst [vmem:[#allocation2 + $0x58] sm:$0x1] %v473
        %v475 = vld [vmem:[#allocation2 + $0x60] sm:$0x1]
        %v476 = vsel %vm438, 0, %v475
        %477 = vst [vmem:[#allocation2 + $0x60] sm:$0x1] %v476
        %v478 = vld [vmem:[#allocation2 + $0x68] sm:$0x1]
        %v479 = vsel %vm438, 0, %v478
        %480 = vst [vmem:[#allocation2 + $0x68] sm:$0x1] %v479
        %v481 = vld [vmem:[#allocation2 + $0x70] sm:$0x1]
        %v482 = vsel %vm438, 0, %v481
        %483 = vst [vmem:[#allocation2 + $0x70] sm:$0x1] %v482
        %v484 = vld [vmem:[#allocation2 + $0x78] sm:$0x1]
        %v485 = vsel %vm438, 0, %v484
        %486 = vst [vmem:[#allocation2 + $0x78] sm:$0x1] %v485
        %v487 = vld [vmem:[#allocation2 + $0x80] sm:$0x1]
        %v488 = vsel %vm438, 0, %v487
        %489 = vst [vmem:[#allocation2 + $0x80] sm:$0x1] %v488
        %v490 = vld [vmem:[#allocation2 + $0x88] sm:$0x1]
        %v491 = vsel %vm438, 0, %v490
        %492 = vst [vmem:[#allocation2 + $0x88] sm:$0x1] %v491
        %v493 = vld [vmem:[#allocation2 + $0x90] sm:$0x1]
        %v494 = vsel %vm438, 0, %v493
        %495 = vst [vmem:[#allocation2 + $0x90] sm:$0x1] %v494
        %v496 = vld [vmem:[#allocation2 + $0x98] sm:$0x1]
        %v497 = vsel %vm438, 0, %v496
        %498 = vst [vmem:[#allocation2 + $0x98] sm:$0x1] %v497
        %vm499 = vsmask.f32 7938
        %vm500 = vmand %vm436, %vm499
        %v501 = vld [vmem:[#allocation2 + $0x4] sm:$0x1]
        %v502 = vsel %vm500, 0, %v501
        %503 = vst [vmem:[#allocation2 + $0x4] sm:$0x1] %v502
        %v504 = vld [vmem:[#allocation2 + $0xc] sm:$0x1]
        %v505 = vsel %vm500, 0, %v504
        %506 = vst [vmem:[#allocation2 + $0xc] sm:$0x1] %v505
        %v507 = vld [vmem:[#allocation2 + $0x14] sm:$0x1]
        %v508 = vsel %vm500, 0, %v507
        %509 = vst [vmem:[#allocation2 + $0x14] sm:$0x1] %v508
        %v510 = vld [vmem:[#allocation2 + $0x1c] sm:$0x1]
        %v511 = vsel %vm500, 0, %v510
        %512 = vst [vmem:[#allocation2 + $0x1c] sm:$0x1] %v511
        %v513 = vld [vmem:[#allocation2 + $0x24] sm:$0x1]
        %v514 = vsel %vm500, 0, %v513
        %515 = vst [vmem:[#allocation2 + $0x24] sm:$0x1] %v514
        %v516 = vld [vmem:[#allocation2 + $0x2c] sm:$0x1]
        %v517 = vsel %vm500, 0, %v516
        %518 = vst [vmem:[#allocation2 + $0x2c] sm:$0x1] %v517
        %v519 = vld [vmem:[#allocation2 + $0x34] sm:$0x1]
        %v520 = vsel %vm500, 0, %v519
        %521 = vst [vmem:[#allocation2 + $0x34] sm:$0x1] %v520
        %v522 = vld [vmem:[#allocation2 + $0x3c] sm:$0x1]
        %v523 = vsel %vm500, 0, %v522
        %524 = vst [vmem:[#allocation2 + $0x3c] sm:$0x1] %v523
        %v525 = vld [vmem:[#allocation2 + $0x44] sm:$0x1]
        %v526 = vsel %vm500, 0, %v525
        %527 = vst [vmem:[#allocation2 + $0x44] sm:$0x1] %v526
        %v528 = vld [vmem:[#allocation2 + $0x4c] sm:$0x1]
        %v529 = vsel %vm500, 0, %v528
        %530 = vst [vmem:[#allocation2 + $0x4c] sm:$0x1] %v529
        %v531 = vld [vmem:[#allocation2 + $0x54] sm:$0x1]
        %v532 = vsel %vm500, 0, %v531
        %533 = vst [vmem:[#allocation2 + $0x54] sm:$0x1] %v532
        %v534 = vld [vmem:[#allocation2 + $0x5c] sm:$0x1]
        %v535 = vsel %vm500, 0, %v534
        %536 = vst [vmem:[#allocation2 + $0x5c] sm:$0x1] %v535
        %v537 = vld [vmem:[#allocation2 + $0x64] sm:$0x1]
        %v538 = vsel %vm500, 0, %v537
        %539 = vst [vmem:[#allocation2 + $0x64] sm:$0x1] %v538
        %v540 = vld [vmem:[#allocation2 + $0x6c] sm:$0x1]
        %v541 = vsel %vm500, 0, %v540
        %542 = vst [vmem:[#allocation2 + $0x6c] sm:$0x1] %v541
        %v543 = vld [vmem:[#allocation2 + $0x74] sm:$0x1]
        %v544 = vsel %vm500, 0, %v543
        %545 = vst [vmem:[#allocation2 + $0x74] sm:$0x1] %v544
        %v546 = vld [vmem:[#allocation2 + $0x7c] sm:$0x1]
        %v547 = vsel %vm500, 0, %v546
        %548 = vst [vmem:[#allocation2 + $0x7c] sm:$0x1] %v547
        %v549 = vld [vmem:[#allocation2 + $0x84] sm:$0x1]
        %v550 = vsel %vm500, 0, %v549
        %551 = vst [vmem:[#allocation2 + $0x84] sm:$0x1] %v550
        %v552 = vld [vmem:[#allocation2 + $0x8c] sm:$0x1]
        %v553 = vsel %vm500, 0, %v552
        %554 = vst [vmem:[#allocation2 + $0x8c] sm:$0x1] %v553
        %v555 = vld [vmem:[#allocation2 + $0x94] sm:$0x1]
        %v556 = vsel %vm500, 0, %v555
        %557 = vst [vmem:[#allocation2 + $0x94] sm:$0x1] %v556
        %v558 = vld [vmem:[#allocation2 + $0x9c] sm:$0x1]
        %v559 = vsel %vm500, 0, %v558
        %560 = vst [vmem:[#allocation2 + $0x9c] sm:$0x1] %v559
        %v561 = vpack.c.bf16 %v409, %v409
        %v562 = vpack.c.bf16 %v410, %v410
        %v563 = vpack.c.bf16 %v411, %v411
        %v564 = vpack.c.bf16 %v412, %v412
        %v565 = vpack.c.bf16 %v413, %v413
        %v566 = vpack.c.bf16 %v414, %v414
        %v567 = vpack.c.bf16 %v415, %v415
        %v568 = vpack.c.bf16 %v416, %v416
        %v569 = vpack.c.bf16 %v417, %v417
        %v570 = vpack.c.bf16 %v418, %v418
        %v571 = vpack.c.bf16 %v419, %v419
        %v572 = vpack.c.bf16 %v420, %v420
        %v573 = vpack.c.bf16 %v421, %v421
        %v574 = vpack.c.bf16 %v422, %v422
        %v575 = vpack.c.bf16 %v423, %v423
        %v576 = vpack.c.bf16 %v424, %v424
        %v593 = vunpack.c.l.b16 %v561
        %v594 = vunpack.c.l.b16 %v562
        %v595 = vunpack.c.l.b16 %v563
        %v596 = vunpack.c.l.b16 %v564
        %v597 = vunpack.c.l.b16 %v565
        %v598 = vunpack.c.l.b16 %v566
        %v599 = vunpack.c.l.b16 %v567
        %v600 = vunpack.c.l.b16 %v568
        %v601 = vunpack.c.l.b16 %v569
        %v602 = vunpack.c.l.b16 %v570
        %v603 = vunpack.c.l.b16 %v571
        %v604 = vunpack.c.l.b16 %v572
        %v605 = vunpack.c.l.b16 %v573
        %v606 = vunpack.c.l.b16 %v574
        %v607 = vunpack.c.l.b16 %v575
        %v608 = vunpack.c.l.b16 %v576
        %v609 = vpack.c.b16 %v593, %v593
        %v610 = vpack.c.b16 %v594, %v594
        %v611 = vpack.c.b16 %v595, %v595
        %v612 = vpack.c.b16 %v596, %v596
        %v613 = vpack.c.b16 %v597, %v597
        %v614 = vpack.c.b16 %v598, %v598
        %v615 = vpack.c.b16 %v599, %v599
        %v616 = vpack.c.b16 %v600, %v600
        %v617 = vpack.c.b16 %v601, %v601
        %v618 = vpack.c.b16 %v602, %v602
        %v619 = vpack.c.b16 %v603, %v603
        %v620 = vpack.c.b16 %v604, %v604
        %v621 = vpack.c.b16 %v605, %v605
        %v622 = vpack.c.b16 %v606, %v606
        %v623 = vpack.c.b16 %v607, %v607
        %v624 = vpack.c.b16 %v608, %v608
        %v626 = vshrl.u32 %v609, 16
        %v628 = vrot.slane %v626, 7
        %v629 = vshll.u32 %v609, 16
        %v631 = vor.u32 %v628, %v629
        %v632 = vrot.slane %v628, 4
        %v634 = vshrl.u32 %v610, 16
        %v636 = vrot.slane %v634, 7
        %v637 = vshll.u32 %v610, 16
        %v639 = vor.u32 %v636, %v637
        %v640 = vrot.slane %v636, 4
        %v642 = vshrl.u32 %v611, 16
        %v644 = vrot.slane %v642, 7
        %v645 = vshll.u32 %v611, 16
        %v647 = vor.u32 %v644, %v645
        %v648 = vrot.slane %v644, 4
        %v650 = vshrl.u32 %v612, 16
        %v652 = vrot.slane %v650, 7
        %v653 = vshll.u32 %v612, 16
        %v655 = vor.u32 %v652, %v653
        %v656 = vrot.slane %v652, 4
        %v658 = vshrl.u32 %v613, 16
        %v660 = vrot.slane %v658, 7
        %v661 = vshll.u32 %v613, 16
        %v663 = vor.u32 %v660, %v661
        %v664 = vrot.slane %v660, 4
        %v666 = vshrl.u32 %v614, 16
        %v668 = vrot.slane %v666, 7
        %v669 = vshll.u32 %v614, 16
        %v671 = vor.u32 %v668, %v669
        %v672 = vrot.slane %v668, 4
        %v674 = vshrl.u32 %v615, 16
        %v676 = vrot.slane %v674, 7
        %v677 = vshll.u32 %v615, 16
        %v679 = vor.u32 %v676, %v677
        %v680 = vrot.slane %v676, 4
        %v682 = vshrl.u32 %v616, 16
        %v684 = vrot.slane %v682, 7
        %v685 = vshll.u32 %v616, 16
        %v687 = vor.u32 %v684, %v685
        %v688 = vrot.slane %v684, 4
        %v690 = vshrl.u32 %v617, 16
        %v692 = vrot.slane %v690, 7
        %v693 = vshll.u32 %v617, 16
        %v695 = vor.u32 %v692, %v693
        %v696 = vrot.slane %v692, 4
        %v698 = vshrl.u32 %v618, 16
        %v700 = vrot.slane %v698, 7
        %v701 = vshll.u32 %v618, 16
        %v703 = vor.u32 %v700, %v701
        %v704 = vrot.slane %v700, 4
        %v706 = vshrl.u32 %v619, 16
        %v708 = vrot.slane %v706, 7
        %v709 = vshll.u32 %v619, 16
        %v711 = vor.u32 %v708, %v709
        %v712 = vrot.slane %v708, 4
        %v714 = vshrl.u32 %v620, 16
        %v716 = vrot.slane %v714, 7
        %v717 = vshll.u32 %v620, 16
        %v719 = vor.u32 %v716, %v717
        %v720 = vrot.slane %v716, 4
        %v722 = vshrl.u32 %v621, 16
        %v724 = vrot.slane %v722, 7
        %v725 = vshll.u32 %v621, 16
        %v727 = vor.u32 %v724, %v725
        %v728 = vrot.slane %v724, 4
        %v730 = vshrl.u32 %v622, 16
        %v732 = vrot.slane %v730, 7
        %v733 = vshll.u32 %v622, 16
        %v735 = vor.u32 %v732, %v733
        %v736 = vrot.slane %v732, 4
        %v738 = vshrl.u32 %v623, 16
        %v740 = vrot.slane %v738, 7
        %v741 = vshll.u32 %v623, 16
        %v743 = vor.u32 %v740, %v741
        %v744 = vrot.slane %v740, 4
        %v746 = vshrl.u32 %v624, 16
        %v748 = vrot.slane %v746, 7
        %v749 = vshll.u32 %v624, 16
        %v751 = vor.u32 %v748, %v749
        %v752 = vrot.slane %v748, 4
        %s785 = scalar_lea.vmem [#allocation2], 8
        %vm786 = vcmask 125952
        %vm787 = vmand %vm786, %vm499
        %v788 = vld [vmem:[%s785] sm:$0xf]
        %v789 = vsel %vm787, %v631, %v788
        %790 = vst [vmem:[%s785] sm:$0xf] %v789
        %v791 = vld [vmem:[%s785 + $0x4] sm:$0x1]
        %v792 = vsel %vm438, %v632, %v791
        %793 = vst [vmem:[%s785 + $0x4] sm:$0x1] %v792
        %v794 = vld [vmem:[%s785 + $0x8] sm:$0xf]
        %v795 = vsel %vm787, %v639, %v794
        %796 = vst [vmem:[%s785 + $0x8] sm:$0xf] %v795
        %v797 = vld [vmem:[%s785 + $0xc] sm:$0x1]
        %v798 = vsel %vm438, %v640, %v797
        %799 = vst [vmem:[%s785 + $0xc] sm:$0x1] %v798
        %v800 = vld [vmem:[%s785 + $0x10] sm:$0xf]
        %v801 = vsel %vm787, %v647, %v800
        %802 = vst [vmem:[%s785 + $0x10] sm:$0xf] %v801
        %v803 = vld [vmem:[%s785 + $0x14] sm:$0x1]
        %v804 = vsel %vm438, %v648, %v803
        %805 = vst [vmem:[%s785 + $0x14] sm:$0x1] %v804
        %v806 = vld [vmem:[%s785 + $0x18] sm:$0xf]
        %v807 = vsel %vm787, %v655, %v806
        %808 = vst [vmem:[%s785 + $0x18] sm:$0xf] %v807
        %v809 = vld [vmem:[%s785 + $0x1c] sm:$0x1]
        %v810 = vsel %vm438, %v656, %v809
        %811 = vst [vmem:[%s785 + $0x1c] sm:$0x1] %v810
        %v812 = vld [vmem:[%s785 + $0x20] sm:$0xf]
        %v813 = vsel %vm787, %v663, %v812
        %814 = vst [vmem:[%s785 + $0x20] sm:$0xf] %v813
        %v815 = vld [vmem:[%s785 + $0x24] sm:$0x1]
        %v816 = vsel %vm438, %v664, %v815
        %817 = vst [vmem:[%s785 + $0x24] sm:$0x1] %v816
        %v818 = vld [vmem:[%s785 + $0x28] sm:$0xf]
        %v819 = vsel %vm787, %v671, %v818
        %820 = vst [vmem:[%s785 + $0x28] sm:$0xf] %v819
        %v821 = vld [vmem:[%s785 + $0x2c] sm:$0x1]
        %v822 = vsel %vm438, %v672, %v821
        %823 = vst [vmem:[%s785 + $0x2c] sm:$0x1] %v822
        %v824 = vld [vmem:[%s785 + $0x30] sm:$0xf]
        %v825 = vsel %vm787, %v679, %v824
        %826 = vst [vmem:[%s785 + $0x30] sm:$0xf] %v825
        %v827 = vld [vmem:[%s785 + $0x34] sm:$0x1]
        %v828 = vsel %vm438, %v680, %v827
        %829 = vst [vmem:[%s785 + $0x34] sm:$0x1] %v828
        %v830 = vld [vmem:[%s785 + $0x38] sm:$0xf]
        %v831 = vsel %vm787, %v687, %v830
        %832 = vst [vmem:[%s785 + $0x38] sm:$0xf] %v831
        %v833 = vld [vmem:[%s785 + $0x3c] sm:$0x1]
        %v834 = vsel %vm438, %v688, %v833
        %835 = vst [vmem:[%s785 + $0x3c] sm:$0x1] %v834
        %v836 = vld [vmem:[%s785 + $0x50] sm:$0xf]
        %v837 = vsel %vm787, %v695, %v836
        %838 = vst [vmem:[%s785 + $0x50] sm:$0xf] %v837
        %v839 = vld [vmem:[%s785 + $0x54] sm:$0x1]
        %v840 = vsel %vm438, %v696, %v839
        %841 = vst [vmem:[%s785 + $0x54] sm:$0x1] %v840
        %v842 = vld [vmem:[%s785 + $0x58] sm:$0xf]
        %v843 = vsel %vm787, %v703, %v842
        %844 = vst [vmem:[%s785 + $0x58] sm:$0xf] %v843
        %v845 = vld [vmem:[%s785 + $0x5c] sm:$0x1]
        %v846 = vsel %vm438, %v704, %v845
        %847 = vst [vmem:[%s785 + $0x5c] sm:$0x1] %v846
        %v848 = vld [vmem:[%s785 + $0x60] sm:$0xf]
        %v849 = vsel %vm787, %v711, %v848
        %850 = vst [vmem:[%s785 + $0x60] sm:$0xf] %v849
        %v851 = vld [vmem:[%s785 + $0x64] sm:$0x1]
        %v852 = vsel %vm438, %v712, %v851
        %853 = vst [vmem:[%s785 + $0x64] sm:$0x1] %v852
        %v854 = vld [vmem:[%s785 + $0x68] sm:$0xf]
        %v855 = vsel %vm787, %v719, %v854
        %856 = vst [vmem:[%s785 + $0x68] sm:$0xf] %v855
        %v857 = vld [vmem:[%s785 + $0x6c] sm:$0x1]
        %v858 = vsel %vm438, %v720, %v857
        %859 = vst [vmem:[%s785 + $0x6c] sm:$0x1] %v858
        %v860 = vld [vmem:[%s785 + $0x70] sm:$0xf]
        %v861 = vsel %vm787, %v727, %v860
        %862 = vst [vmem:[%s785 + $0x70] sm:$0xf] %v861
        %v863 = vld [vmem:[%s785 + $0x74] sm:$0x1]
        %v864 = vsel %vm438, %v728, %v863
        %865 = vst [vmem:[%s785 + $0x74] sm:$0x1] %v864
        %v866 = vld [vmem:[%s785 + $0x78] sm:$0xf]
        %v867 = vsel %vm787, %v735, %v866
        %868 = vst [vmem:[%s785 + $0x78] sm:$0xf] %v867
        %v869 = vld [vmem:[%s785 + $0x7c] sm:$0x1]
        %v870 = vsel %vm438, %v736, %v869
        %871 = vst [vmem:[%s785 + $0x7c] sm:$0x1] %v870
        %v872 = vld [vmem:[%s785 + $0x80] sm:$0xf]
        %v873 = vsel %vm787, %v743, %v872
        %874 = vst [vmem:[%s785 + $0x80] sm:$0xf] %v873
        %v875 = vld [vmem:[%s785 + $0x84] sm:$0x1]
        %v876 = vsel %vm438, %v744, %v875
        %877 = vst [vmem:[%s785 + $0x84] sm:$0x1] %v876
        %v878 = vld [vmem:[%s785 + $0x88] sm:$0xf]
        %v879 = vsel %vm787, %v751, %v878
        %880 = vst [vmem:[%s785 + $0x88] sm:$0xf] %v879
        %v881 = vld [vmem:[%s785 + $0x8c] sm:$0x1]
        %v882 = vsel %vm438, %v752, %v881
        %883 = vst [vmem:[%s785 + $0x8c] sm:$0x1] %v882
        %v884 = vld [vmem:[#allocation2] sm:$0xf]
        %v885 = vld [vmem:[#allocation2 + $0x8] sm:$0xf]
        %v886 = vld [vmem:[#allocation2 + $0x10] sm:$0xf]
        %v887 = vld [vmem:[#allocation2 + $0x18] sm:$0xf]
        %v888 = vld [vmem:[#allocation2 + $0x20] sm:$0xf]
        %v889 = vld [vmem:[#allocation2 + $0x28] sm:$0xf]
        %v890 = vld [vmem:[#allocation2 + $0x30] sm:$0xf]
        %v891 = vld [vmem:[#allocation2 + $0x38] sm:$0xf]
        %v892 = vld [vmem:[#allocation2 + $0x50] sm:$0xf]
        %v893 = vld [vmem:[#allocation2 + $0x58] sm:$0xf]
        %v894 = vld [vmem:[#allocation2 + $0x60] sm:$0xf]
        %v895 = vld [vmem:[#allocation2 + $0x68] sm:$0xf]
        %v896 = vld [vmem:[#allocation2 + $0x70] sm:$0xf]
        %v897 = vld [vmem:[#allocation2 + $0x78] sm:$0xf]
        %v898 = vld [vmem:[#allocation2 + $0x80] sm:$0xf]
        %v899 = vld [vmem:[#allocation2 + $0x88] sm:$0xf]
        %v900 = vld [vmem:[#allocation2 + $0x4] sm:$0x1]
        %v901 = vld [vmem:[#allocation2 + $0xc] sm:$0x1]
        %v902 = vld [vmem:[#allocation2 + $0x14] sm:$0x1]
        %v903 = vld [vmem:[#allocation2 + $0x1c] sm:$0x1]
        %v904 = vld [vmem:[#allocation2 + $0x24] sm:$0x1]
        %v905 = vld [vmem:[#allocation2 + $0x2c] sm:$0x1]
        %v906 = vld [vmem:[#allocation2 + $0x34] sm:$0x1]
        %v907 = vld [vmem:[#allocation2 + $0x3c] sm:$0x1]
        %v908 = vld [vmem:[#allocation2 + $0x54] sm:$0x1]
        %v909 = vld [vmem:[#allocation2 + $0x5c] sm:$0x1]
        %v910 = vld [vmem:[#allocation2 + $0x64] sm:$0x1]
        %v911 = vld [vmem:[#allocation2 + $0x6c] sm:$0x1]
        %v912 = vld [vmem:[#allocation2 + $0x74] sm:$0x1]
        %v913 = vld [vmem:[#allocation2 + $0x7c] sm:$0x1]
        %v914 = vld [vmem:[#allocation2 + $0x84] sm:$0x1]
        %v915 = vld [vmem:[#allocation2 + $0x8c] sm:$0x1]
        %v916 = vld [vmem:[#allocation2] sm:$0xe]
        %v917 = vld [vmem:[#allocation2 + $0x8] sm:$0xe]
        %v918 = vld [vmem:[#allocation2 + $0x10] sm:$0xe]
        %v919 = vld [vmem:[#allocation2 + $0x18] sm:$0xe]
        %v920 = vld [vmem:[#allocation2 + $0x20] sm:$0xe]
        %v921 = vld [vmem:[#allocation2 + $0x28] sm:$0xe]
        %v922 = vld [vmem:[#allocation2 + $0x30] sm:$0xe]
        %v923 = vld [vmem:[#allocation2 + $0x38] sm:$0xe]
        %v924 = vld [vmem:[#allocation2 + $0x50] sm:$0xe]
        %v925 = vld [vmem:[#allocation2 + $0x58] sm:$0xe]
        %v926 = vld [vmem:[#allocation2 + $0x60] sm:$0xe]
        %v927 = vld [vmem:[#allocation2 + $0x68] sm:$0xe]
        %v928 = vld [vmem:[#allocation2 + $0x70] sm:$0xe]
        %v929 = vld [vmem:[#allocation2 + $0x78] sm:$0xe]
        %v930 = vld [vmem:[#allocation2 + $0x80] sm:$0xe]
        %v931 = vld [vmem:[#allocation2 + $0x88] sm:$0xe]
        %v964 = vunpack.c.l.b16 %v884
        %v965 = vunpack.c.l.b16 %v900
        %v966 = vunpack.c.l.b16 %v885
        %v967 = vunpack.c.l.b16 %v901
        %v968 = vunpack.c.l.b16 %v886
        %v969 = vunpack.c.l.b16 %v902
        %v970 = vunpack.c.l.b16 %v887
        %v971 = vunpack.c.l.b16 %v903
        %v972 = vunpack.c.l.b16 %v888
        %v973 = vunpack.c.l.b16 %v904
        %v974 = vunpack.c.l.b16 %v889
        %v975 = vunpack.c.l.b16 %v905
        %v976 = vunpack.c.l.b16 %v890
        %v977 = vunpack.c.l.b16 %v906
        %v978 = vunpack.c.l.b16 %v891
        %v979 = vunpack.c.l.b16 %v907
        %v980 = vunpack.c.l.b16 %v892
        %v981 = vunpack.c.l.b16 %v908
        %v982 = vunpack.c.l.b16 %v893
        %v983 = vunpack.c.l.b16 %v909
        %v984 = vunpack.c.l.b16 %v894
        %v985 = vunpack.c.l.b16 %v910
        %v986 = vunpack.c.l.b16 %v895
        %v987 = vunpack.c.l.b16 %v911
        %v988 = vunpack.c.l.b16 %v896
        %v989 = vunpack.c.l.b16 %v912
        %v990 = vunpack.c.l.b16 %v897
        %v991 = vunpack.c.l.b16 %v913
        %v992 = vunpack.c.l.b16 %v898
        %v993 = vunpack.c.l.b16 %v914
        %v994 = vunpack.c.l.b16 %v899
        %v995 = vunpack.c.l.b16 %v915
        %v996 = vpack.c.b16 %v965, %v964
        %v997 = vpack.c.b16 %v967, %v966
        %v998 = vpack.c.b16 %v969, %v968
        %v999 = vpack.c.b16 %v971, %v970
        %v1000 = vpack.c.b16 %v973, %v972
        %v1001 = vpack.c.b16 %v975, %v974
        %v1002 = vpack.c.b16 %v977, %v976
        %v1003 = vpack.c.b16 %v979, %v978
        %v1004 = vpack.c.b16 %v981, %v980
        %v1005 = vpack.c.b16 %v983, %v982
        %v1006 = vpack.c.b16 %v985, %v984
        %v1007 = vpack.c.b16 %v987, %v986
        %v1008 = vpack.c.b16 %v989, %v988
        %v1009 = vpack.c.b16 %v991, %v990
        %v1010 = vpack.c.b16 %v993, %v992
        %v1011 = vpack.c.b16 %v995, %v994
        %v1013 = vshrl.u32 %v996, 16
        %v1015 = vshll.u32 %v996, 16
        %v1017 = vrot.slane %v1015, 1
        %v1018 = vor.u32 %v1013, %v1017
        %v1020 = vshrl.u32 %v997, 16
        %v1022 = vshll.u32 %v997, 16
        %v1024 = vrot.slane %v1022, 1
        %v1025 = vor.u32 %v1020, %v1024
        %v1027 = vshrl.u32 %v998, 16
        %v1029 = vshll.u32 %v998, 16
        %v1031 = vrot.slane %v1029, 1
        %v1032 = vor.u32 %v1027, %v1031
        %v1034 = vshrl.u32 %v999, 16
        %v1036 = vshll.u32 %v999, 16
        %v1038 = vrot.slane %v1036, 1
        %v1039 = vor.u32 %v1034, %v1038
        %v1041 = vshrl.u32 %v1000, 16
        %v1043 = vshll.u32 %v1000, 16
        %v1045 = vrot.slane %v1043, 1
        %v1046 = vor.u32 %v1041, %v1045
        %v1048 = vshrl.u32 %v1001, 16
        %v1050 = vshll.u32 %v1001, 16
        %v1052 = vrot.slane %v1050, 1
        %v1053 = vor.u32 %v1048, %v1052
        %v1055 = vshrl.u32 %v1002, 16
        %v1057 = vshll.u32 %v1002, 16
        %v1059 = vrot.slane %v1057, 1
        %v1060 = vor.u32 %v1055, %v1059
        %v1062 = vshrl.u32 %v1003, 16
        %v1064 = vshll.u32 %v1003, 16
        %v1066 = vrot.slane %v1064, 1
        %v1067 = vor.u32 %v1062, %v1066
        %v1069 = vshrl.u32 %v1004, 16
        %v1071 = vshll.u32 %v1004, 16
        %v1073 = vrot.slane %v1071, 1
        %v1074 = vor.u32 %v1069, %v1073
        %v1076 = vshrl.u32 %v1005, 16
        %v1078 = vshll.u32 %v1005, 16
        %v1080 = vrot.slane %v1078, 1
        %v1081 = vor.u32 %v1076, %v1080
        %v1083 = vshrl.u32 %v1006, 16
        %v1085 = vshll.u32 %v1006, 16
        %v1087 = vrot.slane %v1085, 1
        %v1088 = vor.u32 %v1083, %v1087
        %v1090 = vshrl.u32 %v1007, 16
        %v1092 = vshll.u32 %v1007, 16
        %v1094 = vrot.slane %v1092, 1
        %v1095 = vor.u32 %v1090, %v1094
        %v1097 = vshrl.u32 %v1008, 16
        %v1099 = vshll.u32 %v1008, 16
        %v1101 = vrot.slane %v1099, 1
        %v1102 = vor.u32 %v1097, %v1101
        %v1104 = vshrl.u32 %v1009, 16
        %v1106 = vshll.u32 %v1009, 16
        %v1108 = vrot.slane %v1106, 1
        %v1109 = vor.u32 %v1104, %v1108
        %v1111 = vshrl.u32 %v1010, 16
        %v1113 = vshll.u32 %v1010, 16
        %v1115 = vrot.slane %v1113, 1
        %v1116 = vor.u32 %v1111, %v1115
        %v1118 = vshrl.u32 %v1011, 16
        %v1120 = vshll.u32 %v1011, 16
        %v1122 = vrot.slane %v1120, 1
        %v1123 = vor.u32 %v1118, %v1122
        %1124 = vrot.lane.b32.xlu0 %v1018, 16
        %v1125 = vpop.permute.xlu0 %1124
        %1126 = vrot.lane.b32.xlu0 %v1025, 16
        %v1127 = vpop.permute.xlu0 %1126
        %1128 = vrot.lane.b32.xlu0 %v1032, 16
        %v1129 = vpop.permute.xlu0 %1128
        %1130 = vrot.lane.b32.xlu0 %v1039, 16
        %v1131 = vpop.permute.xlu0 %1130
        %1132 = vrot.lane.b32.xlu0 %v1046, 16
        %v1133 = vpop.permute.xlu0 %1132
        %1134 = vrot.lane.b32.xlu0 %v1053, 16
        %v1135 = vpop.permute.xlu0 %1134
        %1136 = vrot.lane.b32.xlu0 %v1060, 16
        %v1137 = vpop.permute.xlu0 %1136
        %1138 = vrot.lane.b32.xlu0 %v1067, 16
        %v1139 = vpop.permute.xlu0 %1138
        %1140 = vrot.lane.b32.xlu0 %v1074, 16
        %v1141 = vpop.permute.xlu0 %1140
        %1142 = vrot.lane.b32.xlu0 %v1081, 16
        %v1143 = vpop.permute.xlu0 %1142
        %1144 = vrot.lane.b32.xlu0 %v1088, 16
        %v1145 = vpop.permute.xlu0 %1144
        %1146 = vrot.lane.b32.xlu0 %v1095, 16
        %v1147 = vpop.permute.xlu0 %1146
        %1148 = vrot.lane.b32.xlu0 %v1102, 16
        %v1149 = vpop.permute.xlu0 %1148
        %1150 = vrot.lane.b32.xlu0 %v1109, 16
        %v1151 = vpop.permute.xlu0 %1150
        %1152 = vrot.lane.b32.xlu0 %v1116, 16
        %v1153 = vpop.permute.xlu0 %1152
        %1154 = vrot.lane.b32.xlu0 %v1123, 16
        %v1155 = vpop.permute.xlu0 %1154
        %v1172 = vunpack.c.l.b16 %v916
        %v1173 = vunpack.c.l.b16 %v917
        %v1174 = vunpack.c.l.b16 %v918
        %v1175 = vunpack.c.l.b16 %v919
        %v1176 = vunpack.c.l.b16 %v920
        %v1177 = vunpack.c.l.b16 %v921
        %v1178 = vunpack.c.l.b16 %v922
        %v1179 = vunpack.c.l.b16 %v923
        %v1180 = vunpack.c.l.b16 %v924
        %v1181 = vunpack.c.l.b16 %v925
        %v1182 = vunpack.c.l.b16 %v926
        %v1183 = vunpack.c.l.b16 %v927
        %v1184 = vunpack.c.l.b16 %v928
        %v1185 = vunpack.c.l.b16 %v929
        %v1186 = vunpack.c.l.b16 %v930
        %v1187 = vunpack.c.l.b16 %v931
        %v1188 = vpack.c.b16 %v965, %v1172
        %v1189 = vpack.c.b16 %v967, %v1173
        %v1190 = vpack.c.b16 %v969, %v1174
        %v1191 = vpack.c.b16 %v971, %v1175
        %v1192 = vpack.c.b16 %v973, %v1176
        %v1193 = vpack.c.b16 %v975, %v1177
        %v1194 = vpack.c.b16 %v977, %v1178
        %v1195 = vpack.c.b16 %v979, %v1179
        %v1196 = vpack.c.b16 %v981, %v1180
        %v1197 = vpack.c.b16 %v983, %v1181
        %v1198 = vpack.c.b16 %v985, %v1182
        %v1199 = vpack.c.b16 %v987, %v1183
        %v1200 = vpack.c.b16 %v989, %v1184
        %v1201 = vpack.c.b16 %v991, %v1185
        %v1202 = vpack.c.b16 %v993, %v1186
        %v1203 = vpack.c.b16 %v995, %v1187
        %v1204 = vrot.slane %v1188, 1
        %v1205 = vrot.slane %v1189, 1
        %v1206 = vrot.slane %v1190, 1
        %v1207 = vrot.slane %v1191, 1
        %v1208 = vrot.slane %v1192, 1
        %v1209 = vrot.slane %v1193, 1
        %v1210 = vrot.slane %v1194, 1
        %v1211 = vrot.slane %v1195, 1
        %v1212 = vrot.slane %v1196, 1
        %v1213 = vrot.slane %v1197, 1
        %v1214 = vrot.slane %v1198, 1
        %v1215 = vrot.slane %v1199, 1
        %v1216 = vrot.slane %v1200, 1
        %v1217 = vrot.slane %v1201, 1
        %v1218 = vrot.slane %v1202, 1
        %v1219 = vrot.slane %v1203, 1
        %1220 = vrot.lane.b32.xlu0 %v1204, 32
        %v1221 = vpop.permute.xlu0 %1220
        %1222 = vrot.lane.b32.xlu0 %v1205, 32
        %v1223 = vpop.permute.xlu0 %1222
        %1224 = vrot.lane.b32.xlu0 %v1206, 32
        %v1225 = vpop.permute.xlu0 %1224
        %1226 = vrot.lane.b32.xlu0 %v1207, 32
        %v1227 = vpop.permute.xlu0 %1226
        %1228 = vrot.lane.b32.xlu0 %v1208, 32
        %v1229 = vpop.permute.xlu0 %1228
        %1230 = vrot.lane.b32.xlu0 %v1209, 32
        %v1231 = vpop.permute.xlu0 %1230
        %1232 = vrot.lane.b32.xlu0 %v1210, 32
        %v1233 = vpop.permute.xlu0 %1232
        %1234 = vrot.lane.b32.xlu0 %v1211, 32
        %v1235 = vpop.permute.xlu0 %1234
        %1236 = vrot.lane.b32.xlu0 %v1212, 32
        %v1237 = vpop.permute.xlu0 %1236
        %1238 = vrot.lane.b32.xlu0 %v1213, 32
        %v1239 = vpop.permute.xlu0 %1238
        %1240 = vrot.lane.b32.xlu0 %v1214, 32
        %v1241 = vpop.permute.xlu0 %1240
        %1242 = vrot.lane.b32.xlu0 %v1215, 32
        %v1243 = vpop.permute.xlu0 %1242
        %1244 = vrot.lane.b32.xlu0 %v1216, 32
        %v1245 = vpop.permute.xlu0 %1244
        %1246 = vrot.lane.b32.xlu0 %v1217, 32
        %v1247 = vpop.permute.xlu0 %1246
        %1248 = vrot.lane.b32.xlu0 %v1218, 32
        %v1249 = vpop.permute.xlu0 %1248
        %1250 = vrot.lane.b32.xlu0 %v1219, 32
        %v1251 = vpop.permute.xlu0 %1250
        %vm1252 = vcmask 130048
        %v1255 = vsel %vm1252, %v884, %v1125
        %v1258 = vsel %vm1252, %v885, %v1127
        %v1261 = vsel %vm1252, %v886, %v1129
        %v1264 = vsel %vm1252, %v887, %v1131
        %v1267 = vsel %vm1252, %v888, %v1133
        %v1270 = vsel %vm1252, %v889, %v1135
        %v1273 = vsel %vm1252, %v890, %v1137
        %v1276 = vsel %vm1252, %v891, %v1139
        %v1279 = vsel %vm1252, %v892, %v1141
        %v1282 = vsel %vm1252, %v893, %v1143
        %v1285 = vsel %vm1252, %v894, %v1145
        %v1288 = vsel %vm1252, %v895, %v1147
        %v1291 = vsel %vm1252, %v896, %v1149
        %v1294 = vsel %vm1252, %v897, %v1151
        %v1297 = vsel %vm1252, %v898, %v1153
        %v1300 = vsel %vm1252, %v899, %v1155
        %vm1301 = vcmask 261120
        %v1303 = vsel %vm1301, %v1255, %v1221
        %v1305 = vsel %vm1301, %v1258, %v1223
        %v1307 = vsel %vm1301, %v1261, %v1225
        %v1309 = vsel %vm1301, %v1264, %v1227
        %v1311 = vsel %vm1301, %v1267, %v1229
        %v1313 = vsel %vm1301, %v1270, %v1231
        %v1315 = vsel %vm1301, %v1273, %v1233
        %v1317 = vsel %vm1301, %v1276, %v1235
        %v1319 = vsel %vm1301, %v1279, %v1237
        %v1321 = vsel %vm1301, %v1282, %v1239
        %v1323 = vsel %vm1301, %v1285, %v1241
        %v1325 = vsel %vm1301, %v1288, %v1243
        %v1327 = vsel %vm1301, %v1291, %v1245
        %v1329 = vsel %vm1301, %v1294, %v1247
        %v1331 = vsel %vm1301, %v1297, %v1249
        %v1333 = vsel %vm1301, %v1300, %v1251
        %v1334 = vld [vmem:[%s1] sm:$0xf]
        %v1335 = vld [vmem:[%s1 + $0x4] sm:$0xf]
        %v1336 = vld [vmem:[%s1 + $0x8] sm:$0xf]
        %v1337 = vld [vmem:[%s1 + $0xc] sm:$0xf]
        %v1338 = vld [vmem:[%s1 + $0x10] sm:$0xf]
        %v1339 = vld [vmem:[%s1 + $0x14] sm:$0xf]
        %v1340 = vld [vmem:[%s785] sm:$0xf]
        %v1341 = vld [vmem:[%s785 + $0x8] sm:$0xf]
        %v1342 = vld [vmem:[%s785 + $0x10] sm:$0xf]
        %v1343 = vld [vmem:[%s785 + $0x18] sm:$0xf]
        %v1344 = vld [vmem:[%s785 + $0x20] sm:$0xf]
        %v1345 = vld [vmem:[%s785 + $0x28] sm:$0xf]
        %v1346 = vld [vmem:[%s785 + $0x30] sm:$0xf]
        %v1347 = vld [vmem:[%s785 + $0x38] sm:$0xf]
        %v1348 = vld [vmem:[%s785 + $0x50] sm:$0xf]
        %v1349 = vld [vmem:[%s785 + $0x58] sm:$0xf]
        %v1350 = vld [vmem:[%s785 + $0x60] sm:$0xf]
        %v1351 = vld [vmem:[%s785 + $0x68] sm:$0xf]
        %v1352 = vld [vmem:[%s785 + $0x70] sm:$0xf]
        %v1353 = vld [vmem:[%s785 + $0x78] sm:$0xf]
        %v1354 = vld [vmem:[%s785 + $0x80] sm:$0xf]
        %v1355 = vld [vmem:[%s785 + $0x88] sm:$0xf]
        %v1356 = vld [vmem:[%s785 + $0x4] sm:$0x1]
        %v1357 = vld [vmem:[%s785 + $0xc] sm:$0x1]
        %v1358 = vld [vmem:[%s785 + $0x14] sm:$0x1]
        %v1359 = vld [vmem:[%s785 + $0x1c] sm:$0x1]
        %v1360 = vld [vmem:[%s785 + $0x24] sm:$0x1]
        %v1361 = vld [vmem:[%s785 + $0x2c] sm:$0x1]
        %v1362 = vld [vmem:[%s785 + $0x34] sm:$0x1]
        %v1363 = vld [vmem:[%s785 + $0x3c] sm:$0x1]
        %v1364 = vld [vmem:[%s785 + $0x54] sm:$0x1]
        %v1365 = vld [vmem:[%s785 + $0x5c] sm:$0x1]
        %v1366 = vld [vmem:[%s785 + $0x64] sm:$0x1]
        %v1367 = vld [vmem:[%s785 + $0x6c] sm:$0x1]
        %v1368 = vld [vmem:[%s785 + $0x74] sm:$0x1]
        %v1369 = vld [vmem:[%s785 + $0x7c] sm:$0x1]
        %v1370 = vld [vmem:[%s785 + $0x84] sm:$0x1]
        %v1371 = vld [vmem:[%s785 + $0x8c] sm:$0x1]
        %v1372 = vld [vmem:[%s785] sm:$0xe]
        %v1373 = vld [vmem:[%s785 + $0x8] sm:$0xe]
        %v1374 = vld [vmem:[%s785 + $0x10] sm:$0xe]
        %v1375 = vld [vmem:[%s785 + $0x18] sm:$0xe]
        %v1376 = vld [vmem:[%s785 + $0x20] sm:$0xe]
        %v1377 = vld [vmem:[%s785 + $0x28] sm:$0xe]
        %v1378 = vld [vmem:[%s785 + $0x30] sm:$0xe]
        %v1379 = vld [vmem:[%s785 + $0x38] sm:$0xe]
        %v1380 = vld [vmem:[%s785 + $0x50] sm:$0xe]
        %v1381 = vld [vmem:[%s785 + $0x58] sm:$0xe]
        %v1382 = vld [vmem:[%s785 + $0x60] sm:$0xe]
        %v1383 = vld [vmem:[%s785 + $0x68] sm:$0xe]
        %v1384 = vld [vmem:[%s785 + $0x70] sm:$0xe]
        %v1385 = vld [vmem:[%s785 + $0x78] sm:$0xe]
        %v1386 = vld [vmem:[%s785 + $0x80] sm:$0xe]
        %v1387 = vld [vmem:[%s785 + $0x88] sm:$0xe]
        %v1420 = vunpack.c.l.b16 %v1340
        %v1421 = vunpack.c.l.b16 %v1356
        %v1422 = vunpack.c.l.b16 %v1341
        %v1423 = vunpack.c.l.b16 %v1357
        %v1424 = vunpack.c.l.b16 %v1342
        %v1425 = vunpack.c.l.b16 %v1358
        %v1426 = vunpack.c.l.b16 %v1343
        %v1427 = vunpack.c.l.b16 %v1359
        %v1428 = vunpack.c.l.b16 %v1344
        %v1429 = vunpack.c.l.b16 %v1360
        %v1430 = vunpack.c.l.b16 %v1345
        %v1431 = vunpack.c.l.b16 %v1361
        %v1432 = vunpack.c.l.b16 %v1346
        %v1433 = vunpack.c.l.b16 %v1362
        %v1434 = vunpack.c.l.b16 %v1347
        %v1435 = vunpack.c.l.b16 %v1363
        %v1436 = vunpack.c.l.b16 %v1348
        %v1437 = vunpack.c.l.b16 %v1364
        %v1438 = vunpack.c.l.b16 %v1349
        %v1439 = vunpack.c.l.b16 %v1365
        %v1440 = vunpack.c.l.b16 %v1350
        %v1441 = vunpack.c.l.b16 %v1366
        %v1442 = vunpack.c.l.b16 %v1351
        %v1443 = vunpack.c.l.b16 %v1367
        %v1444 = vunpack.c.l.b16 %v1352
        %v1445 = vunpack.c.l.b16 %v1368
        %v1446 = vunpack.c.l.b16 %v1353
        %v1447 = vunpack.c.l.b16 %v1369
        %v1448 = vunpack.c.l.b16 %v1354
        %v1449 = vunpack.c.l.b16 %v1370
        %v1450 = vunpack.c.l.b16 %v1355
        %v1451 = vunpack.c.l.b16 %v1371
        %v1452 = vpack.c.b16 %v1421, %v1420
        %v1453 = vpack.c.b16 %v1423, %v1422
        %v1454 = vpack.c.b16 %v1425, %v1424
        %v1455 = vpack.c.b16 %v1427, %v1426
        %v1456 = vpack.c.b16 %v1429, %v1428
        %v1457 = vpack.c.b16 %v1431, %v1430
        %v1458 = vpack.c.b16 %v1433, %v1432
        %v1459 = vpack.c.b16 %v1435, %v1434
        %v1460 = vpack.c.b16 %v1437, %v1436
        %v1461 = vpack.c.b16 %v1439, %v1438
        %v1462 = vpack.c.b16 %v1441, %v1440
        %v1463 = vpack.c.b16 %v1443, %v1442
        %v1464 = vpack.c.b16 %v1445, %v1444
        %v1465 = vpack.c.b16 %v1447, %v1446
        %v1466 = vpack.c.b16 %v1449, %v1448
        %v1467 = vpack.c.b16 %v1451, %v1450
        %v1469 = vshrl.u32 %v1452, 16
        %v1471 = vshll.u32 %v1452, 16
        %v1473 = vrot.slane %v1471, 1
        %v1474 = vor.u32 %v1469, %v1473
        %v1476 = vshrl.u32 %v1453, 16
        %v1478 = vshll.u32 %v1453, 16
        %v1480 = vrot.slane %v1478, 1
        %v1481 = vor.u32 %v1476, %v1480
        %v1483 = vshrl.u32 %v1454, 16
        %v1485 = vshll.u32 %v1454, 16
        %v1487 = vrot.slane %v1485, 1
        %v1488 = vor.u32 %v1483, %v1487
        %v1490 = vshrl.u32 %v1455, 16
        %v1492 = vshll.u32 %v1455, 16
        %v1494 = vrot.slane %v1492, 1
        %v1495 = vor.u32 %v1490, %v1494
        %v1497 = vshrl.u32 %v1456, 16
        %v1499 = vshll.u32 %v1456, 16
        %v1501 = vrot.slane %v1499, 1
        %v1502 = vor.u32 %v1497, %v1501
        %v1504 = vshrl.u32 %v1457, 16
        %v1506 = vshll.u32 %v1457, 16
        %v1508 = vrot.slane %v1506, 1
        %v1509 = vor.u32 %v1504, %v1508
        %v1511 = vshrl.u32 %v1458, 16
        %v1513 = vshll.u32 %v1458, 16
        %v1515 = vrot.slane %v1513, 1
        %v1516 = vor.u32 %v1511, %v1515
        %v1518 = vshrl.u32 %v1459, 16
        %v1520 = vshll.u32 %v1459, 16
        %v1522 = vrot.slane %v1520, 1
        %v1523 = vor.u32 %v1518, %v1522
        %v1525 = vshrl.u32 %v1460, 16
        %v1527 = vshll.u32 %v1460, 16
        %v1529 = vrot.slane %v1527, 1
        %v1530 = vor.u32 %v1525, %v1529
        %v1532 = vshrl.u32 %v1461, 16
        %v1534 = vshll.u32 %v1461, 16
        %v1536 = vrot.slane %v1534, 1
        %v1537 = vor.u32 %v1532, %v1536
        %v1539 = vshrl.u32 %v1462, 16
        %v1541 = vshll.u32 %v1462, 16
        %v1543 = vrot.slane %v1541, 1
        %v1544 = vor.u32 %v1539, %v1543
        %v1546 = vshrl.u32 %v1463, 16
        %v1548 = vshll.u32 %v1463, 16
        %v1550 = vrot.slane %v1548, 1
        %v1551 = vor.u32 %v1546, %v1550
        %v1553 = vshrl.u32 %v1464, 16
        %v1555 = vshll.u32 %v1464, 16
        %v1557 = vrot.slane %v1555, 1
        %v1558 = vor.u32 %v1553, %v1557
        %v1560 = vshrl.u32 %v1465, 16
        %v1562 = vshll.u32 %v1465, 16
        %v1564 = vrot.slane %v1562, 1
        %v1565 = vor.u32 %v1560, %v1564
        %v1567 = vshrl.u32 %v1466, 16
        %v1569 = vshll.u32 %v1466, 16
        %v1571 = vrot.slane %v1569, 1
        %v1572 = vor.u32 %v1567, %v1571
        %v1574 = vshrl.u32 %v1467, 16
        %v1576 = vshll.u32 %v1467, 16
        %v1578 = vrot.slane %v1576, 1
        %v1579 = vor.u32 %v1574, %v1578
        %1580 = vrot.lane.b32.xlu0 %v1474, 16
        %v1581 = vpop.permute.xlu0 %1580
        %1582 = vrot.lane.b32.xlu0 %v1481, 16
        %v1583 = vpop.permute.xlu0 %1582
        %1584 = vrot.lane.b32.xlu0 %v1488, 16
        %v1585 = vpop.permute.xlu0 %1584
        %1586 = vrot.lane.b32.xlu0 %v1495, 16
        %v1587 = vpop.permute.xlu0 %1586
        %1588 = vrot.lane.b32.xlu0 %v1502, 16
        %v1589 = vpop.permute.xlu0 %1588
        %1590 = vrot.lane.b32.xlu0 %v1509, 16
        %v1591 = vpop.permute.xlu0 %1590
        %1592 = vrot.lane.b32.xlu0 %v1516, 16
        %v1593 = vpop.permute.xlu0 %1592
        %1594 = vrot.lane.b32.xlu0 %v1523, 16
        %v1595 = vpop.permute.xlu0 %1594
        %1596 = vrot.lane.b32.xlu0 %v1530, 16
        %v1597 = vpop.permute.xlu0 %1596
        %1598 = vrot.lane.b32.xlu0 %v1537, 16
        %v1599 = vpop.permute.xlu0 %1598
        %1600 = vrot.lane.b32.xlu0 %v1544, 16
        %v1601 = vpop.permute.xlu0 %1600
        %1602 = vrot.lane.b32.xlu0 %v1551, 16
        %v1603 = vpop.permute.xlu0 %1602
        %1604 = vrot.lane.b32.xlu0 %v1558, 16
        %v1605 = vpop.permute.xlu0 %1604
        %1606 = vrot.lane.b32.xlu0 %v1565, 16
        %v1607 = vpop.permute.xlu0 %1606
        %1608 = vrot.lane.b32.xlu0 %v1572, 16
        %v1609 = vpop.permute.xlu0 %1608
        %1610 = vrot.lane.b32.xlu0 %v1579, 16
        %v1611 = vpop.permute.xlu0 %1610
        %v1628 = vunpack.c.l.b16 %v1372
        %v1629 = vunpack.c.l.b16 %v1373
        %v1630 = vunpack.c.l.b16 %v1374
        %v1631 = vunpack.c.l.b16 %v1375
        %v1632 = vunpack.c.l.b16 %v1376
        %v1633 = vunpack.c.l.b16 %v1377
        %v1634 = vunpack.c.l.b16 %v1378
        %v1635 = vunpack.c.l.b16 %v1379
        %v1636 = vunpack.c.l.b16 %v1380
        %v1637 = vunpack.c.l.b16 %v1381
        %v1638 = vunpack.c.l.b16 %v1382
        %v1639 = vunpack.c.l.b16 %v1383
        %v1640 = vunpack.c.l.b16 %v1384
        %v1641 = vunpack.c.l.b16 %v1385
        %v1642 = vunpack.c.l.b16 %v1386
        %v1643 = vunpack.c.l.b16 %v1387
        %v1644 = vpack.c.b16 %v1421, %v1628
        %v1645 = vpack.c.b16 %v1423, %v1629
        %v1646 = vpack.c.b16 %v1425, %v1630
        %v1647 = vpack.c.b16 %v1427, %v1631
        %v1648 = vpack.c.b16 %v1429, %v1632
        %v1649 = vpack.c.b16 %v1431, %v1633
        %v1650 = vpack.c.b16 %v1433, %v1634
        %v1651 = vpack.c.b16 %v1435, %v1635
        %v1652 = vpack.c.b16 %v1437, %v1636
        %v1653 = vpack.c.b16 %v1439, %v1637
        %v1654 = vpack.c.b16 %v1441, %v1638
        %v1655 = vpack.c.b16 %v1443, %v1639
        %v1656 = vpack.c.b16 %v1445, %v1640
        %v1657 = vpack.c.b16 %v1447, %v1641
        %v1658 = vpack.c.b16 %v1449, %v1642
        %v1659 = vpack.c.b16 %v1451, %v1643
        %v1660 = vrot.slane %v1644, 1
        %v1661 = vrot.slane %v1645, 1
        %v1662 = vrot.slane %v1646, 1
        %v1663 = vrot.slane %v1647, 1
        %v1664 = vrot.slane %v1648, 1
        %v1665 = vrot.slane %v1649, 1
        %v1666 = vrot.slane %v1650, 1
        %v1667 = vrot.slane %v1651, 1
        %v1668 = vrot.slane %v1652, 1
        %v1669 = vrot.slane %v1653, 1
        %v1670 = vrot.slane %v1654, 1
        %v1671 = vrot.slane %v1655, 1
        %v1672 = vrot.slane %v1656, 1
        %v1673 = vrot.slane %v1657, 1
        %v1674 = vrot.slane %v1658, 1
        %v1675 = vrot.slane %v1659, 1
        %1676 = vrot.lane.b32.xlu0 %v1660, 32
        %v1677 = vpop.permute.xlu0 %1676
        %1678 = vrot.lane.b32.xlu0 %v1661, 32
        %v1679 = vpop.permute.xlu0 %1678
        %1680 = vrot.lane.b32.xlu0 %v1662, 32
        %v1681 = vpop.permute.xlu0 %1680
        %1682 = vrot.lane.b32.xlu0 %v1663, 32
        %v1683 = vpop.permute.xlu0 %1682
        %1684 = vrot.lane.b32.xlu0 %v1664, 32
        %v1685 = vpop.permute.xlu0 %1684
        %1686 = vrot.lane.b32.xlu0 %v1665, 32
        %v1687 = vpop.permute.xlu0 %1686
        %1688 = vrot.lane.b32.xlu0 %v1666, 32
        %v1689 = vpop.permute.xlu0 %1688
        %1690 = vrot.lane.b32.xlu0 %v1667, 32
        %v1691 = vpop.permute.xlu0 %1690
        %1692 = vrot.lane.b32.xlu0 %v1668, 32
        %v1693 = vpop.permute.xlu0 %1692
        %1694 = vrot.lane.b32.xlu0 %v1669, 32
        %v1695 = vpop.permute.xlu0 %1694
        %1696 = vrot.lane.b32.xlu0 %v1670, 32
        %v1697 = vpop.permute.xlu0 %1696
        %1698 = vrot.lane.b32.xlu0 %v1671, 32
        %v1699 = vpop.permute.xlu0 %1698
        %1700 = vrot.lane.b32.xlu0 %v1672, 32
        %v1701 = vpop.permute.xlu0 %1700
        %1702 = vrot.lane.b32.xlu0 %v1673, 32
        %v1703 = vpop.permute.xlu0 %1702
        %1704 = vrot.lane.b32.xlu0 %v1674, 32
        %v1705 = vpop.permute.xlu0 %1704
        %1706 = vrot.lane.b32.xlu0 %v1675, 32
        %v1707 = vpop.permute.xlu0 %1706
        %v1710 = vsel %vm1252, %v1340, %v1581
        %v1713 = vsel %vm1252, %v1341, %v1583
        %v1716 = vsel %vm1252, %v1342, %v1585
        %v1719 = vsel %vm1252, %v1343, %v1587
        %v1722 = vsel %vm1252, %v1344, %v1589
        %v1725 = vsel %vm1252, %v1345, %v1591
        %v1728 = vsel %vm1252, %v1346, %v1593
        %v1731 = vsel %vm1252, %v1347, %v1595
        %v1734 = vsel %vm1252, %v1348, %v1597
        %v1737 = vsel %vm1252, %v1349, %v1599
        %v1740 = vsel %vm1252, %v1350, %v1601
        %v1743 = vsel %vm1252, %v1351, %v1603
        %v1746 = vsel %vm1252, %v1352, %v1605
        %v1749 = vsel %vm1252, %v1353, %v1607
        %v1752 = vsel %vm1252, %v1354, %v1609
        %v1755 = vsel %vm1252, %v1355, %v1611
        %v1757 = vsel %vm1301, %v1710, %v1677
        %v1759 = vsel %vm1301, %v1713, %v1679
        %v1761 = vsel %vm1301, %v1716, %v1681
        %v1763 = vsel %vm1301, %v1719, %v1683
        %v1765 = vsel %vm1301, %v1722, %v1685
        %v1767 = vsel %vm1301, %v1725, %v1687
        %v1769 = vsel %vm1301, %v1728, %v1689
        %v1771 = vsel %vm1301, %v1731, %v1691
        %v1773 = vsel %vm1301, %v1734, %v1693
        %v1775 = vsel %vm1301, %v1737, %v1695
        %v1777 = vsel %vm1301, %v1740, %v1697
        %v1779 = vsel %vm1301, %v1743, %v1699
        %v1781 = vsel %vm1301, %v1746, %v1701
        %v1783 = vsel %vm1301, %v1749, %v1703
        %v1785 = vsel %vm1301, %v1752, %v1705
        %v1787 = vsel %vm1301, %v1755, %v1707
        %s1788 = scalar_lea.vmem %s1, 24
        %v1789 = vld [vmem:[%s1788] sm:$0xf]
        %v1790 = vld [vmem:[%s1788 + $0x4] sm:$0xf]
        %v1791 = vld [vmem:[%s1788 + $0x8] sm:$0xf]
        %v1792 = vld [vmem:[%s1788 + $0xc] sm:$0xf]
        %v1793 = vld [vmem:[%s1788 + $0x10] sm:$0xf]
        %v1794 = vld [vmem:[%s1788 + $0x14] sm:$0xf]
        %v1811 = vunpack.c.l.b16 %v1757
        %v1812 = vunpack.c.l.b16 %v1759
        %v1813 = vunpack.c.l.b16 %v1761
        %v1814 = vunpack.c.l.b16 %v1763
        %v1815 = vunpack.c.l.b16 %v1765
        %v1816 = vunpack.c.l.b16 %v1767
        %v1817 = vunpack.c.l.b16 %v1769
        %v1818 = vunpack.c.l.b16 %v1771
        %v1819 = vunpack.c.l.b16 %v1773
        %v1820 = vunpack.c.l.b16 %v1775
        %v1821 = vunpack.c.l.b16 %v1777
        %v1822 = vunpack.c.l.b16 %v1779
        %v1823 = vunpack.c.l.b16 %v1781
        %v1824 = vunpack.c.l.b16 %v1783
        %v1825 = vunpack.c.l.b16 %v1785
        %v1826 = vunpack.c.l.b16 %v1787
        %v1827 = vpack.c.b16 %v1812, %v1811
        %v1828 = vpack.c.b16 %v1814, %v1813
        %v1829 = vpack.c.b16 %v1816, %v1815
        %v1830 = vpack.c.b16 %v1818, %v1817
        %v1831 = vpack.c.b16 %v1820, %v1819
        %v1832 = vpack.c.b16 %v1822, %v1821
        %v1833 = vpack.c.b16 %v1824, %v1823
        %v1834 = vpack.c.b16 %v1826, %v1825
        %v1841 = vunpack.c.l.b16 %v1789
        %v1842 = vunpack.c.l.b16 %v1790
        %v1843 = vunpack.c.l.b16 %v1791
        %v1844 = vunpack.c.l.b16 %v1792
        %v1845 = vunpack.c.l.b16 %v1793
        %v1846 = vunpack.c.l.b16 %v1794
        %v1847 = vpack.c.b16 %v1842, %v1841
        %v1848 = vpack.c.b16 %v1844, %v1843
        %v1849 = vpack.c.b16 %v1846, %v1845
        %vm1853 = vcmask 392192
        %v1855 = vsel %vm1853, %v1827, 0
        %v1858 = vsel %vm1853, %v1828, 0
        %v1861 = vsel %vm1853, %v1829, 0
        %v1864 = vsel %vm1853, %v1830, 0
        %v1867 = vsel %vm1853, %v1831, 0
        %v1870 = vsel %vm1853, %v1832, 0
        %v1873 = vsel %vm1853, %v1833, 0
        %v1876 = vsel %vm1853, %v1834, 0
        %1878 = vmatprep.subr.bf16.mxu0 0
        %1879 = vmatpush1.bf16.msra.mxu0 %v1847
        %1880 = vmatprep.subr.bf16.mxu0 0
        %1881 = vmatpush1.bf16.msra.mxu0 %v1848
        %1882 = vmatprep.subr.bf16.mxu0 0
        %1883 = vmatpush1.bf16.msra.mxu0 %v1849
        %1884 = vmatprep.subr.bf16.mxu0 0
        %1885 = vmatpush1.bf16.msra.mxu0 0
        %1886 = vmatprep.subr.bf16.mxu0 0
        %1887 = vmatpush1.bf16.msra.mxu0 0
        %1888 = vmatprep.subr.bf16.mxu0 0
        %1889 = vmatpush1.bf16.msra.mxu0 0
        %1890 = vmatprep.subr.bf16.mxu0 0
        %1891 = vmatpush1.bf16.msra.mxu0 0
        %1892 = vmatprep.subr.bf16.mxu0 0
        %1893 = vmatpush1.bf16.msra.mxu0 0
        %1894 = vmatprep.subr.bf16.mxu0 0
        %1895 = vmatpush1.bf16.msra.mxu0 0
        %1896 = vmatprep.subr.bf16.mxu0 0
        %1897 = vmatpush1.bf16.msra.mxu0 0
        %1898 = vmatprep.subr.bf16.mxu0 0
        %1899 = vmatpush1.bf16.msra.mxu0 0
        %1900 = vmatprep.subr.bf16.mxu0 0
        %1901 = vmatpush1.bf16.msra.mxu0 0
        %1902 = vmatprep.subr.bf16.mxu0 0
        %1903 = vmatpush1.bf16.msra.mxu0 0
        %1904 = vmatprep.subr.bf16.mxu0 0
        %1905 = vmatpush1.bf16.msra.mxu0 0
        %1906 = vmatprep.subr.bf16.mxu0 0
        %1907 = vmatpush1.bf16.msra.mxu0 0
        %1908 = vmatprep.subr.bf16.mxu0 0
        %1909 = vmatpush1.bf16.msra.mxu0 0
        %1910 = vmatprep.mubr.bf16.mxu0 0
        %1911 = vmatmul.mubr.bf16.gmra.mrb[0].mxu0 %v1855
        %v1912 = vpop.f32.mrb[0].mxu0
        %v1913 = vadd.f32 0.0, %v1912
        %v1914 = vpop.f32.mrb[0].mxu0
        %v1915 = vpop.f32.mrb[0].mxu0
        %v1916 = vadd.f32 0.0, %v1915
        %v1917 = vpop.f32.mrb[0].mxu0
        %1918 = vmatprep.mubr.bf16.mxu0 0
        %1919 = vmatmul.mubr.bf16.gmra.mrb[0].mxu0 %v1858
        %v1920 = vpop.f32.mrb[0].mxu0
        %v1921 = vadd.f32 0.0, %v1920
        %v1922 = vpop.f32.mrb[0].mxu0
        %v1923 = vpop.f32.mrb[0].mxu0
        %v1924 = vadd.f32 0.0, %v1923
        %v1925 = vpop.f32.mrb[0].mxu0
        %1926 = vmatprep.mubr.bf16.mxu0 0
        %1927 = vmatmul.mubr.bf16.gmra.mrb[0].mxu0 %v1861
        %v1928 = vpop.f32.mrb[0].mxu0
        %v1929 = vadd.f32 0.0, %v1928
        %v1930 = vpop.f32.mrb[0].mxu0
        %v1931 = vpop.f32.mrb[0].mxu0
        %v1932 = vadd.f32 0.0, %v1931
        %v1933 = vpop.f32.mrb[0].mxu0
        %1934 = vmatprep.mubr.bf16.mxu0 0
        %1935 = vmatmul.mubr.bf16.gmra.mrb[0].mxu0 %v1864
        %v1936 = vpop.f32.mrb[0].mxu0
        %v1937 = vadd.f32 0.0, %v1936
        %v1938 = vpop.f32.mrb[0].mxu0
        %v1939 = vpop.f32.mrb[0].mxu0
        %v1940 = vadd.f32 0.0, %v1939
        %v1941 = vpop.f32.mrb[0].mxu0
        %1942 = vmatprep.mubr.bf16.mxu0 0
        %1943 = vmatmul.mubr.bf16.gmra.mrb[0].mxu0 %v1867
        %v1944 = vpop.f32.mrb[0].mxu0
        %v1945 = vadd.f32 0.0, %v1944
        %v1946 = vpop.f32.mrb[0].mxu0
        %v1947 = vpop.f32.mrb[0].mxu0
        %v1948 = vadd.f32 0.0, %v1947
        %v1949 = vpop.f32.mrb[0].mxu0
        %1950 = vmatprep.mubr.bf16.mxu0 0
        %1951 = vmatmul.mubr.bf16.gmra.mrb[0].mxu0 %v1870
        %v1952 = vpop.f32.mrb[0].mxu0
        %v1953 = vadd.f32 0.0, %v1952
        %v1954 = vpop.f32.mrb[0].mxu0
        %v1955 = vpop.f32.mrb[0].mxu0
        %v1956 = vadd.f32 0.0, %v1955
        %v1957 = vpop.f32.mrb[0].mxu0
        %1958 = vmatprep.mubr.bf16.mxu0 0
        %1959 = vmatmul.mubr.bf16.gmra.mrb[0].mxu0 %v1873
        %v1960 = vpop.f32.mrb[0].mxu0
        %v1961 = vadd.f32 0.0, %v1960
        %v1962 = vpop.f32.mrb[0].mxu0
        %v1963 = vpop.f32.mrb[0].mxu0
        %v1964 = vadd.f32 0.0, %v1963
        %v1965 = vpop.f32.mrb[0].mxu0
        %1966 = vmatprep.mubr.bf16.mxu0 0
        %1967 = vmatmul.mubr.bf16.gmra.mrb[0].mxu0 %v1876
        %v1968 = vpop.f32.mrb[0].mxu0
        %v1969 = vadd.f32 0.0, %v1968
        %v1970 = vpop.f32.mrb[0].mxu0
        %v1971 = vpop.f32.mrb[0].mxu0
        %v1972 = vadd.f32 0.0, %v1971
        %v1973 = vpop.f32.mrb[0].mxu0
        %1974 = vdwg.mxu0
        %v1991 = vunpack.c.l.b16 %v1303
        %v1992 = vunpack.c.l.b16 %v1305
        %v1993 = vunpack.c.l.b16 %v1307
        %v1994 = vunpack.c.l.b16 %v1309
        %v1995 = vunpack.c.l.b16 %v1311
        %v1996 = vunpack.c.l.b16 %v1313
        %v1997 = vunpack.c.l.b16 %v1315
        %v1998 = vunpack.c.l.b16 %v1317
        %v1999 = vunpack.c.l.b16 %v1319
        %v2000 = vunpack.c.l.b16 %v1321
        %v2001 = vunpack.c.l.b16 %v1323
        %v2002 = vunpack.c.l.b16 %v1325
        %v2003 = vunpack.c.l.b16 %v1327
        %v2004 = vunpack.c.l.b16 %v1329
        %v2005 = vunpack.c.l.b16 %v1331
        %v2006 = vunpack.c.l.b16 %v1333
        %v2007 = vpack.c.b16 %v1992, %v1991
        %v2008 = vpack.c.b16 %v1994, %v1993
        %v2009 = vpack.c.b16 %v1996, %v1995
        %v2010 = vpack.c.b16 %v1998, %v1997
        %v2011 = vpack.c.b16 %v2000, %v1999
        %v2012 = vpack.c.b16 %v2002, %v2001
        %v2013 = vpack.c.b16 %v2004, %v2003
        %v2014 = vpack.c.b16 %v2006, %v2005
        %v2021 = vunpack.c.l.b16 %v1334
        %v2022 = vunpack.c.l.b16 %v1335
        %v2023 = vunpack.c.l.b16 %v1336
        %v2024 = vunpack.c.l.b16 %v1337
        %v2025 = vunpack.c.l.b16 %v1338
        %v2026 = vunpack.c.l.b16 %v1339
        %v2027 = vpack.c.b16 %v2022, %v2021
        %v2028 = vpack.c.b16 %v2024, %v2023
        %v2029 = vpack.c.b16 %v2026, %v2025
        %v2034 = vsel %vm1853, %v2007, 0
        %v2037 = vsel %vm1853, %v2008, 0
        %v2040 = vsel %vm1853, %v2009, 0
        %v2043 = vsel %vm1853, %v2010, 0
        %v2046 = vsel %vm1853, %v2011, 0
        %v2049 = vsel %vm1853, %v2012, 0
        %v2052 = vsel %vm1853, %v2013, 0
        %v2055 = vsel %vm1853, %v2014, 0
        %2057 = vmatprep.subr.bf16.mxu0 0
        %2058 = vmatpush1.bf16.msra.mxu0 %v2027
        %2059 = vmatprep.subr.bf16.mxu0 0
        %2060 = vmatpush1.bf16.msra.mxu0 %v2028
        %2061 = vmatprep.subr.bf16.mxu0 0
        %2062 = vmatpush1.bf16.msra.mxu0 %v2029
        %2063 = vmatprep.subr.bf16.mxu0 0
        %2064 = vmatpush1.bf16.msra.mxu0 0
        %2065 = vmatprep.subr.bf16.mxu0 0
        %2066 = vmatpush1.bf16.msra.mxu0 0
        %2067 = vmatprep.subr.bf16.mxu0 0
        %2068 = vmatpush1.bf16.msra.mxu0 0
        %2069 = vmatprep.subr.bf16.mxu0 0
        %2070 = vmatpush1.bf16.msra.mxu0 0
        %2071 = vmatprep.subr.bf16.mxu0 0
        %2072 = vmatpush1.bf16.msra.mxu0 0
        %2073 = vmatprep.subr.bf16.mxu0 0
        %2074 = vmatpush1.bf16.msra.mxu0 0
        %2075 = vmatprep.subr.bf16.mxu0 0
        %2076 = vmatpush1.bf16.msra.mxu0 0
        %2077 = vmatprep.subr.bf16.mxu0 0
        %2078 = vmatpush1.bf16.msra.mxu0 0
        %2079 = vmatprep.subr.bf16.mxu0 0
        %2080 = vmatpush1.bf16.msra.mxu0 0
        %2081 = vmatprep.subr.bf16.mxu0 0
        %2082 = vmatpush1.bf16.msra.mxu0 0
        %2083 = vmatprep.subr.bf16.mxu0 0
        %2084 = vmatpush1.bf16.msra.mxu0 0
        %2085 = vmatprep.subr.bf16.mxu0 0
        %2086 = vmatpush1.bf16.msra.mxu0 0
        %2087 = vmatprep.subr.bf16.mxu0 0
        %2088 = vmatpush1.bf16.msra.mxu0 0
        %2089 = vmatprep.mubr.bf16.mxu0 0
        %2090 = vmatmul.mubr.bf16.gmra.mrb[0].mxu0 %v2034
        %v2091 = vpop.f32.mrb[0].mxu0
        %v2092 = vadd.f32 %v1913, %v2091
        %v2093 = vpop.f32.mrb[0].mxu0
        %v2094 = vpop.f32.mrb[0].mxu0
        %v2095 = vadd.f32 %v1916, %v2094
        %v2096 = vpop.f32.mrb[0].mxu0
        %2097 = vmatprep.mubr.bf16.mxu0 0
        %2098 = vmatmul.mubr.bf16.gmra.mrb[0].mxu0 %v2037
        %v2099 = vpop.f32.mrb[0].mxu0
        %v2100 = vadd.f32 %v1921, %v2099
        %v2101 = vpop.f32.mrb[0].mxu0
        %v2102 = vpop.f32.mrb[0].mxu0
        %v2103 = vadd.f32 %v1924, %v2102
        %v2104 = vpop.f32.mrb[0].mxu0
        %2105 = vmatprep.mubr.bf16.mxu0 0
        %2106 = vmatmul.mubr.bf16.gmra.mrb[0].mxu0 %v2040
        %v2107 = vpop.f32.mrb[0].mxu0
        %v2108 = vadd.f32 %v1929, %v2107
        %v2109 = vpop.f32.mrb[0].mxu0
        %v2110 = vpop.f32.mrb[0].mxu0
        %v2111 = vadd.f32 %v1932, %v2110
        %v2112 = vpop.f32.mrb[0].mxu0
        %2113 = vmatprep.mubr.bf16.mxu0 0
        %2114 = vmatmul.mubr.bf16.gmra.mrb[0].mxu0 %v2043
        %v2115 = vpop.f32.mrb[0].mxu0
        %v2116 = vadd.f32 %v1937, %v2115
        %v2117 = vpop.f32.mrb[0].mxu0
        %v2118 = vpop.f32.mrb[0].mxu0
        %v2119 = vadd.f32 %v1940, %v2118
        %v2120 = vpop.f32.mrb[0].mxu0
        %2121 = vmatprep.mubr.bf16.mxu0 0
        %2122 = vmatmul.mubr.bf16.gmra.mrb[0].mxu0 %v2046
        %v2123 = vpop.f32.mrb[0].mxu0
        %v2124 = vadd.f32 %v1945, %v2123
        %v2125 = vpop.f32.mrb[0].mxu0
        %v2126 = vpop.f32.mrb[0].mxu0
        %v2127 = vadd.f32 %v1948, %v2126
        %v2128 = vpop.f32.mrb[0].mxu0
        %2129 = vmatprep.mubr.bf16.mxu0 0
        %2130 = vmatmul.mubr.bf16.gmra.mrb[0].mxu0 %v2049
        %v2131 = vpop.f32.mrb[0].mxu0
        %v2132 = vadd.f32 %v1953, %v2131
        %v2133 = vpop.f32.mrb[0].mxu0
        %v2134 = vpop.f32.mrb[0].mxu0
        %v2135 = vadd.f32 %v1956, %v2134
        %v2136 = vpop.f32.mrb[0].mxu0
        %2137 = vmatprep.mubr.bf16.mxu0 0
        %2138 = vmatmul.mubr.bf16.gmra.mrb[0].mxu0 %v2052
        %v2139 = vpop.f32.mrb[0].mxu0
        %v2140 = vadd.f32 %v1961, %v2139
        %v2141 = vpop.f32.mrb[0].mxu0
        %v2142 = vpop.f32.mrb[0].mxu0
        %v2143 = vadd.f32 %v1964, %v2142
        %v2144 = vpop.f32.mrb[0].mxu0
        %2145 = vmatprep.mubr.bf16.mxu0 0
        %2146 = vmatmul.mubr.bf16.gmra.mrb[0].mxu0 %v2055
        %v2147 = vpop.f32.mrb[0].mxu0
        %v2148 = vadd.f32 %v1969, %v2147
        %v2149 = vpop.f32.mrb[0].mxu0
        %v2150 = vpop.f32.mrb[0].mxu0
        %v2151 = vadd.f32 %v1972, %v2150
        %v2152 = vpop.f32.mrb[0].mxu0
        %2153 = vdwg.mxu0
        %s2154 = scalar_lea.vmem [#allocation2], 16
        %v2155 = vld [vmem:[%s2154] sm:$0xf]
        %v2156 = vld [vmem:[%s2154 + $0x8] sm:$0xf]
        %v2157 = vld [vmem:[%s2154 + $0x10] sm:$0xf]
        %v2158 = vld [vmem:[%s2154 + $0x18] sm:$0xf]
        %v2159 = vld [vmem:[%s2154 + $0x20] sm:$0xf]
        %v2160 = vld [vmem:[%s2154 + $0x28] sm:$0xf]
        %v2161 = vld [vmem:[%s2154 + $0x30] sm:$0xf]
        %v2162 = vld [vmem:[%s2154 + $0x38] sm:$0xf]
        %v2163 = vld [vmem:[%s2154 + $0x50] sm:$0xf]
        %v2164 = vld [vmem:[%s2154 + $0x58] sm:$0xf]
        %v2165 = vld [vmem:[%s2154 + $0x60] sm:$0xf]
        %v2166 = vld [vmem:[%s2154 + $0x68] sm:$0xf]
        %v2167 = vld [vmem:[%s2154 + $0x70] sm:$0xf]
        %v2168 = vld [vmem:[%s2154 + $0x78] sm:$0xf]
        %v2169 = vld [vmem:[%s2154 + $0x80] sm:$0xf]
        %v2170 = vld [vmem:[%s2154 + $0x88] sm:$0xf]
        %v2171 = vld [vmem:[%s2154 + $0x4] sm:$0x1]
        %v2172 = vld [vmem:[%s2154 + $0xc] sm:$0x1]
        %v2173 = vld [vmem:[%s2154 + $0x14] sm:$0x1]
        %v2174 = vld [vmem:[%s2154 + $0x1c] sm:$0x1]
        %v2175 = vld [vmem:[%s2154 + $0x24] sm:$0x1]
        %v2176 = vld [vmem:[%s2154 + $0x2c] sm:$0x1]
        %v2177 = vld [vmem:[%s2154 + $0x34] sm:$0x1]
        %v2178 = vld [vmem:[%s2154 + $0x3c] sm:$0x1]
        %v2179 = vld [vmem:[%s2154 + $0x54] sm:$0x1]
        %v2180 = vld [vmem:[%s2154 + $0x5c] sm:$0x1]
        %v2181 = vld [vmem:[%s2154 + $0x64] sm:$0x1]
        %v2182 = vld [vmem:[%s2154 + $0x6c] sm:$0x1]
        %v2183 = vld [vmem:[%s2154 + $0x74] sm:$0x1]
        %v2184 = vld [vmem:[%s2154 + $0x7c] sm:$0x1]
        %v2185 = vld [vmem:[%s2154 + $0x84] sm:$0x1]
        %v2186 = vld [vmem:[%s2154 + $0x8c] sm:$0x1]
        %v2187 = vld [vmem:[%s2154] sm:$0xe]
        %v2188 = vld [vmem:[%s2154 + $0x8] sm:$0xe]
        %v2189 = vld [vmem:[%s2154 + $0x10] sm:$0xe]
        %v2190 = vld [vmem:[%s2154 + $0x18] sm:$0xe]
        %v2191 = vld [vmem:[%s2154 + $0x20] sm:$0xe]
        %v2192 = vld [vmem:[%s2154 + $0x28] sm:$0xe]
        %v2193 = vld [vmem:[%s2154 + $0x30] sm:$0xe]
        %v2194 = vld [vmem:[%s2154 + $0x38] sm:$0xe]
        %v2195 = vld [vmem:[%s2154 + $0x50] sm:$0xe]
        %v2196 = vld [vmem:[%s2154 + $0x58] sm:$0xe]
        %v2197 = vld [vmem:[%s2154 + $0x60] sm:$0xe]
        %v2198 = vld [vmem:[%s2154 + $0x68] sm:$0xe]
        %v2199 = vld [vmem:[%s2154 + $0x70] sm:$0xe]
        %v2200 = vld [vmem:[%s2154 + $0x78] sm:$0xe]
        %v2201 = vld [vmem:[%s2154 + $0x80] sm:$0xe]
        %v2202 = vld [vmem:[%s2154 + $0x88] sm:$0xe]
        %v2235 = vunpack.c.l.b16 %v2155
        %v2236 = vunpack.c.l.b16 %v2171
        %v2237 = vunpack.c.l.b16 %v2156
        %v2238 = vunpack.c.l.b16 %v2172
        %v2239 = vunpack.c.l.b16 %v2157
        %v2240 = vunpack.c.l.b16 %v2173
        %v2241 = vunpack.c.l.b16 %v2158
        %v2242 = vunpack.c.l.b16 %v2174
        %v2243 = vunpack.c.l.b16 %v2159
        %v2244 = vunpack.c.l.b16 %v2175
        %v2245 = vunpack.c.l.b16 %v2160
        %v2246 = vunpack.c.l.b16 %v2176
        %v2247 = vunpack.c.l.b16 %v2161
        %v2248 = vunpack.c.l.b16 %v2177
        %v2249 = vunpack.c.l.b16 %v2162
        %v2250 = vunpack.c.l.b16 %v2178
        %v2251 = vunpack.c.l.b16 %v2163
        %v2252 = vunpack.c.l.b16 %v2179
        %v2253 = vunpack.c.l.b16 %v2164
        %v2254 = vunpack.c.l.b16 %v2180
        %v2255 = vunpack.c.l.b16 %v2165
        %v2256 = vunpack.c.l.b16 %v2181
        %v2257 = vunpack.c.l.b16 %v2166
        %v2258 = vunpack.c.l.b16 %v2182
        %v2259 = vunpack.c.l.b16 %v2167
        %v2260 = vunpack.c.l.b16 %v2183
        %v2261 = vunpack.c.l.b16 %v2168
        %v2262 = vunpack.c.l.b16 %v2184
        %v2263 = vunpack.c.l.b16 %v2169
        %v2264 = vunpack.c.l.b16 %v2185
        %v2265 = vunpack.c.l.b16 %v2170
        %v2266 = vunpack.c.l.b16 %v2186
        %v2267 = vpack.c.b16 %v2236, %v2235
        %v2268 = vpack.c.b16 %v2238, %v2237
        %v2269 = vpack.c.b16 %v2240, %v2239
        %v2270 = vpack.c.b16 %v2242, %v2241
        %v2271 = vpack.c.b16 %v2244, %v2243
        %v2272 = vpack.c.b16 %v2246, %v2245
        %v2273 = vpack.c.b16 %v2248, %v2247
        %v2274 = vpack.c.b16 %v2250, %v2249
        %v2275 = vpack.c.b16 %v2252, %v2251
        %v2276 = vpack.c.b16 %v2254, %v2253
        %v2277 = vpack.c.b16 %v2256, %v2255
        %v2278 = vpack.c.b16 %v2258, %v2257
        %v2279 = vpack.c.b16 %v2260, %v2259
        %v2280 = vpack.c.b16 %v2262, %v2261
        %v2281 = vpack.c.b16 %v2264, %v2263
        %v2282 = vpack.c.b16 %v2266, %v2265
        %v2284 = vshrl.u32 %v2267, 16
        %v2286 = vshll.u32 %v2267, 16
        %v2288 = vrot.slane %v2286, 1
        %v2289 = vor.u32 %v2284, %v2288
        %v2291 = vshrl.u32 %v2268, 16
        %v2293 = vshll.u32 %v2268, 16
        %v2295 = vrot.slane %v2293, 1
        %v2296 = vor.u32 %v2291, %v2295
        %v2298 = vshrl.u32 %v2269, 16
        %v2300 = vshll.u32 %v2269, 16
        %v2302 = vrot.slane %v2300, 1
        %v2303 = vor.u32 %v2298, %v2302
        %v2305 = vshrl.u32 %v2270, 16
        %v2307 = vshll.u32 %v2270, 16
        %v2309 = vrot.slane %v2307, 1
        %v2310 = vor.u32 %v2305, %v2309
        %v2312 = vshrl.u32 %v2271, 16
        %v2314 = vshll.u32 %v2271, 16
        %v2316 = vrot.slane %v2314, 1
        %v2317 = vor.u32 %v2312, %v2316
        %v2319 = vshrl.u32 %v2272, 16
        %v2321 = vshll.u32 %v2272, 16
        %v2323 = vrot.slane %v2321, 1
        %v2324 = vor.u32 %v2319, %v2323
        %v2326 = vshrl.u32 %v2273, 16
        %v2328 = vshll.u32 %v2273, 16
        %v2330 = vrot.slane %v2328, 1
        %v2331 = vor.u32 %v2326, %v2330
        %v2333 = vshrl.u32 %v2274, 16
        %v2335 = vshll.u32 %v2274, 16
        %v2337 = vrot.slane %v2335, 1
        %v2338 = vor.u32 %v2333, %v2337
        %v2340 = vshrl.u32 %v2275, 16
        %v2342 = vshll.u32 %v2275, 16
        %v2344 = vrot.slane %v2342, 1
        %v2345 = vor.u32 %v2340, %v2344
        %v2347 = vshrl.u32 %v2276, 16
        %v2349 = vshll.u32 %v2276, 16
        %v2351 = vrot.slane %v2349, 1
        %v2352 = vor.u32 %v2347, %v2351
        %v2354 = vshrl.u32 %v2277, 16
        %v2356 = vshll.u32 %v2277, 16
        %v2358 = vrot.slane %v2356, 1
        %v2359 = vor.u32 %v2354, %v2358
        %v2361 = vshrl.u32 %v2278, 16
        %v2363 = vshll.u32 %v2278, 16
        %v2365 = vrot.slane %v2363, 1
        %v2366 = vor.u32 %v2361, %v2365
        %v2368 = vshrl.u32 %v2279, 16
        %v2370 = vshll.u32 %v2279, 16
        %v2372 = vrot.slane %v2370, 1
        %v2373 = vor.u32 %v2368, %v2372
        %v2375 = vshrl.u32 %v2280, 16
        %v2377 = vshll.u32 %v2280, 16
        %v2379 = vrot.slane %v2377, 1
        %v2380 = vor.u32 %v2375, %v2379
        %v2382 = vshrl.u32 %v2281, 16
        %v2384 = vshll.u32 %v2281, 16
        %v2386 = vrot.slane %v2384, 1
        %v2387 = vor.u32 %v2382, %v2386
        %v2389 = vshrl.u32 %v2282, 16
        %v2391 = vshll.u32 %v2282, 16
        %v2393 = vrot.slane %v2391, 1
        %v2394 = vor.u32 %v2389, %v2393
        %2395 = vrot.lane.b32.xlu0 %v2289, 16
        %v2396 = vpop.permute.xlu0 %2395
        %2397 = vrot.lane.b32.xlu0 %v2296, 16
        %v2398 = vpop.permute.xlu0 %2397
        %2399 = vrot.lane.b32.xlu0 %v2303, 16
        %v2400 = vpop.permute.xlu0 %2399
        %2401 = vrot.lane.b32.xlu0 %v2310, 16
        %v2402 = vpop.permute.xlu0 %2401
        %2403 = vrot.lane.b32.xlu0 %v2317, 16
        %v2404 = vpop.permute.xlu0 %2403
        %2405 = vrot.lane.b32.xlu0 %v2324, 16
        %v2406 = vpop.permute.xlu0 %2405
        %2407 = vrot.lane.b32.xlu0 %v2331, 16
        %v2408 = vpop.permute.xlu0 %2407
        %2409 = vrot.lane.b32.xlu0 %v2338, 16
        %v2410 = vpop.permute.xlu0 %2409
        %2411 = vrot.lane.b32.xlu0 %v2345, 16
        %v2412 = vpop.permute.xlu0 %2411
        %2413 = vrot.lane.b32.xlu0 %v2352, 16
        %v2414 = vpop.permute.xlu0 %2413
        %2415 = vrot.lane.b32.xlu0 %v2359, 16
        %v2416 = vpop.permute.xlu0 %2415
        %2417 = vrot.lane.b32.xlu0 %v2366, 16
        %v2418 = vpop.permute.xlu0 %2417
        %2419 = vrot.lane.b32.xlu0 %v2373, 16
        %v2420 = vpop.permute.xlu0 %2419
        %2421 = vrot.lane.b32.xlu0 %v2380, 16
        %v2422 = vpop.permute.xlu0 %2421
        %2423 = vrot.lane.b32.xlu0 %v2387, 16
        %v2424 = vpop.permute.xlu0 %2423
        %2425 = vrot.lane.b32.xlu0 %v2394, 16
        %v2426 = vpop.permute.xlu0 %2425
        %v2443 = vunpack.c.l.b16 %v2187
        %v2444 = vunpack.c.l.b16 %v2188
        %v2445 = vunpack.c.l.b16 %v2189
        %v2446 = vunpack.c.l.b16 %v2190
        %v2447 = vunpack.c.l.b16 %v2191
        %v2448 = vunpack.c.l.b16 %v2192
        %v2449 = vunpack.c.l.b16 %v2193
        %v2450 = vunpack.c.l.b16 %v2194
        %v2451 = vunpack.c.l.b16 %v2195
        %v2452 = vunpack.c.l.b16 %v2196
        %v2453 = vunpack.c.l.b16 %v2197
        %v2454 = vunpack.c.l.b16 %v2198
        %v2455 = vunpack.c.l.b16 %v2199
        %v2456 = vunpack.c.l.b16 %v2200
        %v2457 = vunpack.c.l.b16 %v2201
        %v2458 = vunpack.c.l.b16 %v2202
        %v2459 = vpack.c.b16 %v2236, %v2443
        %v2460 = vpack.c.b16 %v2238, %v2444
        %v2461 = vpack.c.b16 %v2240, %v2445
        %v2462 = vpack.c.b16 %v2242, %v2446
        %v2463 = vpack.c.b16 %v2244, %v2447
        %v2464 = vpack.c.b16 %v2246, %v2448
        %v2465 = vpack.c.b16 %v2248, %v2449
        %v2466 = vpack.c.b16 %v2250, %v2450
        %v2467 = vpack.c.b16 %v2252, %v2451
        %v2468 = vpack.c.b16 %v2254, %v2452
        %v2469 = vpack.c.b16 %v2256, %v2453
        %v2470 = vpack.c.b16 %v2258, %v2454
        %v2471 = vpack.c.b16 %v2260, %v2455
        %v2472 = vpack.c.b16 %v2262, %v2456
        %v2473 = vpack.c.b16 %v2264, %v2457
        %v2474 = vpack.c.b16 %v2266, %v2458
        %v2475 = vrot.slane %v2459, 1
        %v2476 = vrot.slane %v2460, 1
        %v2477 = vrot.slane %v2461, 1
        %v2478 = vrot.slane %v2462, 1
        %v2479 = vrot.slane %v2463, 1
        %v2480 = vrot.slane %v2464, 1
        %v2481 = vrot.slane %v2465, 1
        %v2482 = vrot.slane %v2466, 1
        %v2483 = vrot.slane %v2467, 1
        %v2484 = vrot.slane %v2468, 1
        %v2485 = vrot.slane %v2469, 1
        %v2486 = vrot.slane %v2470, 1
        %v2487 = vrot.slane %v2471, 1
        %v2488 = vrot.slane %v2472, 1
        %v2489 = vrot.slane %v2473, 1
        %v2490 = vrot.slane %v2474, 1
        %2491 = vrot.lane.b32.xlu0 %v2475, 32
        %v2492 = vpop.permute.xlu0 %2491
        %2493 = vrot.lane.b32.xlu0 %v2476, 32
        %v2494 = vpop.permute.xlu0 %2493
        %2495 = vrot.lane.b32.xlu0 %v2477, 32
        %v2496 = vpop.permute.xlu0 %2495
        %2497 = vrot.lane.b32.xlu0 %v2478, 32
        %v2498 = vpop.permute.xlu0 %2497
        %2499 = vrot.lane.b32.xlu0 %v2479, 32
        %v2500 = vpop.permute.xlu0 %2499
        %2501 = vrot.lane.b32.xlu0 %v2480, 32
        %v2502 = vpop.permute.xlu0 %2501
        %2503 = vrot.lane.b32.xlu0 %v2481, 32
        %v2504 = vpop.permute.xlu0 %2503
        %2505 = vrot.lane.b32.xlu0 %v2482, 32
        %v2506 = vpop.permute.xlu0 %2505
        %2507 = vrot.lane.b32.xlu0 %v2483, 32
        %v2508 = vpop.permute.xlu0 %2507
        %2509 = vrot.lane.b32.xlu0 %v2484, 32
        %v2510 = vpop.permute.xlu0 %2509
        %2511 = vrot.lane.b32.xlu0 %v2485, 32
        %v2512 = vpop.permute.xlu0 %2511
        %2513 = vrot.lane.b32.xlu0 %v2486, 32
        %v2514 = vpop.permute.xlu0 %2513
        %2515 = vrot.lane.b32.xlu0 %v2487, 32
        %v2516 = vpop.permute.xlu0 %2515
        %2517 = vrot.lane.b32.xlu0 %v2488, 32
        %v2518 = vpop.permute.xlu0 %2517
        %2519 = vrot.lane.b32.xlu0 %v2489, 32
        %v2520 = vpop.permute.xlu0 %2519
        %2521 = vrot.lane.b32.xlu0 %v2490, 32
        %v2522 = vpop.permute.xlu0 %2521
        %v2525 = vsel %vm1252, %v2155, %v2396
        %v2528 = vsel %vm1252, %v2156, %v2398
        %v2531 = vsel %vm1252, %v2157, %v2400
        %v2534 = vsel %vm1252, %v2158, %v2402
        %v2537 = vsel %vm1252, %v2159, %v2404
        %v2540 = vsel %vm1252, %v2160, %v2406
        %v2543 = vsel %vm1252, %v2161, %v2408
        %v2546 = vsel %vm1252, %v2162, %v2410
        %v2549 = vsel %vm1252, %v2163, %v2412
        %v2552 = vsel %vm1252, %v2164, %v2414
        %v2555 = vsel %vm1252, %v2165, %v2416
        %v2558 = vsel %vm1252, %v2166, %v2418
        %v2561 = vsel %vm1252, %v2167, %v2420
        %v2564 = vsel %vm1252, %v2168, %v2422
        %v2567 = vsel %vm1252, %v2169, %v2424
        %v2570 = vsel %vm1252, %v2170, %v2426
        %v2572 = vsel %vm1301, %v2525, %v2492
        %v2574 = vsel %vm1301, %v2528, %v2494
        %v2576 = vsel %vm1301, %v2531, %v2496
        %v2578 = vsel %vm1301, %v2534, %v2498
        %v2580 = vsel %vm1301, %v2537, %v2500
        %v2582 = vsel %vm1301, %v2540, %v2502
        %v2584 = vsel %vm1301, %v2543, %v2504
        %v2586 = vsel %vm1301, %v2546, %v2506
        %v2588 = vsel %vm1301, %v2549, %v2508
        %v2590 = vsel %vm1301, %v2552, %v2510
        %v2592 = vsel %vm1301, %v2555, %v2512
        %v2594 = vsel %vm1301, %v2558, %v2514
        %v2596 = vsel %vm1301, %v2561, %v2516
        %v2598 = vsel %vm1301, %v2564, %v2518
        %v2600 = vsel %vm1301, %v2567, %v2520
        %v2602 = vsel %vm1301, %v2570, %v2522
        %s2603 = scalar_lea.vmem %s1, 48
        %v2604 = vld [vmem:[%s2603] sm:$0xf]
        %v2605 = vld [vmem:[%s2603 + $0x4] sm:$0xf]
        %v2606 = vld [vmem:[%s2603 + $0x8] sm:$0xf]
        %v2607 = vld [vmem:[%s2603 + $0xc] sm:$0xf]
        %v2608 = vld [vmem:[%s2603 + $0x10] sm:$0xf]
        %v2609 = vld [vmem:[%s2603 + $0x14] sm:$0xf]
        %v2626 = vunpack.c.l.b16 %v2572
        %v2627 = vunpack.c.l.b16 %v2574
        %v2628 = vunpack.c.l.b16 %v2576
        %v2629 = vunpack.c.l.b16 %v2578
        %v2630 = vunpack.c.l.b16 %v2580
        %v2631 = vunpack.c.l.b16 %v2582
        %v2632 = vunpack.c.l.b16 %v2584
        %v2633 = vunpack.c.l.b16 %v2586
        %v2634 = vunpack.c.l.b16 %v2588
        %v2635 = vunpack.c.l.b16 %v2590
        %v2636 = vunpack.c.l.b16 %v2592
        %v2637 = vunpack.c.l.b16 %v2594
        %v2638 = vunpack.c.l.b16 %v2596
        %v2639 = vunpack.c.l.b16 %v2598
        %v2640 = vunpack.c.l.b16 %v2600
        %v2641 = vunpack.c.l.b16 %v2602
        %v2642 = vpack.c.b16 %v2627, %v2626
        %v2643 = vpack.c.b16 %v2629, %v2628
        %v2644 = vpack.c.b16 %v2631, %v2630
        %v2645 = vpack.c.b16 %v2633, %v2632
        %v2646 = vpack.c.b16 %v2635, %v2634
        %v2647 = vpack.c.b16 %v2637, %v2636
        %v2648 = vpack.c.b16 %v2639, %v2638
        %v2649 = vpack.c.b16 %v2641, %v2640
        %v2656 = vunpack.c.l.b16 %v2604
        %v2657 = vunpack.c.l.b16 %v2605
        %v2658 = vunpack.c.l.b16 %v2606
        %v2659 = vunpack.c.l.b16 %v2607
        %v2660 = vunpack.c.l.b16 %v2608
        %v2661 = vunpack.c.l.b16 %v2609
        %v2662 = vpack.c.b16 %v2657, %v2656
        %v2663 = vpack.c.b16 %v2659, %v2658
        %v2664 = vpack.c.b16 %v2661, %v2660
        %v2669 = vsel %vm1853, %v2642, 0
        %v2672 = vsel %vm1853, %v2643, 0
        %v2675 = vsel %vm1853, %v2644, 0
        %v2678 = vsel %vm1853, %v2645, 0
        %v2681 = vsel %vm1853, %v2646, 0
        %v2684 = vsel %vm1853, %v2647, 0
        %v2687 = vsel %vm1853, %v2648, 0
        %v2690 = vsel %vm1853, %v2649, 0
        %2692 = vmatprep.subr.bf16.mxu0 0
        %2693 = vmatpush1.bf16.msra.mxu0 %v2662
        %2694 = vmatprep.subr.bf16.mxu0 0
        %2695 = vmatpush1.bf16.msra.mxu0 %v2663
        %2696 = vmatprep.subr.bf16.mxu0 0
        %2697 = vmatpush1.bf16.msra.mxu0 %v2664
        %2698 = vmatprep.subr.bf16.mxu0 0
        %2699 = vmatpush1.bf16.msra.mxu0 0
        %2700 = vmatprep.subr.bf16.mxu0 0
        %2701 = vmatpush1.bf16.msra.mxu0 0
        %2702 = vmatprep.subr.bf16.mxu0 0
        %2703 = vmatpush1.bf16.msra.mxu0 0
        %2704 = vmatprep.subr.bf16.mxu0 0
        %2705 = vmatpush1.bf16.msra.mxu0 0
        %2706 = vmatprep.subr.bf16.mxu0 0
        %2707 = vmatpush1.bf16.msra.mxu0 0
        %2708 = vmatprep.subr.bf16.mxu0 0
        %2709 = vmatpush1.bf16.msra.mxu0 0
        %2710 = vmatprep.subr.bf16.mxu0 0
        %2711 = vmatpush1.bf16.msra.mxu0 0
        %2712 = vmatprep.subr.bf16.mxu0 0
        %2713 = vmatpush1.bf16.msra.mxu0 0
        %2714 = vmatprep.subr.bf16.mxu0 0
        %2715 = vmatpush1.bf16.msra.mxu0 0
        %2716 = vmatprep.subr.bf16.mxu0 0
        %2717 = vmatpush1.bf16.msra.mxu0 0
        %2718 = vmatprep.subr.bf16.mxu0 0
        %2719 = vmatpush1.bf16.msra.mxu0 0
        %2720 = vmatprep.subr.bf16.mxu0 0
        %2721 = vmatpush1.bf16.msra.mxu0 0
        %2722 = vmatprep.subr.bf16.mxu0 0
        %2723 = vmatpush1.bf16.msra.mxu0 0
        %2724 = vmatprep.mubr.bf16.mxu0 0
        %2725 = vmatmul.mubr.bf16.gmra.mrb[0].mxu0 %v2669
        %v2726 = vpop.f32.mrb[0].mxu0
        %v2727 = vadd.f32 0.0, %v2726
        %v2728 = vpop.f32.mrb[0].mxu0
        %v2729 = vpop.f32.mrb[0].mxu0
        %v2730 = vadd.f32 0.0, %v2729
        %v2731 = vpop.f32.mrb[0].mxu0
        %2732 = vmatprep.mubr.bf16.mxu0 0
        %2733 = vmatmul.mubr.bf16.gmra.mrb[0].mxu0 %v2672
        %v2734 = vpop.f32.mrb[0].mxu0
        %v2735 = vadd.f32 0.0, %v2734
        %v2736 = vpop.f32.mrb[0].mxu0
        %v2737 = vpop.f32.mrb[0].mxu0
        %v2738 = vadd.f32 0.0, %v2737
        %v2739 = vpop.f32.mrb[0].mxu0
        %2740 = vmatprep.mubr.bf16.mxu0 0
        %2741 = vmatmul.mubr.bf16.gmra.mrb[0].mxu0 %v2675
        %v2742 = vpop.f32.mrb[0].mxu0
        %v2743 = vadd.f32 0.0, %v2742
        %v2744 = vpop.f32.mrb[0].mxu0
        %v2745 = vpop.f32.mrb[0].mxu0
        %v2746 = vadd.f32 0.0, %v2745
        %v2747 = vpop.f32.mrb[0].mxu0
        %2748 = vmatprep.mubr.bf16.mxu0 0
        %2749 = vmatmul.mubr.bf16.gmra.mrb[0].mxu0 %v2678
        %v2750 = vpop.f32.mrb[0].mxu0
        %v2751 = vadd.f32 0.0, %v2750
        %v2752 = vpop.f32.mrb[0].mxu0
        %v2753 = vpop.f32.mrb[0].mxu0
        %v2754 = vadd.f32 0.0, %v2753
        %v2755 = vpop.f32.mrb[0].mxu0
        %2756 = vmatprep.mubr.bf16.mxu0 0
        %2757 = vmatmul.mubr.bf16.gmra.mrb[0].mxu0 %v2681
        %v2758 = vpop.f32.mrb[0].mxu0
        %v2759 = vadd.f32 0.0, %v2758
        %v2760 = vpop.f32.mrb[0].mxu0
        %v2761 = vpop.f32.mrb[0].mxu0
        %v2762 = vadd.f32 0.0, %v2761
        %v2763 = vpop.f32.mrb[0].mxu0
        %2764 = vmatprep.mubr.bf16.mxu0 0
        %2765 = vmatmul.mubr.bf16.gmra.mrb[0].mxu0 %v2684
        %v2766 = vpop.f32.mrb[0].mxu0
        %v2767 = vadd.f32 0.0, %v2766
        %v2768 = vpop.f32.mrb[0].mxu0
        %v2769 = vpop.f32.mrb[0].mxu0
        %v2770 = vadd.f32 0.0, %v2769
        %v2771 = vpop.f32.mrb[0].mxu0
        %2772 = vmatprep.mubr.bf16.mxu0 0
        %2773 = vmatmul.mubr.bf16.gmra.mrb[0].mxu0 %v2687
        %v2774 = vpop.f32.mrb[0].mxu0
        %v2775 = vadd.f32 0.0, %v2774
        %v2776 = vpop.f32.mrb[0].mxu0
        %v2777 = vpop.f32.mrb[0].mxu0
        %v2778 = vadd.f32 0.0, %v2777
        %v2779 = vpop.f32.mrb[0].mxu0
        %2780 = vmatprep.mubr.bf16.mxu0 0
        %2781 = vmatmul.mubr.bf16.gmra.mrb[0].mxu0 %v2690
        %v2782 = vpop.f32.mrb[0].mxu0
        %v2783 = vadd.f32 0.0, %v2782
        %v2784 = vpop.f32.mrb[0].mxu0
        %v2785 = vpop.f32.mrb[0].mxu0
        %v2786 = vadd.f32 0.0, %v2785
        %v2787 = vpop.f32.mrb[0].mxu0
        %2788 = vdwg.mxu0
        %v2789 = vadd.f32 %v2092, %v2727
        %v2790 = vadd.f32 %v2095, %v2730
        %v2791 = vadd.f32 %v2100, %v2735
        %v2792 = vadd.f32 %v2103, %v2738
        %v2793 = vadd.f32 %v2108, %v2743
        %v2794 = vadd.f32 %v2111, %v2746
        %v2795 = vadd.f32 %v2116, %v2751
        %v2796 = vadd.f32 %v2119, %v2754
        %v2797 = vadd.f32 %v2124, %v2759
        %v2798 = vadd.f32 %v2127, %v2762
        %v2799 = vadd.f32 %v2132, %v2767
        %v2800 = vadd.f32 %v2135, %v2770
        %v2801 = vadd.f32 %v2140, %v2775
        %v2802 = vadd.f32 %v2143, %v2778
        %v2803 = vadd.f32 %v2148, %v2783
        %v2804 = vadd.f32 %v2151, %v2786
        %v2805 = vld [vmem:[%s2] sm:$0x1]
        %v2807 = vlaneseq
        %v2808 = vshrl.u32 %v2807, 7
        %v2809 = vsub.s32 0, %v2808
        %v2810 = vrot.slane %v2805, %v2809
        %v2812 = vmul.f32 %v2789, %v2810
        %v2813 = vmul.f32 %v2790, %v2810
        %v2814 = vmul.f32 %v2791, %v2810
        %v2815 = vmul.f32 %v2792, %v2810
        %v2816 = vmul.f32 %v2793, %v2810
        %v2817 = vmul.f32 %v2794, %v2810
        %v2818 = vmul.f32 %v2795, %v2810
        %v2819 = vmul.f32 %v2796, %v2810
        %v2820 = vmul.f32 %v2797, %v2810
        %v2821 = vmul.f32 %v2798, %v2810
        %v2822 = vmul.f32 %v2799, %v2810
        %v2823 = vmul.f32 %v2800, %v2810
        %v2824 = vmul.f32 %v2801, %v2810
        %v2825 = vmul.f32 %v2802, %v2810
        %v2826 = vmul.f32 %v2803, %v2810
        %v2827 = vmul.f32 %v2804, %v2810
        %v2828 = vld [vmem:[%s3] sm:$0x1]
        %v2830 = vlaneseq
        %v2831 = vshrl.u32 %v2830, 7
        %v2832 = vsub.s32 0, %v2831
        %v2833 = vrot.slane %v2828, %v2832
        %v2835 = vadd.f32 %v2812, %v2833
        %v2836 = vadd.f32 %v2813, %v2833
        %v2837 = vadd.f32 %v2814, %v2833
        %v2838 = vadd.f32 %v2815, %v2833
        %v2839 = vadd.f32 %v2816, %v2833
        %v2840 = vadd.f32 %v2817, %v2833
        %v2841 = vadd.f32 %v2818, %v2833
        %v2842 = vadd.f32 %v2819, %v2833
        %v2843 = vadd.f32 %v2820, %v2833
        %v2844 = vadd.f32 %v2821, %v2833
        %v2845 = vadd.f32 %v2822, %v2833
        %v2846 = vadd.f32 %v2823, %v2833
        %v2847 = vadd.f32 %v2824, %v2833
        %v2848 = vadd.f32 %v2825, %v2833
        %v2849 = vadd.f32 %v2826, %v2833
        %v2850 = vadd.f32 %v2827, %v2833
        %v2851 = vmax.f32 %v2835, 0.0
        %v2852 = vmax.f32 %v2836, 0.0
        %v2853 = vmax.f32 %v2837, 0.0
        %v2854 = vmax.f32 %v2838, 0.0
        %v2855 = vmax.f32 %v2839, 0.0
        %v2856 = vmax.f32 %v2840, 0.0
        %v2857 = vmax.f32 %v2841, 0.0
        %v2858 = vmax.f32 %v2842, 0.0
        %v2859 = vmax.f32 %v2843, 0.0
        %v2860 = vmax.f32 %v2844, 0.0
        %v2861 = vmax.f32 %v2845, 0.0
        %v2862 = vmax.f32 %v2846, 0.0
        %v2863 = vmax.f32 %v2847, 0.0
        %v2864 = vmax.f32 %v2848, 0.0
        %v2865 = vmax.f32 %v2849, 0.0
        %v2866 = vmax.f32 %v2850, 0.0
        %2867 = vst.msk [vmem:[#allocation3] sm:$0xf] %vm425, 0
        %2868 = vst.msk [vmem:[#allocation3 + $0x4] sm:$0x1] %vm427, 0
        %2869 = vst.msk [vmem:[#allocation3 + $0x50] sm:$0xf] %vm425, 0
        %2870 = vst.msk [vmem:[#allocation3 + $0x54] sm:$0x1] %vm427, 0
        %s2871 = scalar_lea.vmem [#allocation3], 72
        %2872 = vst.msk [vmem:[%s2871] sm:$0xf] %vm425, 0
        %2873 = vst.msk [vmem:[%s2871 + $0x4] sm:$0x1] %vm427, 0
        %2874 = vst.msk [vmem:[%s2871 + $0x50] sm:$0xf] %vm425, 0
        %2875 = vst.msk [vmem:[%s2871 + $0x54] sm:$0x1] %vm427, 0
        %v2876 = vld [vmem:[#allocation3] sm:$0x1]
        %v2877 = vsel %vm438, 0, %v2876
        %2878 = vst [vmem:[#allocation3] sm:$0x1] %v2877
        %v2879 = vld [vmem:[#allocation3 + $0x8] sm:$0x1]
        %v2880 = vsel %vm438, 0, %v2879
        %2881 = vst [vmem:[#allocation3 + $0x8] sm:$0x1] %v2880
        %v2882 = vld [vmem:[#allocation3 + $0x10] sm:$0x1]
        %v2883 = vsel %vm438, 0, %v2882
        %2884 = vst [vmem:[#allocation3 + $0x10] sm:$0x1] %v2883
        %v2885 = vld [vmem:[#allocation3 + $0x18] sm:$0x1]
        %v2886 = vsel %vm438, 0, %v2885
        %2887 = vst [vmem:[#allocation3 + $0x18] sm:$0x1] %v2886
        %v2888 = vld [vmem:[#allocation3 + $0x20] sm:$0x1]
        %v2889 = vsel %vm438, 0, %v2888
        %2890 = vst [vmem:[#allocation3 + $0x20] sm:$0x1] %v2889
        %v2891 = vld [vmem:[#allocation3 + $0x28] sm:$0x1]
        %v2892 = vsel %vm438, 0, %v2891
        %2893 = vst [vmem:[#allocation3 + $0x28] sm:$0x1] %v2892
        %v2894 = vld [vmem:[#allocation3 + $0x30] sm:$0x1]
        %v2895 = vsel %vm438, 0, %v2894
        %2896 = vst [vmem:[#allocation3 + $0x30] sm:$0x1] %v2895
        %v2897 = vld [vmem:[#allocation3 + $0x38] sm:$0x1]
        %v2898 = vsel %vm438, 0, %v2897
        %2899 = vst [vmem:[#allocation3 + $0x38] sm:$0x1] %v2898
        %v2900 = vld [vmem:[#allocation3 + $0x40] sm:$0x1]
        %v2901 = vsel %vm438, 0, %v2900
        %2902 = vst [vmem:[#allocation3 + $0x40] sm:$0x1] %v2901
        %v2903 = vld [vmem:[#allocation3 + $0x48] sm:$0x1]
        %v2904 = vsel %vm438, 0, %v2903
        %2905 = vst [vmem:[#allocation3 + $0x48] sm:$0x1] %v2904
        %v2906 = vld [vmem:[#allocation3 + $0x50] sm:$0x1]
        %v2907 = vsel %vm438, 0, %v2906
        %2908 = vst [vmem:[#allocation3 + $0x50] sm:$0x1] %v2907
        %v2909 = vld [vmem:[#allocation3 + $0x58] sm:$0x1]
        %v2910 = vsel %vm438, 0, %v2909
        %2911 = vst [vmem:[#allocation3 + $0x58] sm:$0x1] %v2910
        %v2912 = vld [vmem:[#allocation3 + $0x60] sm:$0x1]
        %v2913 = vsel %vm438, 0, %v2912
        %2914 = vst [vmem:[#allocation3 + $0x60] sm:$0x1] %v2913
        %v2915 = vld [vmem:[#allocation3 + $0x68] sm:$0x1]
        %v2916 = vsel %vm438, 0, %v2915
        %2917 = vst [vmem:[#allocation3 + $0x68] sm:$0x1] %v2916
        %v2918 = vld [vmem:[#allocation3 + $0x70] sm:$0x1]
        %v2919 = vsel %vm438, 0, %v2918
        %2920 = vst [vmem:[#allocation3 + $0x70] sm:$0x1] %v2919
        %v2921 = vld [vmem:[#allocation3 + $0x78] sm:$0x1]
        %v2922 = vsel %vm438, 0, %v2921
        %2923 = vst [vmem:[#allocation3 + $0x78] sm:$0x1] %v2922
        %v2924 = vld [vmem:[#allocation3 + $0x80] sm:$0x1]
        %v2925 = vsel %vm438, 0, %v2924
        %2926 = vst [vmem:[#allocation3 + $0x80] sm:$0x1] %v2925
        %v2927 = vld [vmem:[#allocation3 + $0x88] sm:$0x1]
        %v2928 = vsel %vm438, 0, %v2927
        %2929 = vst [vmem:[#allocation3 + $0x88] sm:$0x1] %v2928
        %v2930 = vld [vmem:[#allocation3 + $0x90] sm:$0x1]
        %v2931 = vsel %vm438, 0, %v2930
        %2932 = vst [vmem:[#allocation3 + $0x90] sm:$0x1] %v2931
        %v2933 = vld [vmem:[#allocation3 + $0x98] sm:$0x1]
        %v2934 = vsel %vm438, 0, %v2933
        %2935 = vst [vmem:[#allocation3 + $0x98] sm:$0x1] %v2934
        %v2936 = vld [vmem:[#allocation3 + $0x4] sm:$0x1]
        %v2937 = vsel %vm500, 0, %v2936
        %2938 = vst [vmem:[#allocation3 + $0x4] sm:$0x1] %v2937
        %v2939 = vld [vmem:[#allocation3 + $0xc] sm:$0x1]
        %v2940 = vsel %vm500, 0, %v2939
        %2941 = vst [vmem:[#allocation3 + $0xc] sm:$0x1] %v2940
        %v2942 = vld [vmem:[#allocation3 + $0x14] sm:$0x1]
        %v2943 = vsel %vm500, 0, %v2942
        %2944 = vst [vmem:[#allocation3 + $0x14] sm:$0x1] %v2943
        %v2945 = vld [vmem:[#allocation3 + $0x1c] sm:$0x1]
        %v2946 = vsel %vm500, 0, %v2945
        %2947 = vst [vmem:[#allocation3 + $0x1c] sm:$0x1] %v2946
        %v2948 = vld [vmem:[#allocation3 + $0x24] sm:$0x1]
        %v2949 = vsel %vm500, 0, %v2948
        %2950 = vst [vmem:[#allocation3 + $0x24] sm:$0x1] %v2949
        %v2951 = vld [vmem:[#allocation3 + $0x2c] sm:$0x1]
        %v2952 = vsel %vm500, 0, %v2951
        %2953 = vst [vmem:[#allocation3 + $0x2c] sm:$0x1] %v2952
        %v2954 = vld [vmem:[#allocation3 + $0x34] sm:$0x1]
        %v2955 = vsel %vm500, 0, %v2954
        %2956 = vst [vmem:[#allocation3 + $0x34] sm:$0x1] %v2955
        %v2957 = vld [vmem:[#allocation3 + $0x3c] sm:$0x1]
        %v2958 = vsel %vm500, 0, %v2957
        %2959 = vst [vmem:[#allocation3 + $0x3c] sm:$0x1] %v2958
        %v2960 = vld [vmem:[#allocation3 + $0x44] sm:$0x1]
        %v2961 = vsel %vm500, 0, %v2960
        %2962 = vst [vmem:[#allocation3 + $0x44] sm:$0x1] %v2961
        %v2963 = vld [vmem:[#allocation3 + $0x4c] sm:$0x1]
        %v2964 = vsel %vm500, 0, %v2963
        %2965 = vst [vmem:[#allocation3 + $0x4c] sm:$0x1] %v2964
        %v2966 = vld [vmem:[#allocation3 + $0x54] sm:$0x1]
        %v2967 = vsel %vm500, 0, %v2966
        %2968 = vst [vmem:[#allocation3 + $0x54] sm:$0x1] %v2967
        %v2969 = vld [vmem:[#allocation3 + $0x5c] sm:$0x1]
        %v2970 = vsel %vm500, 0, %v2969
        %2971 = vst [vmem:[#allocation3 + $0x5c] sm:$0x1] %v2970
        %v2972 = vld [vmem:[#allocation3 + $0x64] sm:$0x1]
        %v2973 = vsel %vm500, 0, %v2972
        %2974 = vst [vmem:[#allocation3 + $0x64] sm:$0x1] %v2973
        %v2975 = vld [vmem:[#allocation3 + $0x6c] sm:$0x1]
        %v2976 = vsel %vm500, 0, %v2975
        %2977 = vst [vmem:[#allocation3 + $0x6c] sm:$0x1] %v2976
        %v2978 = vld [vmem:[#allocation3 + $0x74] sm:$0x1]
        %v2979 = vsel %vm500, 0, %v2978
        %2980 = vst [vmem:[#allocation3 + $0x74] sm:$0x1] %v2979
        %v2981 = vld [vmem:[#allocation3 + $0x7c] sm:$0x1]
        %v2982 = vsel %vm500, 0, %v2981
        %2983 = vst [vmem:[#allocation3 + $0x7c] sm:$0x1] %v2982
        %v2984 = vld [vmem:[#allocation3 + $0x84] sm:$0x1]
        %v2985 = vsel %vm500, 0, %v2984
        %2986 = vst [vmem:[#allocation3 + $0x84] sm:$0x1] %v2985
        %v2987 = vld [vmem:[#allocation3 + $0x8c] sm:$0x1]
        %v2988 = vsel %vm500, 0, %v2987
        %2989 = vst [vmem:[#allocation3 + $0x8c] sm:$0x1] %v2988
        %v2990 = vld [vmem:[#allocation3 + $0x94] sm:$0x1]
        %v2991 = vsel %vm500, 0, %v2990
        %2992 = vst [vmem:[#allocation3 + $0x94] sm:$0x1] %v2991
        %v2993 = vld [vmem:[#allocation3 + $0x9c] sm:$0x1]
        %v2994 = vsel %vm500, 0, %v2993
        %2995 = vst [vmem:[#allocation3 + $0x9c] sm:$0x1] %v2994
        %v2996 = vpack.c.bf16 %v2851, %v2851
        %v2997 = vpack.c.bf16 %v2852, %v2852
        %v2998 = vpack.c.bf16 %v2853, %v2853
        %v2999 = vpack.c.bf16 %v2854, %v2854
        %v3000 = vpack.c.bf16 %v2855, %v2855
        %v3001 = vpack.c.bf16 %v2856, %v2856
        %v3002 = vpack.c.bf16 %v2857, %v2857
        %v3003 = vpack.c.bf16 %v2858, %v2858
        %v3004 = vpack.c.bf16 %v2859, %v2859
        %v3005 = vpack.c.bf16 %v2860, %v2860
        %v3006 = vpack.c.bf16 %v2861, %v2861
        %v3007 = vpack.c.bf16 %v2862, %v2862
        %v3008 = vpack.c.bf16 %v2863, %v2863
        %v3009 = vpack.c.bf16 %v2864, %v2864
        %v3010 = vpack.c.bf16 %v2865, %v2865
        %v3011 = vpack.c.bf16 %v2866, %v2866
        %v3028 = vunpack.c.l.b16 %v2996
        %v3029 = vunpack.c.l.b16 %v2997
        %v3030 = vunpack.c.l.b16 %v2998
        %v3031 = vunpack.c.l.b16 %v2999
        %v3032 = vunpack.c.l.b16 %v3000
        %v3033 = vunpack.c.l.b16 %v3001
        %v3034 = vunpack.c.l.b16 %v3002
        %v3035 = vunpack.c.l.b16 %v3003
        %v3036 = vunpack.c.l.b16 %v3004
        %v3037 = vunpack.c.l.b16 %v3005
        %v3038 = vunpack.c.l.b16 %v3006
        %v3039 = vunpack.c.l.b16 %v3007
        %v3040 = vunpack.c.l.b16 %v3008
        %v3041 = vunpack.c.l.b16 %v3009
        %v3042 = vunpack.c.l.b16 %v3010
        %v3043 = vunpack.c.l.b16 %v3011
        %v3044 = vpack.c.b16 %v3028, %v3028
        %v3045 = vpack.c.b16 %v3029, %v3029
        %v3046 = vpack.c.b16 %v3030, %v3030
        %v3047 = vpack.c.b16 %v3031, %v3031
        %v3048 = vpack.c.b16 %v3032, %v3032
        %v3049 = vpack.c.b16 %v3033, %v3033
        %v3050 = vpack.c.b16 %v3034, %v3034
        %v3051 = vpack.c.b16 %v3035, %v3035
        %v3052 = vpack.c.b16 %v3036, %v3036
        %v3053 = vpack.c.b16 %v3037, %v3037
        %v3054 = vpack.c.b16 %v3038, %v3038
        %v3055 = vpack.c.b16 %v3039, %v3039
        %v3056 = vpack.c.b16 %v3040, %v3040
        %v3057 = vpack.c.b16 %v3041, %v3041
        %v3058 = vpack.c.b16 %v3042, %v3042
        %v3059 = vpack.c.b16 %v3043, %v3043
        %v3061 = vshrl.u32 %v3044, 16
        %v3063 = vrot.slane %v3061, 7
        %v3064 = vshll.u32 %v3044, 16
        %v3066 = vor.u32 %v3063, %v3064
        %v3067 = vrot.slane %v3063, 4
        %v3069 = vshrl.u32 %v3045, 16
        %v3071 = vrot.slane %v3069, 7
        %v3072 = vshll.u32 %v3045, 16
        %v3074 = vor.u32 %v3071, %v3072
        %v3075 = vrot.slane %v3071, 4
        %v3077 = vshrl.u32 %v3046, 16
        %v3079 = vrot.slane %v3077, 7
        %v3080 = vshll.u32 %v3046, 16
        %v3082 = vor.u32 %v3079, %v3080
        %v3083 = vrot.slane %v3079, 4
        %v3085 = vshrl.u32 %v3047, 16
        %v3087 = vrot.slane %v3085, 7
        %v3088 = vshll.u32 %v3047, 16
        %v3090 = vor.u32 %v3087, %v3088
        %v3091 = vrot.slane %v3087, 4
        %v3093 = vshrl.u32 %v3048, 16
        %v3095 = vrot.slane %v3093, 7
        %v3096 = vshll.u32 %v3048, 16
        %v3098 = vor.u32 %v3095, %v3096
        %v3099 = vrot.slane %v3095, 4
        %v3101 = vshrl.u32 %v3049, 16
        %v3103 = vrot.slane %v3101, 7
        %v3104 = vshll.u32 %v3049, 16
        %v3106 = vor.u32 %v3103, %v3104
        %v3107 = vrot.slane %v3103, 4
        %v3109 = vshrl.u32 %v3050, 16
        %v3111 = vrot.slane %v3109, 7
        %v3112 = vshll.u32 %v3050, 16
        %v3114 = vor.u32 %v3111, %v3112
        %v3115 = vrot.slane %v3111, 4
        %v3117 = vshrl.u32 %v3051, 16
        %v3119 = vrot.slane %v3117, 7
        %v3120 = vshll.u32 %v3051, 16
        %v3122 = vor.u32 %v3119, %v3120
        %v3123 = vrot.slane %v3119, 4
        %v3125 = vshrl.u32 %v3052, 16
        %v3127 = vrot.slane %v3125, 7
        %v3128 = vshll.u32 %v3052, 16
        %v3130 = vor.u32 %v3127, %v3128
        %v3131 = vrot.slane %v3127, 4
        %v3133 = vshrl.u32 %v3053, 16
        %v3135 = vrot.slane %v3133, 7
        %v3136 = vshll.u32 %v3053, 16
        %v3138 = vor.u32 %v3135, %v3136
        %v3139 = vrot.slane %v3135, 4
        %v3141 = vshrl.u32 %v3054, 16
        %v3143 = vrot.slane %v3141, 7
        %v3144 = vshll.u32 %v3054, 16
        %v3146 = vor.u32 %v3143, %v3144
        %v3147 = vrot.slane %v3143, 4
        %v3149 = vshrl.u32 %v3055, 16
        %v3151 = vrot.slane %v3149, 7
        %v3152 = vshll.u32 %v3055, 16
        %v3154 = vor.u32 %v3151, %v3152
        %v3155 = vrot.slane %v3151, 4
        %v3157 = vshrl.u32 %v3056, 16
        %v3159 = vrot.slane %v3157, 7
        %v3160 = vshll.u32 %v3056, 16
        %v3162 = vor.u32 %v3159, %v3160
        %v3163 = vrot.slane %v3159, 4
        %v3165 = vshrl.u32 %v3057, 16
        %v3167 = vrot.slane %v3165, 7
        %v3168 = vshll.u32 %v3057, 16
        %v3170 = vor.u32 %v3167, %v3168
        %v3171 = vrot.slane %v3167, 4
        %v3173 = vshrl.u32 %v3058, 16
        %v3175 = vrot.slane %v3173, 7
        %v3176 = vshll.u32 %v3058, 16
        %v3178 = vor.u32 %v3175, %v3176
        %v3179 = vrot.slane %v3175, 4
        %v3181 = vshrl.u32 %v3059, 16
        %v3183 = vrot.slane %v3181, 7
        %v3184 = vshll.u32 %v3059, 16
        %v3186 = vor.u32 %v3183, %v3184
        %v3187 = vrot.slane %v3183, 4
        %s3220 = scalar_lea.vmem [#allocation3], 8
        %v3221 = vld [vmem:[%s3220] sm:$0xf]
        %v3222 = vsel %vm787, %v3066, %v3221
        %3223 = vst [vmem:[%s3220] sm:$0xf] %v3222
        %v3224 = vld [vmem:[%s3220 + $0x4] sm:$0x1]
        %v3225 = vsel %vm438, %v3067, %v3224
        %3226 = vst [vmem:[%s3220 + $0x4] sm:$0x1] %v3225
        %v3227 = vld [vmem:[%s3220 + $0x8] sm:$0xf]
        %v3228 = vsel %vm787, %v3074, %v3227
        %3229 = vst [vmem:[%s3220 + $0x8] sm:$0xf] %v3228
        %v3230 = vld [vmem:[%s3220 + $0xc] sm:$0x1]
        %v3231 = vsel %vm438, %v3075, %v3230
        %3232 = vst [vmem:[%s3220 + $0xc] sm:$0x1] %v3231
        %v3233 = vld [vmem:[%s3220 + $0x10] sm:$0xf]
        %v3234 = vsel %vm787, %v3082, %v3233
        %3235 = vst [vmem:[%s3220 + $0x10] sm:$0xf] %v3234
        %v3236 = vld [vmem:[%s3220 + $0x14] sm:$0x1]
        %v3237 = vsel %vm438, %v3083, %v3236
        %3238 = vst [vmem:[%s3220 + $0x14] sm:$0x1] %v3237
        %v3239 = vld [vmem:[%s3220 + $0x18] sm:$0xf]
        %v3240 = vsel %vm787, %v3090, %v3239
        %3241 = vst [vmem:[%s3220 + $0x18] sm:$0xf] %v3240
        %v3242 = vld [vmem:[%s3220 + $0x1c] sm:$0x1]
        %v3243 = vsel %vm438, %v3091, %v3242
        %3244 = vst [vmem:[%s3220 + $0x1c] sm:$0x1] %v3243
        %v3245 = vld [vmem:[%s3220 + $0x20] sm:$0xf]
        %v3246 = vsel %vm787, %v3098, %v3245
        %3247 = vst [vmem:[%s3220 + $0x20] sm:$0xf] %v3246
        %v3248 = vld [vmem:[%s3220 + $0x24] sm:$0x1]
        %v3249 = vsel %vm438, %v3099, %v3248
        %3250 = vst [vmem:[%s3220 + $0x24] sm:$0x1] %v3249
        %v3251 = vld [vmem:[%s3220 + $0x28] sm:$0xf]
        %v3252 = vsel %vm787, %v3106, %v3251
        %3253 = vst [vmem:[%s3220 + $0x28] sm:$0xf] %v3252
        %v3254 = vld [vmem:[%s3220 + $0x2c] sm:$0x1]
        %v3255 = vsel %vm438, %v3107, %v3254
        %3256 = vst [vmem:[%s3220 + $0x2c] sm:$0x1] %v3255
        %v3257 = vld [vmem:[%s3220 + $0x30] sm:$0xf]
        %v3258 = vsel %vm787, %v3114, %v3257
        %3259 = vst [vmem:[%s3220 + $0x30] sm:$0xf] %v3258
        %v3260 = vld [vmem:[%s3220 + $0x34] sm:$0x1]
        %v3261 = vsel %vm438, %v3115, %v3260
        %3262 = vst [vmem:[%s3220 + $0x34] sm:$0x1] %v3261
        %v3263 = vld [vmem:[%s3220 + $0x38] sm:$0xf]
        %v3264 = vsel %vm787, %v3122, %v3263
        %3265 = vst [vmem:[%s3220 + $0x38] sm:$0xf] %v3264
        %v3266 = vld [vmem:[%s3220 + $0x3c] sm:$0x1]
        %v3267 = vsel %vm438, %v3123, %v3266
        %3268 = vst [vmem:[%s3220 + $0x3c] sm:$0x1] %v3267
        %v3269 = vld [vmem:[%s3220 + $0x50] sm:$0xf]
        %v3270 = vsel %vm787, %v3130, %v3269
        %3271 = vst [vmem:[%s3220 + $0x50] sm:$0xf] %v3270
        %v3272 = vld [vmem:[%s3220 + $0x54] sm:$0x1]
        %v3273 = vsel %vm438, %v3131, %v3272
        %3274 = vst [vmem:[%s3220 + $0x54] sm:$0x1] %v3273
        %v3275 = vld [vmem:[%s3220 + $0x58] sm:$0xf]
        %v3276 = vsel %vm787, %v3138, %v3275
        %3277 = vst [vmem:[%s3220 + $0x58] sm:$0xf] %v3276
        %v3278 = vld [vmem:[%s3220 + $0x5c] sm:$0x1]
        %v3279 = vsel %vm438, %v3139, %v3278
        %3280 = vst [vmem:[%s3220 + $0x5c] sm:$0x1] %v3279
        %v3281 = vld [vmem:[%s3220 + $0x60] sm:$0xf]
        %v3282 = vsel %vm787, %v3146, %v3281
        %3283 = vst [vmem:[%s3220 + $0x60] sm:$0xf] %v3282
        %v3284 = vld [vmem:[%s3220 + $0x64] sm:$0x1]
        %v3285 = vsel %vm438, %v3147, %v3284
        %3286 = vst [vmem:[%s3220 + $0x64] sm:$0x1] %v3285
        %v3287 = vld [vmem:[%s3220 + $0x68] sm:$0xf]
        %v3288 = vsel %vm787, %v3154, %v3287
        %3289 = vst [vmem:[%s3220 + $0x68] sm:$0xf] %v3288
        %v3290 = vld [vmem:[%s3220 + $0x6c] sm:$0x1]
        %v3291 = vsel %vm438, %v3155, %v3290
        %3292 = vst [vmem:[%s3220 + $0x6c] sm:$0x1] %v3291
        %v3293 = vld [vmem:[%s3220 + $0x70] sm:$0xf]
        %v3294 = vsel %vm787, %v3162, %v3293
        %3295 = vst [vmem:[%s3220 + $0x70] sm:$0xf] %v3294
        %v3296 = vld [vmem:[%s3220 + $0x74] sm:$0x1]
        %v3297 = vsel %vm438, %v3163, %v3296
        %3298 = vst [vmem:[%s3220 + $0x74] sm:$0x1] %v3297
        %v3299 = vld [vmem:[%s3220 + $0x78] sm:$0xf]
        %v3300 = vsel %vm787, %v3170, %v3299
        %3301 = vst [vmem:[%s3220 + $0x78] sm:$0xf] %v3300
        %v3302 = vld [vmem:[%s3220 + $0x7c] sm:$0x1]
        %v3303 = vsel %vm438, %v3171, %v3302
        %3304 = vst [vmem:[%s3220 + $0x7c] sm:$0x1] %v3303
        %v3305 = vld [vmem:[%s3220 + $0x80] sm:$0xf]
        %v3306 = vsel %vm787, %v3178, %v3305
        %3307 = vst [vmem:[%s3220 + $0x80] sm:$0xf] %v3306
        %v3308 = vld [vmem:[%s3220 + $0x84] sm:$0x1]
        %v3309 = vsel %vm438, %v3179, %v3308
        %3310 = vst [vmem:[%s3220 + $0x84] sm:$0x1] %v3309
        %v3311 = vld [vmem:[%s3220 + $0x88] sm:$0xf]
        %v3312 = vsel %vm787, %v3186, %v3311
        %3313 = vst [vmem:[%s3220 + $0x88] sm:$0xf] %v3312
        %v3314 = vld [vmem:[%s3220 + $0x8c] sm:$0x1]
        %v3315 = vsel %vm438, %v3187, %v3314
        %3316 = vst [vmem:[%s3220 + $0x8c] sm:$0x1] %v3315
        %v3317 = vld [vmem:[#allocation3] sm:$0xf]
        %v3318 = vld [vmem:[#allocation3 + $0x8] sm:$0xf]
        %v3319 = vld [vmem:[#allocation3 + $0x10] sm:$0xf]
        %v3320 = vld [vmem:[#allocation3 + $0x18] sm:$0xf]
        %v3321 = vld [vmem:[#allocation3 + $0x20] sm:$0xf]
        %v3322 = vld [vmem:[#allocation3 + $0x28] sm:$0xf]
        %v3323 = vld [vmem:[#allocation3 + $0x30] sm:$0xf]
        %v3324 = vld [vmem:[#allocation3 + $0x38] sm:$0xf]
        %v3325 = vld [vmem:[#allocation3 + $0x50] sm:$0xf]
        %v3326 = vld [vmem:[#allocation3 + $0x58] sm:$0xf]
        %v3327 = vld [vmem:[#allocation3 + $0x60] sm:$0xf]
        %v3328 = vld [vmem:[#allocation3 + $0x68] sm:$0xf]
        %v3329 = vld [vmem:[#allocation3 + $0x70] sm:$0xf]
        %v3330 = vld [vmem:[#allocation3 + $0x78] sm:$0xf]
        %v3331 = vld [vmem:[#allocation3 + $0x80] sm:$0xf]
        %v3332 = vld [vmem:[#allocation3 + $0x88] sm:$0xf]
        %v3333 = vld [vmem:[#allocation3 + $0x4] sm:$0x1]
        %v3334 = vld [vmem:[#allocation3 + $0xc] sm:$0x1]
        %v3335 = vld [vmem:[#allocation3 + $0x14] sm:$0x1]
        %v3336 = vld [vmem:[#allocation3 + $0x1c] sm:$0x1]
        %v3337 = vld [vmem:[#allocation3 + $0x24] sm:$0x1]
        %v3338 = vld [vmem:[#allocation3 + $0x2c] sm:$0x1]
        %v3339 = vld [vmem:[#allocation3 + $0x34] sm:$0x1]
        %v3340 = vld [vmem:[#allocation3 + $0x3c] sm:$0x1]
        %v3341 = vld [vmem:[#allocation3 + $0x54] sm:$0x1]
        %v3342 = vld [vmem:[#allocation3 + $0x5c] sm:$0x1]
        %v3343 = vld [vmem:[#allocation3 + $0x64] sm:$0x1]
        %v3344 = vld [vmem:[#allocation3 + $0x6c] sm:$0x1]
        %v3345 = vld [vmem:[#allocation3 + $0x74] sm:$0x1]
        %v3346 = vld [vmem:[#allocation3 + $0x7c] sm:$0x1]
        %v3347 = vld [vmem:[#allocation3 + $0x84] sm:$0x1]
        %v3348 = vld [vmem:[#allocation3 + $0x8c] sm:$0x1]
        %v3349 = vld [vmem:[#allocation3] sm:$0xe]
        %v3350 = vld [vmem:[#allocation3 + $0x8] sm:$0xe]
        %v3351 = vld [vmem:[#allocation3 + $0x10] sm:$0xe]
        %v3352 = vld [vmem:[#allocation3 + $0x18] sm:$0xe]
        %v3353 = vld [vmem:[#allocation3 + $0x20] sm:$0xe]
        %v3354 = vld [vmem:[#allocation3 + $0x28] sm:$0xe]
        %v3355 = vld [vmem:[#allocation3 + $0x30] sm:$0xe]
        %v3356 = vld [vmem:[#allocation3 + $0x38] sm:$0xe]
        %v3357 = vld [vmem:[#allocation3 + $0x50] sm:$0xe]
        %v3358 = vld [vmem:[#allocation3 + $0x58] sm:$0xe]
        %v3359 = vld [vmem:[#allocation3 + $0x60] sm:$0xe]
        %v3360 = vld [vmem:[#allocation3 + $0x68] sm:$0xe]
        %v3361 = vld [vmem:[#allocation3 + $0x70] sm:$0xe]
        %v3362 = vld [vmem:[#allocation3 + $0x78] sm:$0xe]
        %v3363 = vld [vmem:[#allocation3 + $0x80] sm:$0xe]
        %v3364 = vld [vmem:[#allocation3 + $0x88] sm:$0xe]
        %v3397 = vunpack.c.l.b16 %v3317
        %v3398 = vunpack.c.l.b16 %v3333
        %v3399 = vunpack.c.l.b16 %v3318
        %v3400 = vunpack.c.l.b16 %v3334
        %v3401 = vunpack.c.l.b16 %v3319
        %v3402 = vunpack.c.l.b16 %v3335
        %v3403 = vunpack.c.l.b16 %v3320
        %v3404 = vunpack.c.l.b16 %v3336
        %v3405 = vunpack.c.l.b16 %v3321
        %v3406 = vunpack.c.l.b16 %v3337
        %v3407 = vunpack.c.l.b16 %v3322
        %v3408 = vunpack.c.l.b16 %v3338
        %v3409 = vunpack.c.l.b16 %v3323
        %v3410 = vunpack.c.l.b16 %v3339
        %v3411 = vunpack.c.l.b16 %v3324
        %v3412 = vunpack.c.l.b16 %v3340
        %v3413 = vunpack.c.l.b16 %v3325
        %v3414 = vunpack.c.l.b16 %v3341
        %v3415 = vunpack.c.l.b16 %v3326
        %v3416 = vunpack.c.l.b16 %v3342
        %v3417 = vunpack.c.l.b16 %v3327
        %v3418 = vunpack.c.l.b16 %v3343
        %v3419 = vunpack.c.l.b16 %v3328
        %v3420 = vunpack.c.l.b16 %v3344
        %v3421 = vunpack.c.l.b16 %v3329
        %v3422 = vunpack.c.l.b16 %v3345
        %v3423 = vunpack.c.l.b16 %v3330
        %v3424 = vunpack.c.l.b16 %v3346
        %v3425 = vunpack.c.l.b16 %v3331
        %v3426 = vunpack.c.l.b16 %v3347
        %v3427 = vunpack.c.l.b16 %v3332
        %v3428 = vunpack.c.l.b16 %v3348
        %v3429 = vpack.c.b16 %v3398, %v3397
        %v3430 = vpack.c.b16 %v3400, %v3399
        %v3431 = vpack.c.b16 %v3402, %v3401
        %v3432 = vpack.c.b16 %v3404, %v3403
        %v3433 = vpack.c.b16 %v3406, %v3405
        %v3434 = vpack.c.b16 %v3408, %v3407
        %v3435 = vpack.c.b16 %v3410, %v3409
        %v3436 = vpack.c.b16 %v3412, %v3411
        %v3437 = vpack.c.b16 %v3414, %v3413
        %v3438 = vpack.c.b16 %v3416, %v3415
        %v3439 = vpack.c.b16 %v3418, %v3417
        %v3440 = vpack.c.b16 %v3420, %v3419
        %v3441 = vpack.c.b16 %v3422, %v3421
        %v3442 = vpack.c.b16 %v3424, %v3423
        %v3443 = vpack.c.b16 %v3426, %v3425
        %v3444 = vpack.c.b16 %v3428, %v3427
        %v3446 = vshrl.u32 %v3429, 16
        %v3448 = vshll.u32 %v3429, 16
        %v3450 = vrot.slane %v3448, 1
        %v3451 = vor.u32 %v3446, %v3450
        %v3453 = vshrl.u32 %v3430, 16
        %v3455 = vshll.u32 %v3430, 16
        %v3457 = vrot.slane %v3455, 1
        %v3458 = vor.u32 %v3453, %v3457
        %v3460 = vshrl.u32 %v3431, 16
        %v3462 = vshll.u32 %v3431, 16
        %v3464 = vrot.slane %v3462, 1
        %v3465 = vor.u32 %v3460, %v3464
        %v3467 = vshrl.u32 %v3432, 16
        %v3469 = vshll.u32 %v3432, 16
        %v3471 = vrot.slane %v3469, 1
        %v3472 = vor.u32 %v3467, %v3471
        %v3474 = vshrl.u32 %v3433, 16
        %v3476 = vshll.u32 %v3433, 16
        %v3478 = vrot.slane %v3476, 1
        %v3479 = vor.u32 %v3474, %v3478
        %v3481 = vshrl.u32 %v3434, 16
        %v3483 = vshll.u32 %v3434, 16
        %v3485 = vrot.slane %v3483, 1
        %v3486 = vor.u32 %v3481, %v3485
        %v3488 = vshrl.u32 %v3435, 16
        %v3490 = vshll.u32 %v3435, 16
        %v3492 = vrot.slane %v3490, 1
        %v3493 = vor.u32 %v3488, %v3492
        %v3495 = vshrl.u32 %v3436, 16
        %v3497 = vshll.u32 %v3436, 16
        %v3499 = vrot.slane %v3497, 1
        %v3500 = vor.u32 %v3495, %v3499
        %v3502 = vshrl.u32 %v3437, 16
        %v3504 = vshll.u32 %v3437, 16
        %v3506 = vrot.slane %v3504, 1
        %v3507 = vor.u32 %v3502, %v3506
        %v3509 = vshrl.u32 %v3438, 16
        %v3511 = vshll.u32 %v3438, 16
        %v3513 = vrot.slane %v3511, 1
        %v3514 = vor.u32 %v3509, %v3513
        %v3516 = vshrl.u32 %v3439, 16
        %v3518 = vshll.u32 %v3439, 16
        %v3520 = vrot.slane %v3518, 1
        %v3521 = vor.u32 %v3516, %v3520
        %v3523 = vshrl.u32 %v3440, 16
        %v3525 = vshll.u32 %v3440, 16
        %v3527 = vrot.slane %v3525, 1
        %v3528 = vor.u32 %v3523, %v3527
        %v3530 = vshrl.u32 %v3441, 16
        %v3532 = vshll.u32 %v3441, 16
        %v3534 = vrot.slane %v3532, 1
        %v3535 = vor.u32 %v3530, %v3534
        %v3537 = vshrl.u32 %v3442, 16
        %v3539 = vshll.u32 %v3442, 16
        %v3541 = vrot.slane %v3539, 1
        %v3542 = vor.u32 %v3537, %v3541
        %v3544 = vshrl.u32 %v3443, 16
        %v3546 = vshll.u32 %v3443, 16
        %v3548 = vrot.slane %v3546, 1
        %v3549 = vor.u32 %v3544, %v3548
        %v3551 = vshrl.u32 %v3444, 16
        %v3553 = vshll.u32 %v3444, 16
        %v3555 = vrot.slane %v3553, 1
        %v3556 = vor.u32 %v3551, %v3555
        %3557 = vrot.lane.b32.xlu0 %v3451, 16
        %v3558 = vpop.permute.xlu0 %3557
        %3559 = vrot.lane.b32.xlu0 %v3458, 16
        %v3560 = vpop.permute.xlu0 %3559
        %3561 = vrot.lane.b32.xlu0 %v3465, 16
        %v3562 = vpop.permute.xlu0 %3561
        %3563 = vrot.lane.b32.xlu0 %v3472, 16
        %v3564 = vpop.permute.xlu0 %3563
        %3565 = vrot.lane.b32.xlu0 %v3479, 16
        %v3566 = vpop.permute.xlu0 %3565
        %3567 = vrot.lane.b32.xlu0 %v3486, 16
        %v3568 = vpop.permute.xlu0 %3567
        %3569 = vrot.lane.b32.xlu0 %v3493, 16
        %v3570 = vpop.permute.xlu0 %3569
        %3571 = vrot.lane.b32.xlu0 %v3500, 16
        %v3572 = vpop.permute.xlu0 %3571
        %3573 = vrot.lane.b32.xlu0 %v3507, 16
        %v3574 = vpop.permute.xlu0 %3573
        %3575 = vrot.lane.b32.xlu0 %v3514, 16
        %v3576 = vpop.permute.xlu0 %3575
        %3577 = vrot.lane.b32.xlu0 %v3521, 16
        %v3578 = vpop.permute.xlu0 %3577
        %3579 = vrot.lane.b32.xlu0 %v3528, 16
        %v3580 = vpop.permute.xlu0 %3579
        %3581 = vrot.lane.b32.xlu0 %v3535, 16
        %v3582 = vpop.permute.xlu0 %3581
        %3583 = vrot.lane.b32.xlu0 %v3542, 16
        %v3584 = vpop.permute.xlu0 %3583
        %3585 = vrot.lane.b32.xlu0 %v3549, 16
        %v3586 = vpop.permute.xlu0 %3585
        %3587 = vrot.lane.b32.xlu0 %v3556, 16
        %v3588 = vpop.permute.xlu0 %3587
        %v3605 = vunpack.c.l.b16 %v3349
        %v3606 = vunpack.c.l.b16 %v3350
        %v3607 = vunpack.c.l.b16 %v3351
        %v3608 = vunpack.c.l.b16 %v3352
        %v3609 = vunpack.c.l.b16 %v3353
        %v3610 = vunpack.c.l.b16 %v3354
        %v3611 = vunpack.c.l.b16 %v3355
        %v3612 = vunpack.c.l.b16 %v3356
        %v3613 = vunpack.c.l.b16 %v3357
        %v3614 = vunpack.c.l.b16 %v3358
        %v3615 = vunpack.c.l.b16 %v3359
        %v3616 = vunpack.c.l.b16 %v3360
        %v3617 = vunpack.c.l.b16 %v3361
        %v3618 = vunpack.c.l.b16 %v3362
        %v3619 = vunpack.c.l.b16 %v3363
        %v3620 = vunpack.c.l.b16 %v3364
        %v3621 = vpack.c.b16 %v3398, %v3605
        %v3622 = vpack.c.b16 %v3400, %v3606
        %v3623 = vpack.c.b16 %v3402, %v3607
        %v3624 = vpack.c.b16 %v3404, %v3608
        %v3625 = vpack.c.b16 %v3406, %v3609
        %v3626 = vpack.c.b16 %v3408, %v3610
        %v3627 = vpack.c.b16 %v3410, %v3611
        %v3628 = vpack.c.b16 %v3412, %v3612
        %v3629 = vpack.c.b16 %v3414, %v3613
        %v3630 = vpack.c.b16 %v3416, %v3614
        %v3631 = vpack.c.b16 %v3418, %v3615
        %v3632 = vpack.c.b16 %v3420, %v3616
        %v3633 = vpack.c.b16 %v3422, %v3617
        %v3634 = vpack.c.b16 %v3424, %v3618
        %v3635 = vpack.c.b16 %v3426, %v3619
        %v3636 = vpack.c.b16 %v3428, %v3620
        %v3637 = vrot.slane %v3621, 1
        %v3638 = vrot.slane %v3622, 1
        %v3639 = vrot.slane %v3623, 1
        %v3640 = vrot.slane %v3624, 1
        %v3641 = vrot.slane %v3625, 1
        %v3642 = vrot.slane %v3626, 1
        %v3643 = vrot.slane %v3627, 1
        %v3644 = vrot.slane %v3628, 1
        %v3645 = vrot.slane %v3629, 1
        %v3646 = vrot.slane %v3630, 1
        %v3647 = vrot.slane %v3631, 1
        %v3648 = vrot.slane %v3632, 1
        %v3649 = vrot.slane %v3633, 1
        %v3650 = vrot.slane %v3634, 1
        %v3651 = vrot.slane %v3635, 1
        %v3652 = vrot.slane %v3636, 1
        %3653 = vrot.lane.b32.xlu0 %v3637, 32
        %v3654 = vpop.permute.xlu0 %3653
        %3655 = vrot.lane.b32.xlu0 %v3638, 32
        %v3656 = vpop.permute.xlu0 %3655
        %3657 = vrot.lane.b32.xlu0 %v3639, 32
        %v3658 = vpop.permute.xlu0 %3657
        %3659 = vrot.lane.b32.xlu0 %v3640, 32
        %v3660 = vpop.permute.xlu0 %3659
        %3661 = vrot.lane.b32.xlu0 %v3641, 32
        %v3662 = vpop.permute.xlu0 %3661
        %3663 = vrot.lane.b32.xlu0 %v3642, 32
        %v3664 = vpop.permute.xlu0 %3663
        %3665 = vrot.lane.b32.xlu0 %v3643, 32
        %v3666 = vpop.permute.xlu0 %3665
        %3667 = vrot.lane.b32.xlu0 %v3644, 32
        %v3668 = vpop.permute.xlu0 %3667
        %3669 = vrot.lane.b32.xlu0 %v3645, 32
        %v3670 = vpop.permute.xlu0 %3669
        %3671 = vrot.lane.b32.xlu0 %v3646, 32
        %v3672 = vpop.permute.xlu0 %3671
        %3673 = vrot.lane.b32.xlu0 %v3647, 32
        %v3674 = vpop.permute.xlu0 %3673
        %3675 = vrot.lane.b32.xlu0 %v3648, 32
        %v3676 = vpop.permute.xlu0 %3675
        %3677 = vrot.lane.b32.xlu0 %v3649, 32
        %v3678 = vpop.permute.xlu0 %3677
        %3679 = vrot.lane.b32.xlu0 %v3650, 32
        %v3680 = vpop.permute.xlu0 %3679
        %3681 = vrot.lane.b32.xlu0 %v3651, 32
        %v3682 = vpop.permute.xlu0 %3681
        %3683 = vrot.lane.b32.xlu0 %v3652, 32
        %v3684 = vpop.permute.xlu0 %3683
        %v3687 = vsel %vm1252, %v3317, %v3558
        %v3690 = vsel %vm1252, %v3318, %v3560
        %v3693 = vsel %vm1252, %v3319, %v3562
        %v3696 = vsel %vm1252, %v3320, %v3564
        %v3699 = vsel %vm1252, %v3321, %v3566
        %v3702 = vsel %vm1252, %v3322, %v3568
        %v3705 = vsel %vm1252, %v3323, %v3570
        %v3708 = vsel %vm1252, %v3324, %v3572
        %v3711 = vsel %vm1252, %v3325, %v3574
        %v3714 = vsel %vm1252, %v3326, %v3576
        %v3717 = vsel %vm1252, %v3327, %v3578
        %v3720 = vsel %vm1252, %v3328, %v3580
        %v3723 = vsel %vm1252, %v3329, %v3582
        %v3726 = vsel %vm1252, %v3330, %v3584
        %v3729 = vsel %vm1252, %v3331, %v3586
        %v3732 = vsel %vm1252, %v3332, %v3588
        %v3734 = vsel %vm1301, %v3687, %v3654
        %v3736 = vsel %vm1301, %v3690, %v3656
        %v3738 = vsel %vm1301, %v3693, %v3658
        %v3740 = vsel %vm1301, %v3696, %v3660
        %v3742 = vsel %vm1301, %v3699, %v3662
        %v3744 = vsel %vm1301, %v3702, %v3664
        %v3746 = vsel %vm1301, %v3705, %v3666
        %v3748 = vsel %vm1301, %v3708, %v3668
        %v3750 = vsel %vm1301, %v3711, %v3670
        %v3752 = vsel %vm1301, %v3714, %v3672
        %v3754 = vsel %vm1301, %v3717, %v3674
        %v3756 = vsel %vm1301, %v3720, %v3676
        %v3758 = vsel %vm1301, %v3723, %v3678
        %v3760 = vsel %vm1301, %v3726, %v3680
        %v3762 = vsel %vm1301, %v3729, %v3682
        %v3764 = vsel %vm1301, %v3732, %v3684
        %v3765 = vld [vmem:[%s4] sm:$0xf]
        %v3766 = vld [vmem:[%s4 + $0x4] sm:$0xf]
        %v3767 = vld [vmem:[%s4 + $0x8] sm:$0xf]
        %v3768 = vld [vmem:[%s4 + $0xc] sm:$0xf]
        %v3769 = vld [vmem:[%s4 + $0x10] sm:$0xf]
        %v3770 = vld [vmem:[%s4 + $0x14] sm:$0xf]
        %v3771 = vld [vmem:[%s3220] sm:$0xf]
        %v3772 = vld [vmem:[%s3220 + $0x8] sm:$0xf]
        %v3773 = vld [vmem:[%s3220 + $0x10] sm:$0xf]
        %v3774 = vld [vmem:[%s3220 + $0x18] sm:$0xf]
        %v3775 = vld [vmem:[%s3220 + $0x20] sm:$0xf]
        %v3776 = vld [vmem:[%s3220 + $0x28] sm:$0xf]
        %v3777 = vld [vmem:[%s3220 + $0x30] sm:$0xf]
        %v3778 = vld [vmem:[%s3220 + $0x38] sm:$0xf]
        %v3779 = vld [vmem:[%s3220 + $0x50] sm:$0xf]
        %v3780 = vld [vmem:[%s3220 + $0x58] sm:$0xf]
        %v3781 = vld [vmem:[%s3220 + $0x60] sm:$0xf]
        %v3782 = vld [vmem:[%s3220 + $0x68] sm:$0xf]
        %v3783 = vld [vmem:[%s3220 + $0x70] sm:$0xf]
        %v3784 = vld [vmem:[%s3220 + $0x78] sm:$0xf]
        %v3785 = vld [vmem:[%s3220 + $0x80] sm:$0xf]
        %v3786 = vld [vmem:[%s3220 + $0x88] sm:$0xf]
        %v3787 = vld [vmem:[%s3220 + $0x4] sm:$0x1]
        %v3788 = vld [vmem:[%s3220 + $0xc] sm:$0x1]
        %v3789 = vld [vmem:[%s3220 + $0x14] sm:$0x1]
        %v3790 = vld [vmem:[%s3220 + $0x1c] sm:$0x1]
        %v3791 = vld [vmem:[%s3220 + $0x24] sm:$0x1]
        %v3792 = vld [vmem:[%s3220 + $0x2c] sm:$0x1]
        %v3793 = vld [vmem:[%s3220 + $0x34] sm:$0x1]
        %v3794 = vld [vmem:[%s3220 + $0x3c] sm:$0x1]
        %v3795 = vld [vmem:[%s3220 + $0x54] sm:$0x1]
        %v3796 = vld [vmem:[%s3220 + $0x5c] sm:$0x1]
        %v3797 = vld [vmem:[%s3220 + $0x64] sm:$0x1]
        %v3798 = vld [vmem:[%s3220 + $0x6c] sm:$0x1]
        %v3799 = vld [vmem:[%s3220 + $0x74] sm:$0x1]
        %v3800 = vld [vmem:[%s3220 + $0x7c] sm:$0x1]
        %v3801 = vld [vmem:[%s3220 + $0x84] sm:$0x1]
        %v3802 = vld [vmem:[%s3220 + $0x8c] sm:$0x1]
        %v3803 = vld [vmem:[%s3220] sm:$0xe]
        %v3804 = vld [vmem:[%s3220 + $0x8] sm:$0xe]
        %v3805 = vld [vmem:[%s3220 + $0x10] sm:$0xe]
        %v3806 = vld [vmem:[%s3220 + $0x18] sm:$0xe]
        %v3807 = vld [vmem:[%s3220 + $0x20] sm:$0xe]
        %v3808 = vld [vmem:[%s3220 + $0x28] sm:$0xe]
        %v3809 = vld [vmem:[%s3220 + $0x30] sm:$0xe]
        %v3810 = vld [vmem:[%s3220 + $0x38] sm:$0xe]
        %v3811 = vld [vmem:[%s3220 + $0x50] sm:$0xe]
        %v3812 = vld [vmem:[%s3220 + $0x58] sm:$0xe]
        %v3813 = vld [vmem:[%s3220 + $0x60] sm:$0xe]
        %v3814 = vld [vmem:[%s3220 + $0x68] sm:$0xe]
        %v3815 = vld [vmem:[%s3220 + $0x70] sm:$0xe]
        %v3816 = vld [vmem:[%s3220 + $0x78] sm:$0xe]
        %v3817 = vld [vmem:[%s3220 + $0x80] sm:$0xe]
        %v3818 = vld [vmem:[%s3220 + $0x88] sm:$0xe]
        %v3851 = vunpack.c.l.b16 %v3771
        %v3852 = vunpack.c.l.b16 %v3787
        %v3853 = vunpack.c.l.b16 %v3772
        %v3854 = vunpack.c.l.b16 %v3788
        %v3855 = vunpack.c.l.b16 %v3773
        %v3856 = vunpack.c.l.b16 %v3789
        %v3857 = vunpack.c.l.b16 %v3774
        %v3858 = vunpack.c.l.b16 %v3790
        %v3859 = vunpack.c.l.b16 %v3775
        %v3860 = vunpack.c.l.b16 %v3791
        %v3861 = vunpack.c.l.b16 %v3776
        %v3862 = vunpack.c.l.b16 %v3792
        %v3863 = vunpack.c.l.b16 %v3777
        %v3864 = vunpack.c.l.b16 %v3793
        %v3865 = vunpack.c.l.b16 %v3778
        %v3866 = vunpack.c.l.b16 %v3794
        %v3867 = vunpack.c.l.b16 %v3779
        %v3868 = vunpack.c.l.b16 %v3795
        %v3869 = vunpack.c.l.b16 %v3780
        %v3870 = vunpack.c.l.b16 %v3796
        %v3871 = vunpack.c.l.b16 %v3781
        %v3872 = vunpack.c.l.b16 %v3797
        %v3873 = vunpack.c.l.b16 %v3782
        %v3874 = vunpack.c.l.b16 %v3798
        %v3875 = vunpack.c.l.b16 %v3783
        %v3876 = vunpack.c.l.b16 %v3799
        %v3877 = vunpack.c.l.b16 %v3784
        %v3878 = vunpack.c.l.b16 %v3800
        %v3879 = vunpack.c.l.b16 %v3785
        %v3880 = vunpack.c.l.b16 %v3801
        %v3881 = vunpack.c.l.b16 %v3786
        %v3882 = vunpack.c.l.b16 %v3802
        %v3883 = vpack.c.b16 %v3852, %v3851
        %v3884 = vpack.c.b16 %v3854, %v3853
        %v3885 = vpack.c.b16 %v3856, %v3855
        %v3886 = vpack.c.b16 %v3858, %v3857
        %v3887 = vpack.c.b16 %v3860, %v3859
        %v3888 = vpack.c.b16 %v3862, %v3861
        %v3889 = vpack.c.b16 %v3864, %v3863
        %v3890 = vpack.c.b16 %v3866, %v3865
        %v3891 = vpack.c.b16 %v3868, %v3867
        %v3892 = vpack.c.b16 %v3870, %v3869
        %v3893 = vpack.c.b16 %v3872, %v3871
        %v3894 = vpack.c.b16 %v3874, %v3873
        %v3895 = vpack.c.b16 %v3876, %v3875
        %v3896 = vpack.c.b16 %v3878, %v3877
        %v3897 = vpack.c.b16 %v3880, %v3879
        %v3898 = vpack.c.b16 %v3882, %v3881
        %v3900 = vshrl.u32 %v3883, 16
        %v3902 = vshll.u32 %v3883, 16
        %v3904 = vrot.slane %v3902, 1
        %v3905 = vor.u32 %v3900, %v3904
        %v3907 = vshrl.u32 %v3884, 16
        %v3909 = vshll.u32 %v3884, 16
        %v3911 = vrot.slane %v3909, 1
        %v3912 = vor.u32 %v3907, %v3911
        %v3914 = vshrl.u32 %v3885, 16
        %v3916 = vshll.u32 %v3885, 16
        %v3918 = vrot.slane %v3916, 1
        %v3919 = vor.u32 %v3914, %v3918
        %v3921 = vshrl.u32 %v3886, 16
        %v3923 = vshll.u32 %v3886, 16
        %v3925 = vrot.slane %v3923, 1
        %v3926 = vor.u32 %v3921, %v3925
        %v3928 = vshrl.u32 %v3887, 16
        %v3930 = vshll.u32 %v3887, 16
        %v3932 = vrot.slane %v3930, 1
        %v3933 = vor.u32 %v3928, %v3932
        %v3935 = vshrl.u32 %v3888, 16
        %v3937 = vshll.u32 %v3888, 16
        %v3939 = vrot.slane %v3937, 1
        %v3940 = vor.u32 %v3935, %v3939
        %v3942 = vshrl.u32 %v3889, 16
        %v3944 = vshll.u32 %v3889, 16
        %v3946 = vrot.slane %v3944, 1
        %v3947 = vor.u32 %v3942, %v3946
        %v3949 = vshrl.u32 %v3890, 16
        %v3951 = vshll.u32 %v3890, 16
        %v3953 = vrot.slane %v3951, 1
        %v3954 = vor.u32 %v3949, %v3953
        %v3956 = vshrl.u32 %v3891, 16
        %v3958 = vshll.u32 %v3891, 16
        %v3960 = vrot.slane %v3958, 1
        %v3961 = vor.u32 %v3956, %v3960
        %v3963 = vshrl.u32 %v3892, 16
        %v3965 = vshll.u32 %v3892, 16
        %v3967 = vrot.slane %v3965, 1
        %v3968 = vor.u32 %v3963, %v3967
        %v3970 = vshrl.u32 %v3893, 16
        %v3972 = vshll.u32 %v3893, 16
        %v3974 = vrot.slane %v3972, 1
        %v3975 = vor.u32 %v3970, %v3974
        %v3977 = vshrl.u32 %v3894, 16
        %v3979 = vshll.u32 %v3894, 16
        %v3981 = vrot.slane %v3979, 1
        %v3982 = vor.u32 %v3977, %v3981
        %v3984 = vshrl.u32 %v3895, 16
        %v3986 = vshll.u32 %v3895, 16
        %v3988 = vrot.slane %v3986, 1
        %v3989 = vor.u32 %v3984, %v3988
        %v3991 = vshrl.u32 %v3896, 16
        %v3993 = vshll.u32 %v3896, 16
        %v3995 = vrot.slane %v3993, 1
        %v3996 = vor.u32 %v3991, %v3995
        %v3998 = vshrl.u32 %v3897, 16
        %v4000 = vshll.u32 %v3897, 16
        %v4002 = vrot.slane %v4000, 1
        %v4003 = vor.u32 %v3998, %v4002
        %v4005 = vshrl.u32 %v3898, 16
        %v4007 = vshll.u32 %v3898, 16
        %v4009 = vrot.slane %v4007, 1
        %v4010 = vor.u32 %v4005, %v4009
        %4011 = vrot.lane.b32.xlu0 %v3905, 16
        %v4012 = vpop.permute.xlu0 %4011
        %4013 = vrot.lane.b32.xlu0 %v3912, 16
        %v4014 = vpop.permute.xlu0 %4013
        %4015 = vrot.lane.b32.xlu0 %v3919, 16
        %v4016 = vpop.permute.xlu0 %4015
        %4017 = vrot.lane.b32.xlu0 %v3926, 16
        %v4018 = vpop.permute.xlu0 %4017
        %4019 = vrot.lane.b32.xlu0 %v3933, 16
        %v4020 = vpop.permute.xlu0 %4019
        %4021 = vrot.lane.b32.xlu0 %v3940, 16
        %v4022 = vpop.permute.xlu0 %4021
        %4023 = vrot.lane.b32.xlu0 %v3947, 16
        %v4024 = vpop.permute.xlu0 %4023
        %4025 = vrot.lane.b32.xlu0 %v3954, 16
        %v4026 = vpop.permute.xlu0 %4025
        %4027 = vrot.lane.b32.xlu0 %v3961, 16
        %v4028 = vpop.permute.xlu0 %4027
        %4029 = vrot.lane.b32.xlu0 %v3968, 16
        %v4030 = vpop.permute.xlu0 %4029
        %4031 = vrot.lane.b32.xlu0 %v3975, 16
        %v4032 = vpop.permute.xlu0 %4031
        %4033 = vrot.lane.b32.xlu0 %v3982, 16
        %v4034 = vpop.permute.xlu0 %4033
        %4035 = vrot.lane.b32.xlu0 %v3989, 16
        %v4036 = vpop.permute.xlu0 %4035
        %4037 = vrot.lane.b32.xlu0 %v3996, 16
        %v4038 = vpop.permute.xlu0 %4037
        %4039 = vrot.lane.b32.xlu0 %v4003, 16
        %v4040 = vpop.permute.xlu0 %4039
        %4041 = vrot.lane.b32.xlu0 %v4010, 16
        %v4042 = vpop.permute.xlu0 %4041
        %v4059 = vunpack.c.l.b16 %v3803
        %v4060 = vunpack.c.l.b16 %v3804
        %v4061 = vunpack.c.l.b16 %v3805
        %v4062 = vunpack.c.l.b16 %v3806
        %v4063 = vunpack.c.l.b16 %v3807
        %v4064 = vunpack.c.l.b16 %v3808
        %v4065 = vunpack.c.l.b16 %v3809
        %v4066 = vunpack.c.l.b16 %v3810
        %v4067 = vunpack.c.l.b16 %v3811
        %v4068 = vunpack.c.l.b16 %v3812
        %v4069 = vunpack.c.l.b16 %v3813
        %v4070 = vunpack.c.l.b16 %v3814
        %v4071 = vunpack.c.l.b16 %v3815
        %v4072 = vunpack.c.l.b16 %v3816
        %v4073 = vunpack.c.l.b16 %v3817
        %v4074 = vunpack.c.l.b16 %v3818
        %v4075 = vpack.c.b16 %v3852, %v4059
        %v4076 = vpack.c.b16 %v3854, %v4060
        %v4077 = vpack.c.b16 %v3856, %v4061
        %v4078 = vpack.c.b16 %v3858, %v4062
        %v4079 = vpack.c.b16 %v3860, %v4063
        %v4080 = vpack.c.b16 %v3862, %v4064
        %v4081 = vpack.c.b16 %v3864, %v4065
        %v4082 = vpack.c.b16 %v3866, %v4066
        %v4083 = vpack.c.b16 %v3868, %v4067
        %v4084 = vpack.c.b16 %v3870, %v4068
        %v4085 = vpack.c.b16 %v3872, %v4069
        %v4086 = vpack.c.b16 %v3874, %v4070
        %v4087 = vpack.c.b16 %v3876, %v4071
        %v4088 = vpack.c.b16 %v3878, %v4072
        %v4089 = vpack.c.b16 %v3880, %v4073
        %v4090 = vpack.c.b16 %v3882, %v4074
        %v4091 = vrot.slane %v4075, 1
        %v4092 = vrot.slane %v4076, 1
        %v4093 = vrot.slane %v4077, 1
        %v4094 = vrot.slane %v4078, 1
        %v4095 = vrot.slane %v4079, 1
        %v4096 = vrot.slane %v4080, 1
        %v4097 = vrot.slane %v4081, 1
        %v4098 = vrot.slane %v4082, 1
        %v4099 = vrot.slane %v4083, 1
        %v4100 = vrot.slane %v4084, 1
        %v4101 = vrot.slane %v4085, 1
        %v4102 = vrot.slane %v4086, 1
        %v4103 = vrot.slane %v4087, 1
        %v4104 = vrot.slane %v4088, 1
        %v4105 = vrot.slane %v4089, 1
        %v4106 = vrot.slane %v4090, 1
        %4107 = vrot.lane.b32.xlu0 %v4091, 32
        %v4108 = vpop.permute.xlu0 %4107
        %4109 = vrot.lane.b32.xlu0 %v4092, 32
        %v4110 = vpop.permute.xlu0 %4109
        %4111 = vrot.lane.b32.xlu0 %v4093, 32
        %v4112 = vpop.permute.xlu0 %4111
        %4113 = vrot.lane.b32.xlu0 %v4094, 32
        %v4114 = vpop.permute.xlu0 %4113
        %4115 = vrot.lane.b32.xlu0 %v4095, 32
        %v4116 = vpop.permute.xlu0 %4115
        %4117 = vrot.lane.b32.xlu0 %v4096, 32
        %v4118 = vpop.permute.xlu0 %4117
        %4119 = vrot.lane.b32.xlu0 %v4097, 32
        %v4120 = vpop.permute.xlu0 %4119
        %4121 = vrot.lane.b32.xlu0 %v4098, 32
        %v4122 = vpop.permute.xlu0 %4121
        %4123 = vrot.lane.b32.xlu0 %v4099, 32
        %v4124 = vpop.permute.xlu0 %4123
        %4125 = vrot.lane.b32.xlu0 %v4100, 32
        %v4126 = vpop.permute.xlu0 %4125
        %4127 = vrot.lane.b32.xlu0 %v4101, 32
        %v4128 = vpop.permute.xlu0 %4127
        %4129 = vrot.lane.b32.xlu0 %v4102, 32
        %v4130 = vpop.permute.xlu0 %4129
        %4131 = vrot.lane.b32.xlu0 %v4103, 32
        %v4132 = vpop.permute.xlu0 %4131
        %4133 = vrot.lane.b32.xlu0 %v4104, 32
        %v4134 = vpop.permute.xlu0 %4133
        %4135 = vrot.lane.b32.xlu0 %v4105, 32
        %v4136 = vpop.permute.xlu0 %4135
        %4137 = vrot.lane.b32.xlu0 %v4106, 32
        %v4138 = vpop.permute.xlu0 %4137
        %v4141 = vsel %vm1252, %v3771, %v4012
        %v4144 = vsel %vm1252, %v3772, %v4014
        %v4147 = vsel %vm1252, %v3773, %v4016
        %v4150 = vsel %vm1252, %v3774, %v4018
        %v4153 = vsel %vm1252, %v3775, %v4020
        %v4156 = vsel %vm1252, %v3776, %v4022
        %v4159 = vsel %vm1252, %v3777, %v4024
        %v4162 = vsel %vm1252, %v3778, %v4026
        %v4165 = vsel %vm1252, %v3779, %v4028
        %v4168 = vsel %vm1252, %v3780, %v4030
        %v4171 = vsel %vm1252, %v3781, %v4032
        %v4174 = vsel %vm1252, %v3782, %v4034
        %v4177 = vsel %vm1252, %v3783, %v4036
        %v4180 = vsel %vm1252, %v3784, %v4038
        %v4183 = vsel %vm1252, %v3785, %v4040
        %v4186 = vsel %vm1252, %v3786, %v4042
        %v4188 = vsel %vm1301, %v4141, %v4108
        %v4190 = vsel %vm1301, %v4144, %v4110
        %v4192 = vsel %vm1301, %v4147, %v4112
        %v4194 = vsel %vm1301, %v4150, %v4114
        %v4196 = vsel %vm1301, %v4153, %v4116
        %v4198 = vsel %vm1301, %v4156, %v4118
        %v4200 = vsel %vm1301, %v4159, %v4120
        %v4202 = vsel %vm1301, %v4162, %v4122
        %v4204 = vsel %vm1301, %v4165, %v4124
        %v4206 = vsel %vm1301, %v4168, %v4126
        %v4208 = vsel %vm1301, %v4171, %v4128
        %v4210 = vsel %vm1301, %v4174, %v4130
        %v4212 = vsel %vm1301, %v4177, %v4132
        %v4214 = vsel %vm1301, %v4180, %v4134
        %v4216 = vsel %vm1301, %v4183, %v4136
        %v4218 = vsel %vm1301, %v4186, %v4138
        %s4219 = scalar_lea.vmem %s4, 24
        %v4220 = vld [vmem:[%s4219] sm:$0xf]
        %v4221 = vld [vmem:[%s4219 + $0x4] sm:$0xf]
        %v4222 = vld [vmem:[%s4219 + $0x8] sm:$0xf]
        %v4223 = vld [vmem:[%s4219 + $0xc] sm:$0xf]
        %v4224 = vld [vmem:[%s4219 + $0x10] sm:$0xf]
        %v4225 = vld [vmem:[%s4219 + $0x14] sm:$0xf]
        %v4242 = vunpack.c.l.b16 %v4188
        %v4243 = vunpack.c.l.b16 %v4190
        %v4244 = vunpack.c.l.b16 %v4192
        %v4245 = vunpack.c.l.b16 %v4194
        %v4246 = vunpack.c.l.b16 %v4196
        %v4247 = vunpack.c.l.b16 %v4198
        %v4248 = vunpack.c.l.b16 %v4200
        %v4249 = vunpack.c.l.b16 %v4202
        %v4250 = vunpack.c.l.b16 %v4204
        %v4251 = vunpack.c.l.b16 %v4206
        %v4252 = vunpack.c.l.b16 %v4208
        %v4253 = vunpack.c.l.b16 %v4210
        %v4254 = vunpack.c.l.b16 %v4212
        %v4255 = vunpack.c.l.b16 %v4214
        %v4256 = vunpack.c.l.b16 %v4216
        %v4257 = vunpack.c.l.b16 %v4218
        %v4258 = vpack.c.b16 %v4243, %v4242
        %v4259 = vpack.c.b16 %v4245, %v4244
        %v4260 = vpack.c.b16 %v4247, %v4246
        %v4261 = vpack.c.b16 %v4249, %v4248
        %v4262 = vpack.c.b16 %v4251, %v4250
        %v4263 = vpack.c.b16 %v4253, %v4252
        %v4264 = vpack.c.b16 %v4255, %v4254
        %v4265 = vpack.c.b16 %v4257, %v4256
        %v4272 = vunpack.c.l.b16 %v4220
        %v4273 = vunpack.c.l.b16 %v4221
        %v4274 = vunpack.c.l.b16 %v4222
        %v4275 = vunpack.c.l.b16 %v4223
        %v4276 = vunpack.c.l.b16 %v4224
        %v4277 = vunpack.c.l.b16 %v4225
        %v4278 = vpack.c.b16 %v4273, %v4272
        %v4279 = vpack.c.b16 %v4275, %v4274
        %v4280 = vpack.c.b16 %v4277, %v4276
        %v4285 = vsel %vm1853, %v4258, 0
        %v4288 = vsel %vm1853, %v4259, 0
        %v4291 = vsel %vm1853, %v4260, 0
        %v4294 = vsel %vm1853, %v4261, 0
        %v4297 = vsel %vm1853, %v4262, 0
        %v4300 = vsel %vm1853, %v4263, 0
        %v4303 = vsel %vm1853, %v4264, 0
        %v4306 = vsel %vm1853, %v4265, 0
        %4308 = vmatprep.subr.bf16.mxu0 0
        %4309 = vmatpush1.bf16.msra.mxu0 %v4278
        %4310 = vmatprep.subr.bf16.mxu0 0
        %4311 = vmatpush1.bf16.msra.mxu0 %v4279
        %4312 = vmatprep.subr.bf16.mxu0 0
        %4313 = vmatpush1.bf16.msra.mxu0 %v4280
        %4314 = vmatprep.subr.bf16.mxu0 0
        %4315 = vmatpush1.bf16.msra.mxu0 0
        %4316 = vmatprep.subr.bf16.mxu0 0
        %4317 = vmatpush1.bf16.msra.mxu0 0
        %4318 = vmatprep.subr.bf16.mxu0 0
        %4319 = vmatpush1.bf16.msra.mxu0 0
        %4320 = vmatprep.subr.bf16.mxu0 0
        %4321 = vmatpush1.bf16.msra.mxu0 0
        %4322 = vmatprep.subr.bf16.mxu0 0
        %4323 = vmatpush1.bf16.msra.mxu0 0
        %4324 = vmatprep.subr.bf16.mxu0 0
        %4325 = vmatpush1.bf16.msra.mxu0 0
        %4326 = vmatprep.subr.bf16.mxu0 0
        %4327 = vmatpush1.bf16.msra.mxu0 0
        %4328 = vmatprep.subr.bf16.mxu0 0
        %4329 = vmatpush1.bf16.msra.mxu0 0
        %4330 = vmatprep.subr.bf16.mxu0 0
        %4331 = vmatpush1.bf16.msra.mxu0 0
        %4332 = vmatprep.subr.bf16.mxu0 0
        %4333 = vmatpush1.bf16.msra.mxu0 0
        %4334 = vmatprep.subr.bf16.mxu0 0
        %4335 = vmatpush1.bf16.msra.mxu0 0
        %4336 = vmatprep.subr.bf16.mxu0 0
        %4337 = vmatpush1.bf16.msra.mxu0 0
        %4338 = vmatprep.subr.bf16.mxu0 0
        %4339 = vmatpush1.bf16.msra.mxu0 0
        %4340 = vmatprep.mubr.bf16.mxu0 0
        %4341 = vmatmul.mubr.bf16.gmra.mrb[0].mxu0 %v4285
        %v4342 = vpop.f32.mrb[0].mxu0
        %v4343 = vadd.f32 0.0, %v4342
        %v4344 = vpop.f32.mrb[0].mxu0
        %v4345 = vpop.f32.mrb[0].mxu0
        %v4346 = vadd.f32 0.0, %v4345
        %v4347 = vpop.f32.mrb[0].mxu0
        %4348 = vmatprep.mubr.bf16.mxu0 0
        %4349 = vmatmul.mubr.bf16.gmra.mrb[0].mxu0 %v4288
        %v4350 = vpop.f32.mrb[0].mxu0
        %v4351 = vadd.f32 0.0, %v4350
        %v4352 = vpop.f32.mrb[0].mxu0
        %v4353 = vpop.f32.mrb[0].mxu0
        %v4354 = vadd.f32 0.0, %v4353
        %v4355 = vpop.f32.mrb[0].mxu0
        %4356 = vmatprep.mubr.bf16.mxu0 0
        %4357 = vmatmul.mubr.bf16.gmra.mrb[0].mxu0 %v4291
        %v4358 = vpop.f32.mrb[0].mxu0
        %v4359 = vadd.f32 0.0, %v4358
        %v4360 = vpop.f32.mrb[0].mxu0
        %v4361 = vpop.f32.mrb[0].mxu0
        %v4362 = vadd.f32 0.0, %v4361
        %v4363 = vpop.f32.mrb[0].mxu0
        %4364 = vmatprep.mubr.bf16.mxu0 0
        %4365 = vmatmul.mubr.bf16.gmra.mrb[0].mxu0 %v4294
        %v4366 = vpop.f32.mrb[0].mxu0
        %v4367 = vadd.f32 0.0, %v4366
        %v4368 = vpop.f32.mrb[0].mxu0
        %v4369 = vpop.f32.mrb[0].mxu0
        %v4370 = vadd.f32 0.0, %v4369
        %v4371 = vpop.f32.mrb[0].mxu0
        %4372 = vmatprep.mubr.bf16.mxu0 0
        %4373 = vmatmul.mubr.bf16.gmra.mrb[0].mxu0 %v4297
        %v4374 = vpop.f32.mrb[0].mxu0
        %v4375 = vadd.f32 0.0, %v4374
        %v4376 = vpop.f32.mrb[0].mxu0
        %v4377 = vpop.f32.mrb[0].mxu0
        %v4378 = vadd.f32 0.0, %v4377
        %v4379 = vpop.f32.mrb[0].mxu0
        %4380 = vmatprep.mubr.bf16.mxu0 0
        %4381 = vmatmul.mubr.bf16.gmra.mrb[0].mxu0 %v4300
        %v4382 = vpop.f32.mrb[0].mxu0
        %v4383 = vadd.f32 0.0, %v4382
        %v4384 = vpop.f32.mrb[0].mxu0
        %v4385 = vpop.f32.mrb[0].mxu0
        %v4386 = vadd.f32 0.0, %v4385
        %v4387 = vpop.f32.mrb[0].mxu0
        %4388 = vmatprep.mubr.bf16.mxu0 0
        %4389 = vmatmul.mubr.bf16.gmra.mrb[0].mxu0 %v4303
        %v4390 = vpop.f32.mrb[0].mxu0
        %v4391 = vadd.f32 0.0, %v4390
        %v4392 = vpop.f32.mrb[0].mxu0
        %v4393 = vpop.f32.mrb[0].mxu0
        %v4394 = vadd.f32 0.0, %v4393
        %v4395 = vpop.f32.mrb[0].mxu0
        %4396 = vmatprep.mubr.bf16.mxu0 0
        %4397 = vmatmul.mubr.bf16.gmra.mrb[0].mxu0 %v4306
        %v4398 = vpop.f32.mrb[0].mxu0
        %v4399 = vadd.f32 0.0, %v4398
        %v4400 = vpop.f32.mrb[0].mxu0
        %v4401 = vpop.f32.mrb[0].mxu0
        %v4402 = vadd.f32 0.0, %v4401
        %v4403 = vpop.f32.mrb[0].mxu0
        %4404 = vdwg.mxu0
        %v4421 = vunpack.c.l.b16 %v3734
        %v4422 = vunpack.c.l.b16 %v3736
        %v4423 = vunpack.c.l.b16 %v3738
        %v4424 = vunpack.c.l.b16 %v3740
        %v4425 = vunpack.c.l.b16 %v3742
        %v4426 = vunpack.c.l.b16 %v3744
        %v4427 = vunpack.c.l.b16 %v3746
        %v4428 = vunpack.c.l.b16 %v3748
        %v4429 = vunpack.c.l.b16 %v3750
        %v4430 = vunpack.c.l.b16 %v3752
        %v4431 = vunpack.c.l.b16 %v3754
        %v4432 = vunpack.c.l.b16 %v3756
        %v4433 = vunpack.c.l.b16 %v3758
        %v4434 = vunpack.c.l.b16 %v3760
        %v4435 = vunpack.c.l.b16 %v3762
        %v4436 = vunpack.c.l.b16 %v3764
        %v4437 = vpack.c.b16 %v4422, %v4421
        %v4438 = vpack.c.b16 %v4424, %v4423
        %v4439 = vpack.c.b16 %v4426, %v4425
        %v4440 = vpack.c.b16 %v4428, %v4427
        %v4441 = vpack.c.b16 %v4430, %v4429
        %v4442 = vpack.c.b16 %v4432, %v4431
        %v4443 = vpack.c.b16 %v4434, %v4433
        %v4444 = vpack.c.b16 %v4436, %v4435
        %v4451 = vunpack.c.l.b16 %v3765
        %v4452 = vunpack.c.l.b16 %v3766
        %v4453 = vunpack.c.l.b16 %v3767
        %v4454 = vunpack.c.l.b16 %v3768
        %v4455 = vunpack.c.l.b16 %v3769
        %v4456 = vunpack.c.l.b16 %v3770
        %v4457 = vpack.c.b16 %v4452, %v4451
        %v4458 = vpack.c.b16 %v4454, %v4453
        %v4459 = vpack.c.b16 %v4456, %v4455
        %v4464 = vsel %vm1853, %v4437, 0
        %v4467 = vsel %vm1853, %v4438, 0
        %v4470 = vsel %vm1853, %v4439, 0
        %v4473 = vsel %vm1853, %v4440, 0
        %v4476 = vsel %vm1853, %v4441, 0
        %v4479 = vsel %vm1853, %v4442, 0
        %v4482 = vsel %vm1853, %v4443, 0
        %v4485 = vsel %vm1853, %v4444, 0
        %4487 = vmatprep.subr.bf16.mxu0 0
        %4488 = vmatpush1.bf16.msra.mxu0 %v4457
        %4489 = vmatprep.subr.bf16.mxu0 0
        %4490 = vmatpush1.bf16.msra.mxu0 %v4458
        %4491 = vmatprep.subr.bf16.mxu0 0
        %4492 = vmatpush1.bf16.msra.mxu0 %v4459
        %4493 = vmatprep.subr.bf16.mxu0 0
        %4494 = vmatpush1.bf16.msra.mxu0 0
        %4495 = vmatprep.subr.bf16.mxu0 0
        %4496 = vmatpush1.bf16.msra.mxu0 0
        %4497 = vmatprep.subr.bf16.mxu0 0
        %4498 = vmatpush1.bf16.msra.mxu0 0
        %4499 = vmatprep.subr.bf16.mxu0 0
        %4500 = vmatpush1.bf16.msra.mxu0 0
        %4501 = vmatprep.subr.bf16.mxu0 0
        %4502 = vmatpush1.bf16.msra.mxu0 0
        %4503 = vmatprep.subr.bf16.mxu0 0
        %4504 = vmatpush1.bf16.msra.mxu0 0
        %4505 = vmatprep.subr.bf16.mxu0 0
        %4506 = vmatpush1.bf16.msra.mxu0 0
        %4507 = vmatprep.subr.bf16.mxu0 0
        %4508 = vmatpush1.bf16.msra.mxu0 0
        %4509 = vmatprep.subr.bf16.mxu0 0
        %4510 = vmatpush1.bf16.msra.mxu0 0
        %4511 = vmatprep.subr.bf16.mxu0 0
        %4512 = vmatpush1.bf16.msra.mxu0 0
        %4513 = vmatprep.subr.bf16.mxu0 0
        %4514 = vmatpush1.bf16.msra.mxu0 0
        %4515 = vmatprep.subr.bf16.mxu0 0
        %4516 = vmatpush1.bf16.msra.mxu0 0
        %4517 = vmatprep.subr.bf16.mxu0 0
        %4518 = vmatpush1.bf16.msra.mxu0 0
        %4519 = vmatprep.mubr.bf16.mxu0 0
        %4520 = vmatmul.mubr.bf16.gmra.mrb[0].mxu0 %v4464
        %v4521 = vpop.f32.mrb[0].mxu0
        %v4522 = vadd.f32 %v4343, %v4521
        %v4523 = vpop.f32.mrb[0].mxu0
        %v4524 = vpop.f32.mrb[0].mxu0
        %v4525 = vadd.f32 %v4346, %v4524
        %v4526 = vpop.f32.mrb[0].mxu0
        %4527 = vmatprep.mubr.bf16.mxu0 0
        %4528 = vmatmul.mubr.bf16.gmra.mrb[0].mxu0 %v4467
        %v4529 = vpop.f32.mrb[0].mxu0
        %v4530 = vadd.f32 %v4351, %v4529
        %v4531 = vpop.f32.mrb[0].mxu0
        %v4532 = vpop.f32.mrb[0].mxu0
        %v4533 = vadd.f32 %v4354, %v4532
        %v4534 = vpop.f32.mrb[0].mxu0
        %4535 = vmatprep.mubr.bf16.mxu0 0
        %4536 = vmatmul.mubr.bf16.gmra.mrb[0].mxu0 %v4470
        %v4537 = vpop.f32.mrb[0].mxu0
        %v4538 = vadd.f32 %v4359, %v4537
        %v4539 = vpop.f32.mrb[0].mxu0
        %v4540 = vpop.f32.mrb[0].mxu0
        %v4541 = vadd.f32 %v4362, %v4540
        %v4542 = vpop.f32.mrb[0].mxu0
        %4543 = vmatprep.mubr.bf16.mxu0 0
        %4544 = vmatmul.mubr.bf16.gmra.mrb[0].mxu0 %v4473
        %v4545 = vpop.f32.mrb[0].mxu0
        %v4546 = vadd.f32 %v4367, %v4545
        %v4547 = vpop.f32.mrb[0].mxu0
        %v4548 = vpop.f32.mrb[0].mxu0
        %v4549 = vadd.f32 %v4370, %v4548
        %v4550 = vpop.f32.mrb[0].mxu0
        %4551 = vmatprep.mubr.bf16.mxu0 0
        %4552 = vmatmul.mubr.bf16.gmra.mrb[0].mxu0 %v4476
        %v4553 = vpop.f32.mrb[0].mxu0
        %v4554 = vadd.f32 %v4375, %v4553
        %v4555 = vpop.f32.mrb[0].mxu0
        %v4556 = vpop.f32.mrb[0].mxu0
        %v4557 = vadd.f32 %v4378, %v4556
        %v4558 = vpop.f32.mrb[0].mxu0
        %4559 = vmatprep.mubr.bf16.mxu0 0
        %4560 = vmatmul.mubr.bf16.gmra.mrb[0].mxu0 %v4479
        %v4561 = vpop.f32.mrb[0].mxu0
        %v4562 = vadd.f32 %v4383, %v4561
        %v4563 = vpop.f32.mrb[0].mxu0
        %v4564 = vpop.f32.mrb[0].mxu0
        %v4565 = vadd.f32 %v4386, %v4564
        %v4566 = vpop.f32.mrb[0].mxu0
        %4567 = vmatprep.mubr.bf16.mxu0 0
        %4568 = vmatmul.mubr.bf16.gmra.mrb[0].mxu0 %v4482
        %v4569 = vpop.f32.mrb[0].mxu0
        %v4570 = vadd.f32 %v4391, %v4569
        %v4571 = vpop.f32.mrb[0].mxu0
        %v4572 = vpop.f32.mrb[0].mxu0
        %v4573 = vadd.f32 %v4394, %v4572
        %v4574 = vpop.f32.mrb[0].mxu0
        %4575 = vmatprep.mubr.bf16.mxu0 0
        %4576 = vmatmul.mubr.bf16.gmra.mrb[0].mxu0 %v4485
        %v4577 = vpop.f32.mrb[0].mxu0
        %v4578 = vadd.f32 %v4399, %v4577
        %v4579 = vpop.f32.mrb[0].mxu0
        %v4580 = vpop.f32.mrb[0].mxu0
        %v4581 = vadd.f32 %v4402, %v4580
        %v4582 = vpop.f32.mrb[0].mxu0
        %4583 = vdwg.mxu0
        %s4584 = scalar_lea.vmem [#allocation3], 16
        %v4585 = vld [vmem:[%s4584] sm:$0xf]
        %v4586 = vld [vmem:[%s4584 + $0x8] sm:$0xf]
        %v4587 = vld [vmem:[%s4584 + $0x10] sm:$0xf]
        %v4588 = vld [vmem:[%s4584 + $0x18] sm:$0xf]
        %v4589 = vld [vmem:[%s4584 + $0x20] sm:$0xf]
        %v4590 = vld [vmem:[%s4584 + $0x28] sm:$0xf]
        %v4591 = vld [vmem:[%s4584 + $0x30] sm:$0xf]
        %v4592 = vld [vmem:[%s4584 + $0x38] sm:$0xf]
        %v4593 = vld [vmem:[%s4584 + $0x50] sm:$0xf]
        %v4594 = vld [vmem:[%s4584 + $0x58] sm:$0xf]
        %v4595 = vld [vmem:[%s4584 + $0x60] sm:$0xf]
        %v4596 = vld [vmem:[%s4584 + $0x68] sm:$0xf]
        %v4597 = vld [vmem:[%s4584 + $0x70] sm:$0xf]
        %v4598 = vld [vmem:[%s4584 + $0x78] sm:$0xf]
        %v4599 = vld [vmem:[%s4584 + $0x80] sm:$0xf]
        %v4600 = vld [vmem:[%s4584 + $0x88] sm:$0xf]
        %v4601 = vld [vmem:[%s4584 + $0x4] sm:$0x1]
        %v4602 = vld [vmem:[%s4584 + $0xc] sm:$0x1]
        %v4603 = vld [vmem:[%s4584 + $0x14] sm:$0x1]
        %v4604 = vld [vmem:[%s4584 + $0x1c] sm:$0x1]
        %v4605 = vld [vmem:[%s4584 + $0x24] sm:$0x1]
        %v4606 = vld [vmem:[%s4584 + $0x2c] sm:$0x1]
        %v4607 = vld [vmem:[%s4584 + $0x34] sm:$0x1]
        %v4608 = vld [vmem:[%s4584 + $0x3c] sm:$0x1]
        %v4609 = vld [vmem:[%s4584 + $0x54] sm:$0x1]
        %v4610 = vld [vmem:[%s4584 + $0x5c] sm:$0x1]
        %v4611 = vld [vmem:[%s4584 + $0x64] sm:$0x1]
        %v4612 = vld [vmem:[%s4584 + $0x6c] sm:$0x1]
        %v4613 = vld [vmem:[%s4584 + $0x74] sm:$0x1]
        %v4614 = vld [vmem:[%s4584 + $0x7c] sm:$0x1]
        %v4615 = vld [vmem:[%s4584 + $0x84] sm:$0x1]
        %v4616 = vld [vmem:[%s4584 + $0x8c] sm:$0x1]
        %v4617 = vld [vmem:[%s4584] sm:$0xe]
        %v4618 = vld [vmem:[%s4584 + $0x8] sm:$0xe]
        %v4619 = vld [vmem:[%s4584 + $0x10] sm:$0xe]
        %v4620 = vld [vmem:[%s4584 + $0x18] sm:$0xe]
        %v4621 = vld [vmem:[%s4584 + $0x20] sm:$0xe]
        %v4622 = vld [vmem:[%s4584 + $0x28] sm:$0xe]
        %v4623 = vld [vmem:[%s4584 + $0x30] sm:$0xe]
        %v4624 = vld [vmem:[%s4584 + $0x38] sm:$0xe]
        %v4625 = vld [vmem:[%s4584 + $0x50] sm:$0xe]
        %v4626 = vld [vmem:[%s4584 + $0x58] sm:$0xe]
        %v4627 = vld [vmem:[%s4584 + $0x60] sm:$0xe]
        %v4628 = vld [vmem:[%s4584 + $0x68] sm:$0xe]
        %v4629 = vld [vmem:[%s4584 + $0x70] sm:$0xe]
        %v4630 = vld [vmem:[%s4584 + $0x78] sm:$0xe]
        %v4631 = vld [vmem:[%s4584 + $0x80] sm:$0xe]
        %v4632 = vld [vmem:[%s4584 + $0x88] sm:$0xe]
        %v4665 = vunpack.c.l.b16 %v4585
        %v4666 = vunpack.c.l.b16 %v4601
        %v4667 = vunpack.c.l.b16 %v4586
        %v4668 = vunpack.c.l.b16 %v4602
        %v4669 = vunpack.c.l.b16 %v4587
        %v4670 = vunpack.c.l.b16 %v4603
        %v4671 = vunpack.c.l.b16 %v4588
        %v4672 = vunpack.c.l.b16 %v4604
        %v4673 = vunpack.c.l.b16 %v4589
        %v4674 = vunpack.c.l.b16 %v4605
        %v4675 = vunpack.c.l.b16 %v4590
        %v4676 = vunpack.c.l.b16 %v4606
        %v4677 = vunpack.c.l.b16 %v4591
        %v4678 = vunpack.c.l.b16 %v4607
        %v4679 = vunpack.c.l.b16 %v4592
        %v4680 = vunpack.c.l.b16 %v4608
        %v4681 = vunpack.c.l.b16 %v4593
        %v4682 = vunpack.c.l.b16 %v4609
        %v4683 = vunpack.c.l.b16 %v4594
        %v4684 = vunpack.c.l.b16 %v4610
        %v4685 = vunpack.c.l.b16 %v4595
        %v4686 = vunpack.c.l.b16 %v4611
        %v4687 = vunpack.c.l.b16 %v4596
        %v4688 = vunpack.c.l.b16 %v4612
        %v4689 = vunpack.c.l.b16 %v4597
        %v4690 = vunpack.c.l.b16 %v4613
        %v4691 = vunpack.c.l.b16 %v4598
        %v4692 = vunpack.c.l.b16 %v4614
        %v4693 = vunpack.c.l.b16 %v4599
        %v4694 = vunpack.c.l.b16 %v4615
        %v4695 = vunpack.c.l.b16 %v4600
        %v4696 = vunpack.c.l.b16 %v4616
        %v4697 = vpack.c.b16 %v4666, %v4665
        %v4698 = vpack.c.b16 %v4668, %v4667
        %v4699 = vpack.c.b16 %v4670, %v4669
        %v4700 = vpack.c.b16 %v4672, %v4671
        %v4701 = vpack.c.b16 %v4674, %v4673
        %v4702 = vpack.c.b16 %v4676, %v4675
        %v4703 = vpack.c.b16 %v4678, %v4677
        %v4704 = vpack.c.b16 %v4680, %v4679
        %v4705 = vpack.c.b16 %v4682, %v4681
        %v4706 = vpack.c.b16 %v4684, %v4683
        %v4707 = vpack.c.b16 %v4686, %v4685
        %v4708 = vpack.c.b16 %v4688, %v4687
        %v4709 = vpack.c.b16 %v4690, %v4689
        %v4710 = vpack.c.b16 %v4692, %v4691
        %v4711 = vpack.c.b16 %v4694, %v4693
        %v4712 = vpack.c.b16 %v4696, %v4695
        %v4714 = vshrl.u32 %v4697, 16
        %v4716 = vshll.u32 %v4697, 16
        %v4718 = vrot.slane %v4716, 1
        %v4719 = vor.u32 %v4714, %v4718
        %v4721 = vshrl.u32 %v4698, 16
        %v4723 = vshll.u32 %v4698, 16
        %v4725 = vrot.slane %v4723, 1
        %v4726 = vor.u32 %v4721, %v4725
        %v4728 = vshrl.u32 %v4699, 16
        %v4730 = vshll.u32 %v4699, 16
        %v4732 = vrot.slane %v4730, 1
        %v4733 = vor.u32 %v4728, %v4732
        %v4735 = vshrl.u32 %v4700, 16
        %v4737 = vshll.u32 %v4700, 16
        %v4739 = vrot.slane %v4737, 1
        %v4740 = vor.u32 %v4735, %v4739
        %v4742 = vshrl.u32 %v4701, 16
        %v4744 = vshll.u32 %v4701, 16
        %v4746 = vrot.slane %v4744, 1
        %v4747 = vor.u32 %v4742, %v4746
        %v4749 = vshrl.u32 %v4702, 16
        %v4751 = vshll.u32 %v4702, 16
        %v4753 = vrot.slane %v4751, 1
        %v4754 = vor.u32 %v4749, %v4753
        %v4756 = vshrl.u32 %v4703, 16
        %v4758 = vshll.u32 %v4703, 16
        %v4760 = vrot.slane %v4758, 1
        %v4761 = vor.u32 %v4756, %v4760
        %v4763 = vshrl.u32 %v4704, 16
        %v4765 = vshll.u32 %v4704, 16
        %v4767 = vrot.slane %v4765, 1
        %v4768 = vor.u32 %v4763, %v4767
        %v4770 = vshrl.u32 %v4705, 16
        %v4772 = vshll.u32 %v4705, 16
        %v4774 = vrot.slane %v4772, 1
        %v4775 = vor.u32 %v4770, %v4774
        %v4777 = vshrl.u32 %v4706, 16
        %v4779 = vshll.u32 %v4706, 16
        %v4781 = vrot.slane %v4779, 1
        %v4782 = vor.u32 %v4777, %v4781
        %v4784 = vshrl.u32 %v4707, 16
        %v4786 = vshll.u32 %v4707, 16
        %v4788 = vrot.slane %v4786, 1
        %v4789 = vor.u32 %v4784, %v4788
        %v4791 = vshrl.u32 %v4708, 16
        %v4793 = vshll.u32 %v4708, 16
        %v4795 = vrot.slane %v4793, 1
        %v4796 = vor.u32 %v4791, %v4795
        %v4798 = vshrl.u32 %v4709, 16
        %v4800 = vshll.u32 %v4709, 16
        %v4802 = vrot.slane %v4800, 1
        %v4803 = vor.u32 %v4798, %v4802
        %v4805 = vshrl.u32 %v4710, 16
        %v4807 = vshll.u32 %v4710, 16
        %v4809 = vrot.slane %v4807, 1
        %v4810 = vor.u32 %v4805, %v4809
        %v4812 = vshrl.u32 %v4711, 16
        %v4814 = vshll.u32 %v4711, 16
        %v4816 = vrot.slane %v4814, 1
        %v4817 = vor.u32 %v4812, %v4816
        %v4819 = vshrl.u32 %v4712, 16
        %v4821 = vshll.u32 %v4712, 16
        %v4823 = vrot.slane %v4821, 1
        %v4824 = vor.u32 %v4819, %v4823
        %4825 = vrot.lane.b32.xlu0 %v4719, 16
        %v4826 = vpop.permute.xlu0 %4825
        %4827 = vrot.lane.b32.xlu0 %v4726, 16
        %v4828 = vpop.permute.xlu0 %4827
        %4829 = vrot.lane.b32.xlu0 %v4733, 16
        %v4830 = vpop.permute.xlu0 %4829
        %4831 = vrot.lane.b32.xlu0 %v4740, 16
        %v4832 = vpop.permute.xlu0 %4831
        %4833 = vrot.lane.b32.xlu0 %v4747, 16
        %v4834 = vpop.permute.xlu0 %4833
        %4835 = vrot.lane.b32.xlu0 %v4754, 16
        %v4836 = vpop.permute.xlu0 %4835
        %4837 = vrot.lane.b32.xlu0 %v4761, 16
        %v4838 = vpop.permute.xlu0 %4837
        %4839 = vrot.lane.b32.xlu0 %v4768, 16
        %v4840 = vpop.permute.xlu0 %4839
        %4841 = vrot.lane.b32.xlu0 %v4775, 16
        %v4842 = vpop.permute.xlu0 %4841
        %4843 = vrot.lane.b32.xlu0 %v4782, 16
        %v4844 = vpop.permute.xlu0 %4843
        %4845 = vrot.lane.b32.xlu0 %v4789, 16
        %v4846 = vpop.permute.xlu0 %4845
        %4847 = vrot.lane.b32.xlu0 %v4796, 16
        %v4848 = vpop.permute.xlu0 %4847
        %4849 = vrot.lane.b32.xlu0 %v4803, 16
        %v4850 = vpop.permute.xlu0 %4849
        %4851 = vrot.lane.b32.xlu0 %v4810, 16
        %v4852 = vpop.permute.xlu0 %4851
        %4853 = vrot.lane.b32.xlu0 %v4817, 16
        %v4854 = vpop.permute.xlu0 %4853
        %4855 = vrot.lane.b32.xlu0 %v4824, 16
        %v4856 = vpop.permute.xlu0 %4855
        %v4873 = vunpack.c.l.b16 %v4617
        %v4874 = vunpack.c.l.b16 %v4618
        %v4875 = vunpack.c.l.b16 %v4619
        %v4876 = vunpack.c.l.b16 %v4620
        %v4877 = vunpack.c.l.b16 %v4621
        %v4878 = vunpack.c.l.b16 %v4622
        %v4879 = vunpack.c.l.b16 %v4623
        %v4880 = vunpack.c.l.b16 %v4624
        %v4881 = vunpack.c.l.b16 %v4625
        %v4882 = vunpack.c.l.b16 %v4626
        %v4883 = vunpack.c.l.b16 %v4627
        %v4884 = vunpack.c.l.b16 %v4628
        %v4885 = vunpack.c.l.b16 %v4629
        %v4886 = vunpack.c.l.b16 %v4630
        %v4887 = vunpack.c.l.b16 %v4631
        %v4888 = vunpack.c.l.b16 %v4632
        %v4889 = vpack.c.b16 %v4666, %v4873
        %v4890 = vpack.c.b16 %v4668, %v4874
        %v4891 = vpack.c.b16 %v4670, %v4875
        %v4892 = vpack.c.b16 %v4672, %v4876
        %v4893 = vpack.c.b16 %v4674, %v4877
        %v4894 = vpack.c.b16 %v4676, %v4878
        %v4895 = vpack.c.b16 %v4678, %v4879
        %v4896 = vpack.c.b16 %v4680, %v4880
        %v4897 = vpack.c.b16 %v4682, %v4881
        %v4898 = vpack.c.b16 %v4684, %v4882
        %v4899 = vpack.c.b16 %v4686, %v4883
        %v4900 = vpack.c.b16 %v4688, %v4884
        %v4901 = vpack.c.b16 %v4690, %v4885
        %v4902 = vpack.c.b16 %v4692, %v4886
        %v4903 = vpack.c.b16 %v4694, %v4887
        %v4904 = vpack.c.b16 %v4696, %v4888
        %v4905 = vrot.slane %v4889, 1
        %v4906 = vrot.slane %v4890, 1
        %v4907 = vrot.slane %v4891, 1
        %v4908 = vrot.slane %v4892, 1
        %v4909 = vrot.slane %v4893, 1
        %v4910 = vrot.slane %v4894, 1
        %v4911 = vrot.slane %v4895, 1
        %v4912 = vrot.slane %v4896, 1
        %v4913 = vrot.slane %v4897, 1
        %v4914 = vrot.slane %v4898, 1
        %v4915 = vrot.slane %v4899, 1
        %v4916 = vrot.slane %v4900, 1
        %v4917 = vrot.slane %v4901, 1
        %v4918 = vrot.slane %v4902, 1
        %v4919 = vrot.slane %v4903, 1
        %v4920 = vrot.slane %v4904, 1
        %4921 = vrot.lane.b32.xlu0 %v4905, 32
        %v4922 = vpop.permute.xlu0 %4921
        %4923 = vrot.lane.b32.xlu0 %v4906, 32
        %v4924 = vpop.permute.xlu0 %4923
        %4925 = vrot.lane.b32.xlu0 %v4907, 32
        %v4926 = vpop.permute.xlu0 %4925
        %4927 = vrot.lane.b32.xlu0 %v4908, 32
        %v4928 = vpop.permute.xlu0 %4927
        %4929 = vrot.lane.b32.xlu0 %v4909, 32
        %v4930 = vpop.permute.xlu0 %4929
        %4931 = vrot.lane.b32.xlu0 %v4910, 32
        %v4932 = vpop.permute.xlu0 %4931
        %4933 = vrot.lane.b32.xlu0 %v4911, 32
        %v4934 = vpop.permute.xlu0 %4933
        %4935 = vrot.lane.b32.xlu0 %v4912, 32
        %v4936 = vpop.permute.xlu0 %4935
        %4937 = vrot.lane.b32.xlu0 %v4913, 32
        %v4938 = vpop.permute.xlu0 %4937
        %4939 = vrot.lane.b32.xlu0 %v4914, 32
        %v4940 = vpop.permute.xlu0 %4939
        %4941 = vrot.lane.b32.xlu0 %v4915, 32
        %v4942 = vpop.permute.xlu0 %4941
        %4943 = vrot.lane.b32.xlu0 %v4916, 32
        %v4944 = vpop.permute.xlu0 %4943
        %4945 = vrot.lane.b32.xlu0 %v4917, 32
        %v4946 = vpop.permute.xlu0 %4945
        %4947 = vrot.lane.b32.xlu0 %v4918, 32
        %v4948 = vpop.permute.xlu0 %4947
        %4949 = vrot.lane.b32.xlu0 %v4919, 32
        %v4950 = vpop.permute.xlu0 %4949
        %4951 = vrot.lane.b32.xlu0 %v4920, 32
        %v4952 = vpop.permute.xlu0 %4951
        %v4955 = vsel %vm1252, %v4585, %v4826
        %v4958 = vsel %vm1252, %v4586, %v4828
        %v4961 = vsel %vm1252, %v4587, %v4830
        %v4964 = vsel %vm1252, %v4588, %v4832
        %v4967 = vsel %vm1252, %v4589, %v4834
        %v4970 = vsel %vm1252, %v4590, %v4836
        %v4973 = vsel %vm1252, %v4591, %v4838
        %v4976 = vsel %vm1252, %v4592, %v4840
        %v4979 = vsel %vm1252, %v4593, %v4842
        %v4982 = vsel %vm1252, %v4594, %v4844
        %v4985 = vsel %vm1252, %v4595, %v4846
        %v4988 = vsel %vm1252, %v4596, %v4848
        %v4991 = vsel %vm1252, %v4597, %v4850
        %v4994 = vsel %vm1252, %v4598, %v4852
        %v4997 = vsel %vm1252, %v4599, %v4854
        %v5000 = vsel %vm1252, %v4600, %v4856
        %v5002 = vsel %vm1301, %v4955, %v4922
        %v5004 = vsel %vm1301, %v4958, %v4924
        %v5006 = vsel %vm1301, %v4961, %v4926
        %v5008 = vsel %vm1301, %v4964, %v4928
        %v5010 = vsel %vm1301, %v4967, %v4930
        %v5012 = vsel %vm1301, %v4970, %v4932
        %v5014 = vsel %vm1301, %v4973, %v4934
        %v5016 = vsel %vm1301, %v4976, %v4936
        %v5018 = vsel %vm1301, %v4979, %v4938
        %v5020 = vsel %vm1301, %v4982, %v4940
        %v5022 = vsel %vm1301, %v4985, %v4942
        %v5024 = vsel %vm1301, %v4988, %v4944
        %v5026 = vsel %vm1301, %v4991, %v4946
        %v5028 = vsel %vm1301, %v4994, %v4948
        %v5030 = vsel %vm1301, %v4997, %v4950
        %v5032 = vsel %vm1301, %v5000, %v4952
        %s5033 = scalar_lea.vmem %s4, 48
        %v5034 = vld [vmem:[%s5033] sm:$0xf]
        %v5035 = vld [vmem:[%s5033 + $0x4] sm:$0xf]
        %v5036 = vld [vmem:[%s5033 + $0x8] sm:$0xf]
        %v5037 = vld [vmem:[%s5033 + $0xc] sm:$0xf]
        %v5038 = vld [vmem:[%s5033 + $0x10] sm:$0xf]
        %v5039 = vld [vmem:[%s5033 + $0x14] sm:$0xf]
        %v5056 = vunpack.c.l.b16 %v5002
        %v5057 = vunpack.c.l.b16 %v5004
        %v5058 = vunpack.c.l.b16 %v5006
        %v5059 = vunpack.c.l.b16 %v5008
        %v5060 = vunpack.c.l.b16 %v5010
        %v5061 = vunpack.c.l.b16 %v5012
        %v5062 = vunpack.c.l.b16 %v5014
        %v5063 = vunpack.c.l.b16 %v5016
        %v5064 = vunpack.c.l.b16 %v5018
        %v5065 = vunpack.c.l.b16 %v5020
        %v5066 = vunpack.c.l.b16 %v5022
        %v5067 = vunpack.c.l.b16 %v5024
        %v5068 = vunpack.c.l.b16 %v5026
        %v5069 = vunpack.c.l.b16 %v5028
        %v5070 = vunpack.c.l.b16 %v5030
        %v5071 = vunpack.c.l.b16 %v5032
        %v5072 = vpack.c.b16 %v5057, %v5056
        %v5073 = vpack.c.b16 %v5059, %v5058
        %v5074 = vpack.c.b16 %v5061, %v5060
        %v5075 = vpack.c.b16 %v5063, %v5062
        %v5076 = vpack.c.b16 %v5065, %v5064
        %v5077 = vpack.c.b16 %v5067, %v5066
        %v5078 = vpack.c.b16 %v5069, %v5068
        %v5079 = vpack.c.b16 %v5071, %v5070
        %v5086 = vunpack.c.l.b16 %v5034
        %v5087 = vunpack.c.l.b16 %v5035
        %v5088 = vunpack.c.l.b16 %v5036
        %v5089 = vunpack.c.l.b16 %v5037
        %v5090 = vunpack.c.l.b16 %v5038
        %v5091 = vunpack.c.l.b16 %v5039
        %v5092 = vpack.c.b16 %v5087, %v5086
        %v5093 = vpack.c.b16 %v5089, %v5088
        %v5094 = vpack.c.b16 %v5091, %v5090
        %v5099 = vsel %vm1853, %v5072, 0
        %v5102 = vsel %vm1853, %v5073, 0
        %v5105 = vsel %vm1853, %v5074, 0
        %v5108 = vsel %vm1853, %v5075, 0
        %v5111 = vsel %vm1853, %v5076, 0
        %v5114 = vsel %vm1853, %v5077, 0
        %v5117 = vsel %vm1853, %v5078, 0
        %v5120 = vsel %vm1853, %v5079, 0
        %5122 = vmatprep.subr.bf16.mxu0 0
        %5123 = vmatpush1.bf16.msra.mxu0 %v5092
        %5124 = vmatprep.subr.bf16.mxu0 0
        %5125 = vmatpush1.bf16.msra.mxu0 %v5093
        %5126 = vmatprep.subr.bf16.mxu0 0
        %5127 = vmatpush1.bf16.msra.mxu0 %v5094
        %5128 = vmatprep.subr.bf16.mxu0 0
        %5129 = vmatpush1.bf16.msra.mxu0 0
        %5130 = vmatprep.subr.bf16.mxu0 0
        %5131 = vmatpush1.bf16.msra.mxu0 0
        %5132 = vmatprep.subr.bf16.mxu0 0
        %5133 = vmatpush1.bf16.msra.mxu0 0
        %5134 = vmatprep.subr.bf16.mxu0 0
        %5135 = vmatpush1.bf16.msra.mxu0 0
        %5136 = vmatprep.subr.bf16.mxu0 0
        %5137 = vmatpush1.bf16.msra.mxu0 0
        %5138 = vmatprep.subr.bf16.mxu0 0
        %5139 = vmatpush1.bf16.msra.mxu0 0
        %5140 = vmatprep.subr.bf16.mxu0 0
        %5141 = vmatpush1.bf16.msra.mxu0 0
        %5142 = vmatprep.subr.bf16.mxu0 0
        %5143 = vmatpush1.bf16.msra.mxu0 0
        %5144 = vmatprep.subr.bf16.mxu0 0
        %5145 = vmatpush1.bf16.msra.mxu0 0
        %5146 = vmatprep.subr.bf16.mxu0 0
        %5147 = vmatpush1.bf16.msra.mxu0 0
        %5148 = vmatprep.subr.bf16.mxu0 0
        %5149 = vmatpush1.bf16.msra.mxu0 0
        %5150 = vmatprep.subr.bf16.mxu0 0
        %5151 = vmatpush1.bf16.msra.mxu0 0
        %5152 = vmatprep.subr.bf16.mxu0 0
        %5153 = vmatpush1.bf16.msra.mxu0 0
        %5154 = vmatprep.mubr.bf16.mxu0 0
        %5155 = vmatmul.mubr.bf16.gmra.mrb[0].mxu0 %v5099
        %v5156 = vpop.f32.mrb[0].mxu0
        %v5157 = vadd.f32 0.0, %v5156
        %v5158 = vpop.f32.mrb[0].mxu0
        %v5159 = vpop.f32.mrb[0].mxu0
        %v5160 = vadd.f32 0.0, %v5159
        %v5161 = vpop.f32.mrb[0].mxu0
        %5162 = vmatprep.mubr.bf16.mxu0 0
        %5163 = vmatmul.mubr.bf16.gmra.mrb[0].mxu0 %v5102
        %v5164 = vpop.f32.mrb[0].mxu0
        %v5165 = vadd.f32 0.0, %v5164
        %v5166 = vpop.f32.mrb[0].mxu0
        %v5167 = vpop.f32.mrb[0].mxu0
        %v5168 = vadd.f32 0.0, %v5167
        %v5169 = vpop.f32.mrb[0].mxu0
        %5170 = vmatprep.mubr.bf16.mxu0 0
        %5171 = vmatmul.mubr.bf16.gmra.mrb[0].mxu0 %v5105
        %v5172 = vpop.f32.mrb[0].mxu0
        %v5173 = vadd.f32 0.0, %v5172
        %v5174 = vpop.f32.mrb[0].mxu0
        %v5175 = vpop.f32.mrb[0].mxu0
        %v5176 = vadd.f32 0.0, %v5175
        %v5177 = vpop.f32.mrb[0].mxu0
        %5178 = vmatprep.mubr.bf16.mxu0 0
        %5179 = vmatmul.mubr.bf16.gmra.mrb[0].mxu0 %v5108
        %v5180 = vpop.f32.mrb[0].mxu0
        %v5181 = vadd.f32 0.0, %v5180
        %v5182 = vpop.f32.mrb[0].mxu0
        %v5183 = vpop.f32.mrb[0].mxu0
        %v5184 = vadd.f32 0.0, %v5183
        %v5185 = vpop.f32.mrb[0].mxu0
        %5186 = vmatprep.mubr.bf16.mxu0 0
        %5187 = vmatmul.mubr.bf16.gmra.mrb[0].mxu0 %v5111
        %v5188 = vpop.f32.mrb[0].mxu0
        %v5189 = vadd.f32 0.0, %v5188
        %v5190 = vpop.f32.mrb[0].mxu0
        %v5191 = vpop.f32.mrb[0].mxu0
        %v5192 = vadd.f32 0.0, %v5191
        %v5193 = vpop.f32.mrb[0].mxu0
        %5194 = vmatprep.mubr.bf16.mxu0 0
        %5195 = vmatmul.mubr.bf16.gmra.mrb[0].mxu0 %v5114
        %v5196 = vpop.f32.mrb[0].mxu0
        %v5197 = vadd.f32 0.0, %v5196
        %v5198 = vpop.f32.mrb[0].mxu0
        %v5199 = vpop.f32.mrb[0].mxu0
        %v5200 = vadd.f32 0.0, %v5199
        %v5201 = vpop.f32.mrb[0].mxu0
        %5202 = vmatprep.mubr.bf16.mxu0 0
        %5203 = vmatmul.mubr.bf16.gmra.mrb[0].mxu0 %v5117
        %v5204 = vpop.f32.mrb[0].mxu0
        %v5205 = vadd.f32 0.0, %v5204
        %v5206 = vpop.f32.mrb[0].mxu0
        %v5207 = vpop.f32.mrb[0].mxu0
        %v5208 = vadd.f32 0.0, %v5207
        %v5209 = vpop.f32.mrb[0].mxu0
        %5210 = vmatprep.mubr.bf16.mxu0 0
        %5211 = vmatmul.mubr.bf16.gmra.mrb[0].mxu0 %v5120
        %v5212 = vpop.f32.mrb[0].mxu0
        %v5213 = vadd.f32 0.0, %v5212
        %v5214 = vpop.f32.mrb[0].mxu0
        %v5215 = vpop.f32.mrb[0].mxu0
        %v5216 = vadd.f32 0.0, %v5215
        %v5217 = vpop.f32.mrb[0].mxu0
        %5218 = vdwg.mxu0
        %v5219 = vadd.f32 %v4522, %v5157
        %v5220 = vadd.f32 %v4525, %v5160
        %v5221 = vadd.f32 %v4530, %v5165
        %v5222 = vadd.f32 %v4533, %v5168
        %v5223 = vadd.f32 %v4538, %v5173
        %v5224 = vadd.f32 %v4541, %v5176
        %v5225 = vadd.f32 %v4546, %v5181
        %v5226 = vadd.f32 %v4549, %v5184
        %v5227 = vadd.f32 %v4554, %v5189
        %v5228 = vadd.f32 %v4557, %v5192
        %v5229 = vadd.f32 %v4562, %v5197
        %v5230 = vadd.f32 %v4565, %v5200
        %v5231 = vadd.f32 %v4570, %v5205
        %v5232 = vadd.f32 %v4573, %v5208
        %v5233 = vadd.f32 %v4578, %v5213
        %v5234 = vadd.f32 %v4581, %v5216
        %v5235 = vld [vmem:[%s5] sm:$0x1]
        %v5237 = vlaneseq
        %v5238 = vshrl.u32 %v5237, 7
        %v5239 = vsub.s32 0, %v5238
        %v5240 = vrot.slane %v5235, %v5239
        %v5242 = vmul.f32 %v5219, %v5240
        %v5243 = vmul.f32 %v5220, %v5240
        %v5244 = vmul.f32 %v5221, %v5240
        %v5245 = vmul.f32 %v5222, %v5240
        %v5246 = vmul.f32 %v5223, %v5240
        %v5247 = vmul.f32 %v5224, %v5240
        %v5248 = vmul.f32 %v5225, %v5240
        %v5249 = vmul.f32 %v5226, %v5240
        %v5250 = vmul.f32 %v5227, %v5240
        %v5251 = vmul.f32 %v5228, %v5240
        %v5252 = vmul.f32 %v5229, %v5240
        %v5253 = vmul.f32 %v5230, %v5240
        %v5254 = vmul.f32 %v5231, %v5240
        %v5255 = vmul.f32 %v5232, %v5240
        %v5256 = vmul.f32 %v5233, %v5240
        %v5257 = vmul.f32 %v5234, %v5240
        %v5258 = vld [vmem:[%s6] sm:$0x1]
        %v5260 = vlaneseq
        %v5261 = vshrl.u32 %v5260, 7
        %v5262 = vsub.s32 0, %v5261
        %v5263 = vrot.slane %v5258, %v5262
        %v5265 = vadd.f32 %v5242, %v5263
        %v5266 = vadd.f32 %v5243, %v5263
        %v5267 = vadd.f32 %v5244, %v5263
        %v5268 = vadd.f32 %v5245, %v5263
        %v5269 = vadd.f32 %v5246, %v5263
        %v5270 = vadd.f32 %v5247, %v5263
        %v5271 = vadd.f32 %v5248, %v5263
        %v5272 = vadd.f32 %v5249, %v5263
        %v5273 = vadd.f32 %v5250, %v5263
        %v5274 = vadd.f32 %v5251, %v5263
        %v5275 = vadd.f32 %v5252, %v5263
        %v5276 = vadd.f32 %v5253, %v5263
        %v5277 = vadd.f32 %v5254, %v5263
        %v5278 = vadd.f32 %v5255, %v5263
        %v5279 = vadd.f32 %v5256, %v5263
        %v5280 = vadd.f32 %v5257, %v5263
        %v5281 = vsel %vm1252, %v5265, 0.0
        %v5282 = vsel %vm1252, %v5266, 0.0
        %v5283 = vadd.f32 %v5281, %v5282
        %v5284 = vsel %vm1252, %v5267, 0.0
        %v5285 = vadd.f32 %v5283, %v5284
        %v5286 = vsel %vm1252, %v5268, 0.0
        %v5287 = vadd.f32 %v5285, %v5286
        %v5288 = vsel %vm1252, %v5269, 0.0
        %v5289 = vadd.f32 %v5287, %v5288
        %v5290 = vsel %vm1252, %v5270, 0.0
        %v5291 = vadd.f32 %v5289, %v5290
        %v5292 = vsel %vm1252, %v5271, 0.0
        %v5293 = vadd.f32 %v5291, %v5292
        %v5294 = vsel %vm1252, %v5272, 0.0
        %v5295 = vadd.f32 %v5293, %v5294
        %v5296 = vrot.slane %v5295, 4
        %v5297 = vadd.f32 %v5295, %v5296
        %v5298 = vrot.slane %v5297, 2
        %v5299 = vadd.f32 %v5297, %v5298
        %v5300 = vrot.slane %v5299, 1
        %v5301 = vadd.f32 %v5299, %v5300
        %v5302 = vsel %vm1252, %v5273, 0.0
        %v5303 = vsel %vm1252, %v5274, 0.0
        %v5304 = vadd.f32 %v5302, %v5303
        %v5305 = vsel %vm1252, %v5275, 0.0
        %v5306 = vadd.f32 %v5304, %v5305
        %v5307 = vsel %vm1252, %v5276, 0.0
        %v5308 = vadd.f32 %v5306, %v5307
        %v5309 = vsel %vm1252, %v5277, 0.0
        %v5310 = vadd.f32 %v5308, %v5309
        %v5311 = vsel %vm1252, %v5278, 0.0
        %v5312 = vadd.f32 %v5310, %v5311
        %v5313 = vsel %vm1252, %v5279, 0.0
        %v5314 = vadd.f32 %v5312, %v5313
        %v5315 = vsel %vm1252, %v5280, 0.0
        %v5316 = vadd.f32 %v5314, %v5315
        %v5317 = vrot.slane %v5316, 4
        %v5318 = vadd.f32 %v5316, %v5317
        %v5319 = vrot.slane %v5318, 2
        %v5320 = vadd.f32 %v5318, %v5319
        %v5321 = vrot.slane %v5320, 1
        %v5322 = vadd.f32 %v5320, %v5321
        %v5323 = vrcp.pop 64.0
        %v5324 = vmul.f32 %v5301, %v5323
        %v5325 = vmul.f32 %v5322, %v5323
        %v5326 = vld [vmem:[%s7] sm:$0xff]
        %v5327 = vld [vmem:[%s7 + $0x8] sm:$0xff]
        %v5328 = vld [vmem:[%s8] sm:$0x1]
        %v5330 = vlaneseq
        %v5331 = vshrl.u32 %v5330, 7
        %v5332 = vsub.s32 0, %v5331
        %v5333 = vrot.slane %v5328, %v5332
        %vm5337 = vcmask 1041409
        %v5338 = vsel %vm5337, %v5325, %v5324
        %v5339 = vsel %vm1252, %v5338, 0
        %5341 = vmatprep.subr.mxu0 0.0
        %5342 = vmatpush1.msra.mxu0 %v5326
        %5343 = vmatprep.subr.mxu0 0.0
        %5344 = vmatpush1.msra.mxu0 %v5327
        %5345 = vmatprep.subr.mxu0 0.0
        %5346 = vmatpush1.msra.mxu0 0.0
        %5347 = vmatprep.subr.mxu0 0.0
        %5348 = vmatpush1.msra.mxu0 0.0
        %5349 = vmatprep.subr.mxu0 0.0
        %5350 = vmatpush1.msra.mxu0 0.0
        %5351 = vmatprep.subr.mxu0 0.0
        %5352 = vmatpush1.msra.mxu0 0.0
        %5353 = vmatprep.subr.mxu0 0.0
        %5354 = vmatpush1.msra.mxu0 0.0
        %5355 = vmatprep.subr.mxu0 0.0
        %5356 = vmatpush1.msra.mxu0 0.0
        %5357 = vmatprep.subr.mxu0 0.0
        %5358 = vmatpush1.msra.mxu0 0.0
        %5359 = vmatprep.subr.mxu0 0.0
        %5360 = vmatpush1.msra.mxu0 0.0
        %5361 = vmatprep.subr.mxu0 0.0
        %5362 = vmatpush1.msra.mxu0 0.0
        %5363 = vmatprep.subr.mxu0 0.0
        %5364 = vmatpush1.msra.mxu0 0.0
        %5365 = vmatprep.subr.mxu0 0.0
        %5366 = vmatpush1.msra.mxu0 0.0
        %5367 = vmatprep.subr.mxu0 0.0
        %5368 = vmatpush1.msra.mxu0 0.0
        %5369 = vmatprep.subr.mxu0 0.0
        %5370 = vmatpush1.msra.mxu0 0.0
        %5371 = vmatprep.subr.mxu0 0.0
        %5372 = vmatpush1.msra.mxu0 0.0
        %5373 = vmatprep.subr.mxu0 0.0
        %5374 = vmatpush1.msra.mxu0 0.0
        %5375 = vmatprep.subr.mxu0 0.0
        %5376 = vmatpush1.msra.mxu0 0.0
        %5377 = vmatprep.subr.mxu0 0.0
        %5378 = vmatpush1.msra.mxu0 0.0
        %5379 = vmatprep.subr.mxu0 0.0
        %5380 = vmatpush1.msra.mxu0 0.0
        %5381 = vmatprep.subr.mxu0 0.0
        %5382 = vmatpush1.msra.mxu0 0.0
        %5383 = vmatprep.subr.mxu0 0.0
        %5384 = vmatpush1.msra.mxu0 0.0
        %5385 = vmatprep.subr.mxu0 0.0
        %5386 = vmatpush1.msra.mxu0 0.0
        %5387 = vmatprep.subr.mxu0 0.0
        %5388 = vmatpush1.msra.mxu0 0.0
        %5389 = vmatprep.subr.mxu0 0.0
        %5390 = vmatpush1.msra.mxu0 0.0
        %5391 = vmatprep.subr.mxu0 0.0
        %5392 = vmatpush1.msra.mxu0 0.0
        %5393 = vmatprep.subr.mxu0 0.0
        %5394 = vmatpush1.msra.mxu0 0.0
        %5395 = vmatprep.subr.mxu0 0.0
        %5396 = vmatpush1.msra.mxu0 0.0
        %5397 = vmatprep.subr.mxu0 0.0
        %5398 = vmatpush1.msra.mxu0 0.0
        %5399 = vmatprep.subr.mxu0 0.0
        %5400 = vmatpush1.msra.mxu0 0.0
        %5401 = vmatprep.subr.mxu0 0.0
        %5402 = vmatpush1.msra.mxu0 0.0
        %5403 = vmatprep.subr.mxu0 0.0
        %5404 = vmatpush1.msra.mxu0 0.0
        %5405 = vmatprep.mubr.f32.mxu0 0.0
        %5406 = vmatmul.mubr.f32.gmra.mrb[0].mxu0 %v5339
        %v5407 = vpop.f32.mrb[0].mxu0
        %v5408 = vadd.f32 %v5333, %v5407
        %v5409 = vpop.f32.mrb[0].mxu0
        %5410 = vdwg.mxu0
        %v5411 = vmax.f32 %v5408, 0.0
        %v5412 = vld [vmem:[%s9] sm:$0xf]
        %v5413 = vld [vmem:[%s10] sm:$0x1]
        %v5415 = vlaneseq
        %v5416 = vshrl.u32 %v5415, 7
        %v5417 = vsub.s32 0, %v5416
        %v5418 = vrot.slane %v5413, %v5417
        %vm5420 = vcmask 31744
        %v5422 = vsel %vm5420, %v5411, 0
        %vm5424 = vcmask 1043456
        %v5426 = vsel %vm5424, %v5412, 0
        %5428 = vmatprep.subr.mxu0 0.0
        %5429 = vmatpush1.msra.mxu0 %v5426
        %5430 = vmatprep.subr.mxu0 0.0
        %5431 = vmatpush1.msra.mxu0 0.0
        %5432 = vmatprep.subr.mxu0 0.0
        %5433 = vmatpush1.msra.mxu0 0.0
        %5434 = vmatprep.subr.mxu0 0.0
        %5435 = vmatpush1.msra.mxu0 0.0
        %5436 = vmatprep.subr.mxu0 0.0
        %5437 = vmatpush1.msra.mxu0 0.0
        %5438 = vmatprep.subr.mxu0 0.0
        %5439 = vmatpush1.msra.mxu0 0.0
        %5440 = vmatprep.subr.mxu0 0.0
        %5441 = vmatpush1.msra.mxu0 0.0
        %5442 = vmatprep.subr.mxu0 0.0
        %5443 = vmatpush1.msra.mxu0 0.0
        %5444 = vmatprep.subr.mxu0 0.0
        %5445 = vmatpush1.msra.mxu0 0.0
        %5446 = vmatprep.subr.mxu0 0.0
        %5447 = vmatpush1.msra.mxu0 0.0
        %5448 = vmatprep.subr.mxu0 0.0
        %5449 = vmatpush1.msra.mxu0 0.0
        %5450 = vmatprep.subr.mxu0 0.0
        %5451 = vmatpush1.msra.mxu0 0.0
        %5452 = vmatprep.subr.mxu0 0.0
        %5453 = vmatpush1.msra.mxu0 0.0
        %5454 = vmatprep.subr.mxu0 0.0
        %5455 = vmatpush1.msra.mxu0 0.0
        %5456 = vmatprep.subr.mxu0 0.0
        %5457 = vmatpush1.msra.mxu0 0.0
        %5458 = vmatprep.subr.mxu0 0.0
        %5459 = vmatpush1.msra.mxu0 0.0
        %5460 = vmatprep.subr.mxu0 0.0
        %5461 = vmatpush1.msra.mxu0 0.0
        %5462 = vmatprep.subr.mxu0 0.0
        %5463 = vmatpush1.msra.mxu0 0.0
        %5464 = vmatprep.subr.mxu0 0.0
        %5465 = vmatpush1.msra.mxu0 0.0
        %5466 = vmatprep.subr.mxu0 0.0
        %5467 = vmatpush1.msra.mxu0 0.0
        %5468 = vmatprep.subr.mxu0 0.0
        %5469 = vmatpush1.msra.mxu0 0.0
        %5470 = vmatprep.subr.mxu0 0.0
        %5471 = vmatpush1.msra.mxu0 0.0
        %5472 = vmatprep.subr.mxu0 0.0
        %5473 = vmatpush1.msra.mxu0 0.0
        %5474 = vmatprep.subr.mxu0 0.0
        %5475 = vmatpush1.msra.mxu0 0.0
        %5476 = vmatprep.subr.mxu0 0.0
        %5477 = vmatpush1.msra.mxu0 0.0
        %5478 = vmatprep.subr.mxu0 0.0
        %5479 = vmatpush1.msra.mxu0 0.0
        %5480 = vmatprep.subr.mxu0 0.0
        %5481 = vmatpush1.msra.mxu0 0.0
        %5482 = vmatprep.subr.mxu0 0.0
        %5483 = vmatpush1.msra.mxu0 0.0
        %5484 = vmatprep.subr.mxu0 0.0
        %5485 = vmatpush1.msra.mxu0 0.0
        %5486 = vmatprep.subr.mxu0 0.0
        %5487 = vmatpush1.msra.mxu0 0.0
        %5488 = vmatprep.subr.mxu0 0.0
        %5489 = vmatpush1.msra.mxu0 0.0
        %5490 = vmatprep.subr.mxu0 0.0
        %5491 = vmatpush1.msra.mxu0 0.0
        %5492 = vmatprep.mubr.f32.mxu0 0.0
        %5493 = vmatmul.mubr.f32.gmra.mrb[0].mxu0 %v5422
        %v5494 = vpop.f32.mrb[0].mxu0
        %v5495 = vadd.f32 %v5418, %v5494
        %v5496 = vpop.f32.mrb[0].mxu0
        %5497 = vdwg.mxu0
        %v5498 = vsub.f32 0.0, %v5495
        %v5499 = vmul.f32 %v5498, 1.442695
        %v5500 = vpow.pop %v5499
        %v5501 = vadd.f32 %v5500, 1.0
        %v5502 = vrcp.pop %v5501
        %v5503 = vmul.f32 1.0, %v5502
        %v5506 = vunpack.c.l.s4 1966171168
        %v5507 = vunpack.c.0.s8 %v5506
        %v5508 = vlaneseq
        %v5509 = vshrl.u32 %v5508, 7
        %v5510 = vsub.s32 %v5507, %v5509
        %v5511 = vrot.slane %v5503, %v5510
        %v5512 = vcombine.high %v5511, %v5511
        %v5514 = vunpack.c.l.s4 1966171168
        %v5515 = vunpack.c.0.s8 %v5514
        %v5516 = vlaneseq
        %v5517 = vshrl.u32 %v5516, 7
        %v5518 = vsub.s32 %v5515, %v5517
        %v5519 = vrot.slane %v5511, %v5518
        %v5521 = vunpack.c.l.s4 1966171168
        %v5522 = vunpack.c.0.s8 %v5521
        %v5523 = vlaneseq
        %v5524 = vshrl.u32 %v5523, 7
        %v5525 = vsub.s32 %v5522, %v5524
        %v5526 = vrot.slane %v5512, %v5525
        %v5527 = vlaneseq
        %v5528 = vshrl.u32 %v5527, 7
        %v5529 = vsub.s32 0, %v5528
        %v5530 = vrot.slane %v5519, %v5529
        %v5531 = vlaneseq
        %v5532 = vshrl.u32 %v5531, 7
        %v5533 = vsub.s32 0, %v5532
        %v5534 = vrot.slane %v5526, %v5533
        %v5537 = vmul.f32 %v5265, %v5530
        %v5538 = vmul.f32 %v5266, %v5530
        %v5539 = vmul.f32 %v5267, %v5530
        %v5540 = vmul.f32 %v5268, %v5530
        %v5541 = vmul.f32 %v5269, %v5530
        %v5542 = vmul.f32 %v5270, %v5530
        %v5543 = vmul.f32 %v5271, %v5530
        %v5544 = vmul.f32 %v5272, %v5530
        %v5545 = vmul.f32 %v5273, %v5534
        %v5546 = vmul.f32 %v5274, %v5534
        %v5547 = vmul.f32 %v5275, %v5534
        %v5548 = vmul.f32 %v5276, %v5534
        %v5549 = vmul.f32 %v5277, %v5534
        %v5550 = vmul.f32 %v5278, %v5534
        %v5551 = vmul.f32 %v5279, %v5534
        %v5552 = vmul.f32 %v5280, %v5534
        %v5553 = vadd.f32 %v5537, %v409
        %v5554 = vadd.f32 %v5538, %v410
        %v5555 = vadd.f32 %v5539, %v411
        %v5556 = vadd.f32 %v5540, %v412
        %v5557 = vadd.f32 %v5541, %v413
        %v5558 = vadd.f32 %v5542, %v414
        %v5559 = vadd.f32 %v5543, %v415
        %v5560 = vadd.f32 %v5544, %v416
        %v5561 = vadd.f32 %v5545, %v417
        %v5562 = vadd.f32 %v5546, %v418
        %v5563 = vadd.f32 %v5547, %v419
        %v5564 = vadd.f32 %v5548, %v420
        %v5565 = vadd.f32 %v5549, %v421
        %v5566 = vadd.f32 %v5550, %v422
        %v5567 = vadd.f32 %v5551, %v423
        %v5568 = vadd.f32 %v5552, %v424
        %v5569 = vmax.f32 %v5553, 0.0
        %v5570 = vmax.f32 %v5554, 0.0
        %v5571 = vmax.f32 %v5555, 0.0
        %v5572 = vmax.f32 %v5556, 0.0
        %v5573 = vmax.f32 %v5557, 0.0
        %v5574 = vmax.f32 %v5558, 0.0
        %v5575 = vmax.f32 %v5559, 0.0
        %v5576 = vmax.f32 %v5560, 0.0
        %v5577 = vmax.f32 %v5561, 0.0
        %v5578 = vmax.f32 %v5562, 0.0
        %v5579 = vmax.f32 %v5563, 0.0
        %v5580 = vmax.f32 %v5564, 0.0
        %v5581 = vmax.f32 %v5565, 0.0
        %v5582 = vmax.f32 %v5566, 0.0
        %v5583 = vmax.f32 %v5567, 0.0
        %v5584 = vmax.f32 %v5568, 0.0
        %5585 = vst.msk [vmem:[%s405] sm:$0xff] %vm1252, %v5569
        %5586 = vst.msk [vmem:[%s405 + $0x8] sm:$0xff] %vm1252, %v5570
        %5587 = vst.msk [vmem:[%s405 + $0x10] sm:$0xff] %vm1252, %v5571
        %5588 = vst.msk [vmem:[%s405 + $0x18] sm:$0xff] %vm1252, %v5572
        %5589 = vst.msk [vmem:[%s405 + $0x20] sm:$0xff] %vm1252, %v5573
        %5590 = vst.msk [vmem:[%s405 + $0x28] sm:$0xff] %vm1252, %v5574
        %5591 = vst.msk [vmem:[%s405 + $0x30] sm:$0xff] %vm1252, %v5575
        %5592 = vst.msk [vmem:[%s405 + $0x38] sm:$0xff] %vm1252, %v5576
        %5593 = vst.msk [vmem:[%s405 + $0x40] sm:$0xff] %vm1252, %v5577
        %5594 = vst.msk [vmem:[%s405 + $0x48] sm:$0xff] %vm1252, %v5578
        %5595 = vst.msk [vmem:[%s405 + $0x50] sm:$0xff] %vm1252, %v5579
        %5596 = vst.msk [vmem:[%s405 + $0x58] sm:$0xff] %vm1252, %v5580
        %5597 = vst.msk [vmem:[%s405 + $0x60] sm:$0xff] %vm1252, %v5581
        %5598 = vst.msk [vmem:[%s405 + $0x68] sm:$0xff] %vm1252, %v5582
        %5599 = vst.msk [vmem:[%s405 + $0x70] sm:$0xff] %vm1252, %v5583
        %5600 = vst.msk [vmem:[%s405 + $0x78] sm:$0xff] %vm1252, %v5584
        %s5601 = sand.u32 %s272, 1
        %s5602 = scalar_lea.sflag [#allocation6], %s5601
        %s5603 = sand.u32 %s272, 1
        %s5604 = smul.addr %s5603, 128
        %s5605 = scalar_lea.vmem [#allocation7], %s5604
        // Predicated region
        $region69: #{tpu_custom_call.1} parent=63 // pred_check
          %p5606 = pneg %p282
        $region70: #{tpu_custom_call.1} parent=63 // pred_check_branch
          %5608 = sbr.rel (%p5606) target = $region72
        $region71: #{tpu_custom_call.1} parent=63 // pred_region
          %s5609 = smul.u32 2, %s28
          %s5611 = ssub.s32 2048, 2048
          %5612 = vsyncadd %s5602, %s5611
          %s5613 = smul.addr %s5609, 8
          %s5614 = smul.addr %s5613, 128
          %s5615 = scalar_lea.hbm %s11, %s5614
          %s5616 = sshll.u32 %s5605, 4
          %s5617 = int_to_ptr.vmem [resolvable:$true] %s5616
          %5622 = dma.vmem_to_hbm [thread:$0]  %s5617, 2048, %s5615, %s5602, 128, 128, 8
        $region72: #{tpu_custom_call.1} parent=63 // pred_fallthru
          _
      $region64: #{tpu_custom_call.1} parent=5 // pred_fallthru
        _
      %p5623 = scmp.le.s32.totalorder 2, %s23
      // Predicated region
      $region73: #{tpu_custom_call.1} parent=5 // pred_check
        %p5624 = pneg %p5623
      $region74: #{tpu_custom_call.1} parent=5 // pred_check_branch
        %5626 = sbr.rel (%p5624) target = $region76
      $region75: #{tpu_custom_call.1} parent=5 // pred_region
        %s5627 = ssub.s32 %s23, 2
        // Predicated region
        $region77: #{tpu_custom_call.1} parent=75 // pred_check
          %p5628 = pneg %p288
        $region78: #{tpu_custom_call.1} parent=75 // pred_check_branch
          %5630 = sbr.rel (%p5628) target = $region80
        $region79: #{tpu_custom_call.1} parent=75 // pred_region
          %s5631 = sand.u32 %s273, 1
          %s5632 = scalar_lea.sflag [#allocation6], %s5631
          %s5633 = sand.u32 %s273, 1
          %s5634 = smul.addr %s5633, 128
          %s5635 = scalar_lea.vmem [#allocation7], %s5634
          %5636 = dma.done %s5632, 2048
        $region80: #{tpu_custom_call.1} parent=75 // pred_fallthru
          _
      $region76: #{tpu_custom_call.1} parent=5 // pred_fallthru
        _
    $region6: #{tpu_custom_call.1} parent=1 // loop_footer
      %s27 = sadd.s32 1, %s23
    $region7: #{tpu_custom_call.1} parent=1 // loop_footer_branch
      %22 = sbr.rel target = $region3
    $region8: #{tpu_custom_call.1} parent=1 // loop_exit
      _
    %5637 = vsyncpa [#allocation5], 1
    %s5638 = scalar_lea.sflag [#allocation5], 1
    %5639 = vsyncpa %s5638, 1
    %5640 = vsyncpa [#allocation6], 1
    %s5641 = scalar_lea.sflag [#allocation6], 1
    %5642 = vsyncpa %s5641, 1

</llo_original>
